<compile_context>
chip_gen: v6e
topology: v6e:2x2x1
jax: 0.10.0
libtpu: 0.0.40
codegen_flags: <defaults>
</compile_context>

<pallas_src>
import numpy as np
import jax
import jax.numpy as jnp
from jax import lax
from jax.experimental import pallas as pl
from jax.experimental.pallas import tpu as pltpu

EPS = 1e-5                      # BatchNorm eps
MXU_DTYPE = jnp.bfloat16        # matmul operand dtype (f32 accumulation)
PAD_H = 5                       # band radius (11 // 2) -> H halo
PAD_W = 8                       # W halo rounded up to sublane alignment (>= 5)


# ---------------------------------------------------------------------------
# helpers
# ---------------------------------------------------------------------------
def _rep_spec(a):
    """Whole (small) array, same block for every grid step (weights)."""
    nd = a.ndim
    return pl.BlockSpec(a.shape, lambda n, _nd=nd: (0,) * _nd)


def _pick_tap_dtype():
    """bf16 tap math on chips with a bf16 VALU (v6e / v7x); f32 otherwise."""
    try:
        kind = jax.devices()[0].device_kind.lower()
    except Exception:
        return jnp.float32
    if "tpu" not in kind:
        return jnp.float32
    for old in ("v2", "v3", "v4", "v5"):
        if old in kind:
            return jnp.float32
    return jnp.bfloat16


# ---------------------------------------------------------------------------
# weight folding (wrapper-side, exact: everything before GELU is linear)
# ---------------------------------------------------------------------------
def _fold_downsample(p, Cp):
    conv_w = p["conv_w"]                               # (Cout, Cin, 2, 2)
    cout = conv_w.shape[0]
    s = p["bn_w"] / jnp.sqrt(p["bn_rv"] + EPS)
    t = p["bn_b"] - p["bn_rm"] * s
    # stacked tap weights, row order matches space-to-depth (di, dj, cin)
    wstk = jnp.concatenate(
        [conv_w[:, :, di, dj].T for di in range(2) for dj in range(2)], axis=0)
    wd = jnp.tile(s, 4)[:, None] * wstk                # BN scale folded
    bd = jnp.tile(t, 4) @ wstk + p["conv_b"]           # BN shift folded
    wd = jnp.pad(wd, ((0, 0), (0, Cp - cout))).astype(MXU_DTYPE)
    bd = jnp.pad(bd, (0, Cp - cout)).reshape(1, Cp)    # f32 bias (padded cols = 0)
    return wd, bd


def _fold_block(p, C, Cp, tap_dtype):
    gc = p["hw_w"].shape[0]
    c_id = C - 3 * gc
    hidden = p["fc1_w"].shape[0]
    s = p["bn_w"] / jnp.sqrt(p["bn_rv"] + EPS)
    t = p["bn_b"] - p["bn_rm"] * s

    # per-branch tap table, (31, gc): rows 0-8 = 3x3 hw, 9-19 = 1x11 w, 20-30 = 11x1 h
    rows = []
    for oi in (-1, 0, 1):
        for oj in (-1, 0, 1):
            rows.append(p["hw_w"][:, 0, oi + 1, oj + 1])
    for oj in range(-5, 6):
        rows.append(p["w_w"][:, 0, 0, oj + 5])
    for oi in range(-5, 6):
        rows.append(p["h_w"][:, 0, oi + 5, 0])
    taps = jnp.stack(rows).astype(tap_dtype)           # (31, gc)

    # BN scale/shift and the dwconv biases folded into fc1 weight / bias
    bias_vec = jnp.concatenate(
        [jnp.zeros((c_id,), jnp.float32), p["hw_b"], p["w_b"], p["h_b"]])
    w1 = p["fc1_w"].reshape(hidden, C).T                # (C, hidden)
    w1f = (s[:, None] * w1).astype(MXU_DTYPE)
    b1f = ((t + s * bias_vec) @ w1 + p["fc1_b"]).reshape(1, hidden)

    # layer-scale gamma folded into fc2 weight / bias; output cols padded to Cp
    w2 = p["fc2_w"].reshape(C, hidden).T                # (hidden, C)
    w2f = jnp.pad(w2 * p["gamma"][None, :], ((0, 0), (0, Cp - C))).astype(MXU_DTYPE)
    b2f = jnp.pad(p["fc2_b"] * p["gamma"], (0, Cp - C)).reshape(1, Cp)
    return [taps, w1f, b1f, w2f, b2f]


# ---------------------------------------------------------------------------
# fused stage kernel: downsample matmul + depth x (token mixer + ConvMlp)
# ---------------------------------------------------------------------------
def _make_stage_kernel(Nb, Ho, Wo, Cin4, C, Cp, gc, c_id, depth, tap_dtype):
    P = Ho * Wo
    Hp = Ho + 2 * PAD_H
    Wp = Wo + 2 * PAD_W

    def kernel(*refs):
        x4_ref, wd_ref, bd_ref = refs[0], refs[1], refs[2]
        blk = refs[3:3 + 5 * depth]
        out_ref = refs[3 + 5 * depth]
        pad_scr = refs[4 + 5 * depth]

        # ---- zero ONLY the halo strips, on every grid step.  The interior is
        # fully overwritten before each use and the halo is never written, so
        # each grid step is self-contained (legal under "parallel" sharding).
        pad_scr[:, :PAD_H, :, :] = jnp.zeros((Nb, PAD_H, Wp, Cp), tap_dtype)
        pad_scr[:, PAD_H + Ho:, :, :] = jnp.zeros((Nb, PAD_H, Wp, Cp), tap_dtype)
        pad_scr[:, PAD_H:PAD_H + Ho, :PAD_W, :] = jnp.zeros((Nb, Ho, PAD_W, Cp), tap_dtype)
        pad_scr[:, PAD_H:PAD_H + Ho, PAD_W + Wo:, :] = jnp.zeros((Nb, Ho, PAD_W, Cp), tap_dtype)

        # ---- downsample: single fused (Nb*P, 4Cin) x (4Cin, Cp) matmul, BN folded
        x4 = x4_ref[...].reshape(Nb * P, Cin4)
        y = jnp.dot(x4, wd_ref[...], preferred_element_type=jnp.float32) + bd_ref[...]
        y = y.reshape(Nb, Ho, Wo, Cp)                   # padded channels are 0

        for d in range(depth):
            taps_ref, w1_ref, b1_ref, w2_ref, b2_ref = blk[5 * d:5 * d + 5]
            taps = taps_ref[...]                        # (31, gc)

            y_mix = y.astype(tap_dtype)
            # sublane(W)-aligned interior store (PAD_W = 8); halo stays zero.
            pad_scr[:, PAD_H:PAD_H + Ho, PAD_W:PAD_W + Wo, :] = y_mix

            # ---- Inception token mixer: each depthwise branch only touches its
            # own gc-wide channel slice; identity channels pass through.
            u_parts = []
            if c_id > 0:
                u_parts.append(y_mix[..., :c_id])

            # 3x3 depthwise branch -> channels [c_id, c_id + gc)
            lo, hi = c_id, c_id + gc
            acc = y_mix[..., lo:hi] * taps[4]           # center tap, no scratch read
            for oi in (-1, 0, 1):
                for oj in (-1, 0, 1):
                    if oi == 0 and oj == 0:
                        continue
                    win = pad_scr[:, PAD_H + oi:PAD_H + oi + Ho,
                                  PAD_W + oj:PAD_W + oj + Wo, lo:hi]
                    acc = acc + win * taps[3 * (oi + 1) + (oj + 1)]
            u_parts.append(acc)

            # 1x11 depthwise (W band) -> channels [c_id + gc, c_id + 2gc)
            lo, hi = c_id + gc, c_id + 2 * gc
            acc = y_mix[..., lo:hi] * taps[9 + 5]
            for oj in range(-5, 6):
                if oj == 0:
                    continue
                win = pad_scr[:, PAD_H:PAD_H + Ho,
                              PAD_W + oj:PAD_W + oj + Wo, lo:hi]
                acc = acc + win * taps[9 + oj + 5]
            u_parts.append(acc)

            # 11x1 depthwise (H band) -> channels [c_id + 2gc, C)
            lo, hi = c_id + 2 * gc, c_id + 3 * gc
            acc = y_mix[..., lo:hi] * taps[20 + 5]
            for oi in range(-5, 6):
                if oi == 0:
                    continue
                win = pad_scr[:, PAD_H + oi:PAD_H + oi + Ho,
                              PAD_W:PAD_W + Wo, lo:hi]
                acc = acc + win * taps[20 + oi + 5]
            u_parts.append(acc)

            u = jnp.concatenate(u_parts, axis=-1)       # (Nb, Ho, Wo, C)

            # ---- ConvMlp (1x1 convs == matmuls). BN folded into w1/b1,
            # layer-scale gamma folded into w2/b2. tanh GELU -> EUP slot.
            h1 = jnp.dot(u.reshape(Nb * P, C).astype(MXU_DTYPE), w1_ref[...],
                         preferred_element_type=jnp.float32) + b1_ref[...]
            h1 = jax.nn.gelu(h1, approximate=True)
            o = jnp.dot(h1.astype(MXU_DTYPE), w2_ref[...],
                        preferred_element_type=jnp.float32) + b2_ref[...]

            # ---- residual (drop_path = identity); padded channels stay 0
            y = y + o.reshape(Nb, Ho, Wo, Cp)

        out_ref[...] = y.reshape(Nb, P, Cp)             # lane-dense (Cp % 128 == 0)

    return kernel


def metanext_stage(x_nchw, params, tap_dtype=None):
    if tap_dtype is None:
        tap_dtype = _pick_tap_dtype()
    x = jnp.transpose(x_nchw, (0, 2, 3, 1)).astype(jnp.float32)   # NCHW -> NHWC
    N, H, W, Cin = x.shape
    Cout = params["down"]["conv_w"].shape[0]
    depth = len(params["blocks"])
    gc = params["blocks"][0]["hw_w"].shape[0]
    c_id = Cout - 3 * gc
    hidden = params["blocks"][0]["fc1_w"].shape[0]
    Ho, Wo = H // 2, W // 2
    P = Ho * Wo
    Cp = ((Cout + 127) // 128) * 128                   # lane-dense channel dim

    # space-to-depth: single contiguous (N, P, 4*Cin) activation -> one matmul
    x4 = (x.reshape(N, Ho, 2, Wo, 2, Cin)
            .transpose(0, 1, 3, 2, 4, 5)
            .reshape(N, P, 4 * Cin)).astype(MXU_DTYPE)

    wd, bd = _fold_downsample(params["down"], Cp)
    blk_args = []
    for bp in params["blocks"]:
        blk_args += _fold_block(bp, Cout, Cp, tap_dtype)
    weights = [wd, bd] + blk_args

    tap_isz = jnp.dtype(tap_dtype).itemsize

    def vmem_est(nb):
        scr = nb * (Ho + 2 * PAD_H) * (Wo + 2 * PAD_W) * Cp * tap_isz
        xblk = 2 * nb * P * 4 * Cin * 2                 # double-buffered bf16 input
        oblk = 2 * nb * P * Cp * 4                      # double-buffered f32 output
        wts = 2 * sum(int(a.size) * a.dtype.itemsize for a in weights)
        tmp = nb * P * (4 * Cp + 2 * hidden) * 4        # rough live temporaries
        return scr + xblk + oblk + wts + tmp

    # batch blocking: target matmul M ~ 512 rows (fills a 256x256 MXU), keep
    # grid length >= 2 so both v7x TensorCores get work, and fit a VMEM budget
    # that also holds on v7x's 64 MiB VMEM.
    VMEM_BUDGET = 40 * 1024 * 1024
    nb_target = max(1, 512 // P)
    if N >= 2:
        nb_target = min(nb_target, N // 2)
    nb_target = max(1, min(nb_target, N))
    Nb = 1
    for cand in range(nb_target, 0, -1):
        if N % cand == 0 and vmem_est(cand) <= VMEM_BUDGET:
            Nb = cand
            break

    kernel = _make_stage_kernel(Nb, Ho, Wo, 4 * Cin, Cout, Cp, gc, c_id,
                                depth, tap_dtype)
    in_specs = ([pl.BlockSpec((Nb, P, 4 * Cin), lambda n: (n, 0, 0))]
                + [_rep_spec(a) for a in weights])

    vmem_limit = int(min(64 * 1024 * 1024, max(2 * vmem_est(Nb), 32 * 1024 * 1024)))

    out = pl.pallas_call(
        kernel,
        out_shape=jax.ShapeDtypeStruct((N, P, Cp), jnp.float32),
        grid=(N // Nb,),
        in_specs=in_specs,
        out_specs=pl.BlockSpec((Nb, P, Cp), lambda n: (n, 0, 0)),
        scratch_shapes=[pltpu.VMEM((Nb, Ho + 2 * PAD_H, Wo + 2 * PAD_W, Cp),
                                   tap_dtype)],
        compiler_params=pltpu.CompilerParams(
            dimension_semantics=("parallel",),
            vmem_limit_bytes=vmem_limit),
    )(x4, *weights)

    y = out.reshape(N, Ho, Wo, Cp)[..., :Cout]
    return jnp.transpose(y, (0, 3, 1, 2))              # back to NCHW


# ---------------------------------------------------------------------------
# Deterministic parameter init (shapes taken from the PyTorch __init__)
# ---------------------------------------------------------------------------
def init_params(key, in_chs, out_chs, depth, mlp_ratio=4, branch_ratio=0.125,
                ls_init_value=1.0):
    gc = int(out_chs * branch_ratio)
    hidden = int(mlp_ratio * out_chs)
    keys = iter(jax.random.split(key, 64))

    def nrm(shape, scale=0.1):
        return (scale * jax.random.normal(next(keys), shape)).astype(jnp.float32)

    def bn(n):
        return dict(
            bn_w=1.0 + nrm((n,), 0.05),
            bn_b=nrm((n,), 0.02),
            bn_rm=nrm((n,), 0.05),
            bn_rv=jax.random.uniform(next(keys), (n,), minval=0.8, maxval=1.2).astype(jnp.float32),
        )

    down = dict(**bn(in_chs),
                conv_w=nrm((out_chs, in_chs, 2, 2)),
                conv_b=nrm((out_chs,), 0.02))
    blocks = []
    for _ in range(depth):
        blocks.append(dict(
            hw_w=nrm((gc, 1, 3, 3)), hw_b=nrm((gc,), 0.02),
            w_w=nrm((gc, 1, 1, 11)), w_b=nrm((gc,), 0.02),
            h_w=nrm((gc, 1, 11, 1)), h_b=nrm((gc,), 0.02),
            **bn(out_chs),
            fc1_w=nrm((hidden, out_chs, 1, 1)), fc1_b=nrm((hidden,), 0.02),
            fc2_w=nrm((out_chs, hidden, 1, 1)), fc2_b=nrm((out_chs,), 0.02),
            gamma=ls_init_value * jnp.ones((out_chs,), jnp.float32),
        ))
    return dict(down=down, blocks=blocks)


# ---------------------------------------------------------------------------
# Pure-JAX reference (PyTorch semantics: exact erf GELU, f32, XLA convs)
# ---------------------------------------------------------------------------
def _ref_bn(x, p):
    s = p["bn_w"] / jnp.sqrt(p["bn_rv"] + EPS)
    return x * s + (p["bn_b"] - p["bn_rm"] * s)


def _ref_dwconv(x, w, b, pad):
    g = x.shape[-1]
    out = lax.conv_general_dilated(
        x, jnp.transpose(w, (2, 3, 1, 0)), (1, 1),
        [(pad[0], pad[0]), (pad[1], pad[1])],
        dimension_numbers=("NHWC", "HWIO", "NHWC"), feature_group_count=g)
    return out + b


def ref_stage(x_nchw, params):
    x = jnp.transpose(x_nchw, (0, 2, 3, 1))
    p = params["down"]
    y = lax.conv_general_dilated(
        _ref_bn(x, p), jnp.transpose(p["conv_w"], (2, 3, 1, 0)), (2, 2), "VALID",
        dimension_numbers=("NHWC", "HWIO", "NHWC")) + p["conv_b"]
    for bp in params["blocks"]:
        C = y.shape[-1]
        gc = bp["hw_w"].shape[0]
        c_id = C - 3 * gc
        hidden = bp["fc1_w"].shape[0]
        shortcut = y
        tm = jnp.concatenate([
            y[..., :c_id],
            _ref_dwconv(y[..., c_id:c_id + gc], bp["hw_w"], bp["hw_b"], (1, 1)),
            _ref_dwconv(y[..., c_id + gc:c_id + 2 * gc], bp["w_w"], bp["w_b"], (0, 5)),
            _ref_dwconv(y[..., c_id + 2 * gc:], bp["h_w"], bp["h_b"], (5, 0)),
        ], axis=-1)
        z = _ref_bn(tm, bp)
        h = jnp.einsum("nhwc,fc->nhwf", z, bp["fc1_w"].reshape(hidden, C)) + bp["fc1_b"]
        h = jax.nn.gelu(h, approximate=False)
        o = jnp.einsum("nhwf,cf->nhwc", h, bp["fc2_w"].reshape(C, hidden)) + bp["fc2_b"]
        y = shortcut + o * bp["gamma"]
    return jnp.transpose(y, (0, 3, 1, 2))


if __name__ == "__main__":
    N, in_chs, H, W = 2, 16, 16, 16
    out_chs, depth = 32, 2

    key = jax.random.PRNGKey(0)
    kx, kp = jax.random.split(key)
    x = jax.random.normal(kx, (N, in_chs, H, W), dtype=jnp.float32)   # NCHW like PyTorch
    params = init_params(kp, in_chs, out_chs, depth)

    out = jax.block_until_ready(metanext_stage(x, params))
    ref = jax.block_until_ready(ref_stage(x, params))

    assert out.shape == (N, out_chs, H // 2, W // 2), out.shape
    if not np.allclose(np.asarray(out), np.asarray(ref), rtol=5e-2, atol=5e-2):
        err = float(np.max(np.abs(np.asarray(out) - np.asarray(ref))))
        raise AssertionError(f"Pallas result mismatch vs reference, max abs err = {err}")
    print("KERNEL_OK")
</pallas_src>

<mosaic_0001>
module attributes {stable_mosaic.version = 11 : i64} {
  func.func @kernel(%arg0: i32, %arg1: memref<1x64x64xbf16, #tpu.memory_space<vmem>>, %arg2: memref<64x128xbf16, #tpu.memory_space<vmem>>, %arg3: memref<1x128xf32, #tpu.memory_space<vmem>>, %arg4: memref<31x4xf32, #tpu.memory_space<vmem>>, %arg5: memref<32x128xbf16, #tpu.memory_space<vmem>>, %arg6: memref<1x128xf32, #tpu.memory_space<vmem>>, %arg7: memref<128x128xbf16, #tpu.memory_space<vmem>>, %arg8: memref<1x128xf32, #tpu.memory_space<vmem>>, %arg9: memref<31x4xf32, #tpu.memory_space<vmem>>, %arg10: memref<32x128xbf16, #tpu.memory_space<vmem>>, %arg11: memref<1x128xf32, #tpu.memory_space<vmem>>, %arg12: memref<128x128xbf16, #tpu.memory_space<vmem>>, %arg13: memref<1x128xf32, #tpu.memory_space<vmem>>, %arg14: memref<1x64x128xf32, #tpu.memory_space<vmem>>, %arg15: memref<1x18x24x128xf32, #tpu.memory_space<vmem>>) attributes {dimension_semantics = [#tpu.dimension_semantics<parallel>], iteration_bounds = array<i64: 2>, scalar_prefetch = 0 : i64, scratch_operands = 1 : i64, tpu.core_type = #tpu.core_type<tc>, window_params = [{transform_indices = @transform_0, window_bounds = array<i64: 1, 64, 64>}, {pipeline_mode = #tpu.pipeline_mode<synchronous>, transform_indices = @transform_1, window_bounds = array<i64: 64, 128>}, {pipeline_mode = #tpu.pipeline_mode<synchronous>, transform_indices = @transform_2, window_bounds = array<i64: 1, 128>}, {pipeline_mode = #tpu.pipeline_mode<synchronous>, transform_indices = @transform_3, window_bounds = array<i64: 31, 4>}, {pipeline_mode = #tpu.pipeline_mode<synchronous>, transform_indices = @transform_4, window_bounds = array<i64: 32, 128>}, {pipeline_mode = #tpu.pipeline_mode<synchronous>, transform_indices = @transform_5, window_bounds = array<i64: 1, 128>}, {pipeline_mode = #tpu.pipeline_mode<synchronous>, transform_indices = @transform_6, window_bounds = array<i64: 128, 128>}, {pipeline_mode = #tpu.pipeline_mode<synchronous>, transform_indices = @transform_7, window_bounds = array<i64: 1, 128>}, {pipeline_mode = #tpu.pipeline_mode<synchronous>, transform_indices = @transform_8, window_bounds = array<i64: 31, 4>}, {pipeline_mode = #tpu.pipeline_mode<synchronous>, transform_indices = @transform_9, window_bounds = array<i64: 32, 128>}, {pipeline_mode = #tpu.pipeline_mode<synchronous>, transform_indices = @transform_10, window_bounds = array<i64: 1, 128>}, {pipeline_mode = #tpu.pipeline_mode<synchronous>, transform_indices = @transform_11, window_bounds = array<i64: 128, 128>}, {pipeline_mode = #tpu.pipeline_mode<synchronous>, transform_indices = @transform_12, window_bounds = array<i64: 1, 128>}, {transform_indices = @transform_13, window_bounds = array<i64: 1, 64, 128>}]} {
    %cst = arith.constant 0.000000e+00 : f32
    %0 = vector.broadcast %cst : f32 to vector<1x5x24x128xf32>
    %c0 = arith.constant 0 : index
    %c0_0 = arith.constant 0 : index
    %c0_1 = arith.constant 0 : index
    %c0_2 = arith.constant 0 : index
    %1 = vector.load %arg15[%c0, %c0_0, %c0_1, %c0_2] : memref<1x18x24x128xf32, #tpu.memory_space<vmem>>, vector<1x5x24x128xf32>
    tpu.vector_store %arg15[%c0, %c0_0, %c0_1, %c0_2], %0 {strides = array<i32>} : memref<1x18x24x128xf32, #tpu.memory_space<vmem>>, vector<1x5x24x128xf32>,
    %cst_3 = arith.constant 0.000000e+00 : f32
    %2 = vector.broadcast %cst_3 : f32 to vector<1x5x24x128xf32>
    %c0_4 = arith.constant 0 : index
    %c13 = arith.constant 13 : index
    %c0_5 = arith.constant 0 : index
    %c0_6 = arith.constant 0 : index
    %3 = vector.load %arg15[%c0_4, %c13, %c0_5, %c0_6] : memref<1x18x24x128xf32, #tpu.memory_space<vmem>>, vector<1x5x24x128xf32>
    tpu.vector_store %arg15[%c0_4, %c13, %c0_5, %c0_6], %2 {strides = array<i32>} : memref<1x18x24x128xf32, #tpu.memory_space<vmem>>, vector<1x5x24x128xf32>,
    %cst_7 = arith.constant 0.000000e+00 : f32
    %4 = vector.broadcast %cst_7 : f32 to vector<1x8x8x128xf32>
    %c0_8 = arith.constant 0 : index
    %c5 = arith.constant 5 : index
    %c0_9 = arith.constant 0 : index
    %c0_10 = arith.constant 0 : index
    %5 = vector.load %arg15[%c0_8, %c5, %c0_9, %c0_10] : memref<1x18x24x128xf32, #tpu.memory_space<vmem>>, vector<1x8x8x128xf32>
    tpu.vector_store %arg15[%c0_8, %c5, %c0_9, %c0_10], %4 {strides = array<i32>} : memref<1x18x24x128xf32, #tpu.memory_space<vmem>>, vector<1x8x8x128xf32>,
    %cst_11 = arith.constant 0.000000e+00 : f32
    %6 = vector.broadcast %cst_11 : f32 to vector<1x8x8x128xf32>
    %c0_12 = arith.constant 0 : index
    %c5_13 = arith.constant 5 : index
    %c16 = arith.constant 16 : index
    %c0_14 = arith.constant 0 : index
    %7 = vector.load %arg15[%c0_12, %c5_13, %c16, %c0_14] : memref<1x18x24x128xf32, #tpu.memory_space<vmem>>, vector<1x8x8x128xf32>
    tpu.vector_store %arg15[%c0_12, %c5_13, %c16, %c0_14], %6 {strides = array<i32>} : memref<1x18x24x128xf32, #tpu.memory_space<vmem>>, vector<1x8x8x128xf32>,
    %c0_15 = arith.constant 0 : index
    %c0_16 = arith.constant 0 : index
    %c0_17 = arith.constant 0 : index
    %8 = vector.load %arg1[%c0_15, %c0_16, %c0_17] : memref<1x64x64xbf16, #tpu.memory_space<vmem>>, vector<1x64x64xbf16>
    %9 = vector.shape_cast %8 : vector<1x64x64xbf16> to vector<64x64xbf16>
    %c0_18 = arith.constant 0 : index
    %c0_19 = arith.constant 0 : index
    %10 = vector.load %arg2[%c0_18, %c0_19] : memref<64x128xbf16, #tpu.memory_space<vmem>>, vector<64x128xbf16>
    %cst_20 = arith.constant dense<0.000000e+00> : vector<64x128xf32>
    %11 = tpu.matmul %9, %10, %cst_20 {dimension_numbers = #tpu.dot_dimension_numbers<[1], [0], [0], [1], [0, 0, 1, 1], [], []>} : vector<64x64xbf16>, vector<64x128xbf16>, vector<64x128xf32> -> vector<64x128xf32>
    %c0_21 = arith.constant 0 : index
    %c0_22 = arith.constant 0 : index
    %12 = vector.load %arg3[%c0_21, %c0_22] : memref<1x128xf32, #tpu.memory_space<vmem>>, vector<1x128xf32>
    %13 = vector.broadcast %12 : vector<1x128xf32> to vector<64x128xf32>
    %14 = arith.addf %11, %13 : vector<64x128xf32>
    %15 = vector.shape_cast %14 : vector<64x128xf32> to vector<1x8x8x128xf32>
    %c0_23 = arith.constant 0 : index
    %c0_24 = arith.constant 0 : index
    %16 = vector.load %arg4[%c0_23, %c0_24] : memref<31x4xf32, #tpu.memory_space<vmem>>, vector<31x4xf32>
    %c0_25 = arith.constant 0 : index
    %c5_26 = arith.constant 5 : index
    %c8 = arith.constant 8 : index
    %c0_27 = arith.constant 0 : index
    %17 = vector.load %arg15[%c0_25, %c5_26, %c8, %c0_27] : memref<1x18x24x128xf32, #tpu.memory_space<vmem>>, vector<1x8x8x128xf32>
    tpu.vector_store %arg15[%c0_25, %c5_26, %c8, %c0_27], %15 {strides = array<i32>} : memref<1x18x24x128xf32, #tpu.memory_space<vmem>>, vector<1x8x8x128xf32>,
    %18 = vector.extract_strided_slice %15 {offsets = [0, 0, 0, 0], sizes = [1, 8, 8, 20], strides = [1, 1, 1, 1]} : vector<1x8x8x128xf32> to vector<1x8x8x20xf32>
    %19 = vector.extract_strided_slice %15 {offsets = [0, 0, 0, 20], sizes = [1, 8, 8, 4], strides = [1, 1, 1, 1]} : vector<1x8x8x128xf32> to vector<1x8x8x4xf32>
    %20 = vector.extract_strided_slice %16 {offsets = [4, 0], sizes = [1, 4], strides = [1, 1]} : vector<31x4xf32> to vector<1x4xf32>
    %21 = vector.shape_cast %20 : vector<1x4xf32> to vector<4xf32>
    %22 = vector.shape_cast %21 : vector<4xf32> to vector<1x1x1x4xf32>
    %23 = vector.broadcast %22 : vector<1x1x1x4xf32> to vector<1x8x8x4xf32>
    %24 = arith.mulf %19, %23 : vector<1x8x8x4xf32>
    %c0_28 = arith.constant 0 : index
    %c4 = arith.constant 4 : index
    %c7 = arith.constant 7 : index
    %c20 = arith.constant 20 : index
    %25 = vector.load %arg15[%c0_28, %c4, %c7, %c20] : memref<1x18x24x128xf32, #tpu.memory_space<vmem>>, vector<1x8x8x4xf32>
    %26 = vector.extract_strided_slice %16 {offsets = [0, 0], sizes = [1, 4], strides = [1, 1]} : vector<31x4xf32> to vector<1x4xf32>
    %27 = vector.shape_cast %26 : vector<1x4xf32> to vector<4xf32>
    %28 = vector.shape_cast %27 : vector<4xf32> to vector<1x1x1x4xf32>
    %29 = vector.broadcast %28 : vector<1x1x1x4xf32> to vector<1x8x8x4xf32>
    %30 = arith.mulf %25, %29 : vector<1x8x8x4xf32>
    %31 = arith.addf %24, %30 : vector<1x8x8x4xf32>
    %c0_29 = arith.constant 0 : index
    %c4_30 = arith.constant 4 : index
    %c8_31 = arith.constant 8 : index
    %c20_32 = arith.constant 20 : index
    %32 = vector.load %arg15[%c0_29, %c4_30, %c8_31, %c20_32] : memref<1x18x24x128xf32, #tpu.memory_space<vmem>>, vector<1x8x8x4xf32>
    %33 = vector.extract_strided_slice %16 {offsets = [1, 0], sizes = [1, 4], strides = [1, 1]} : vector<31x4xf32> to vector<1x4xf32>
    %34 = vector.shape_cast %33 : vector<1x4xf32> to vector<4xf32>
    %35 = vector.shape_cast %34 : vector<4xf32> to vector<1x1x1x4xf32>
    %36 = vector.broadcast %35 : vector<1x1x1x4xf32> to vector<1x8x8x4xf32>
    %37 = arith.mulf %32, %36 : vector<1x8x8x4xf32>
    %38 = arith.addf %31, %37 : vector<1x8x8x4xf32>
    %c0_33 = arith.constant 0 : index
    %c4_34 = arith.constant 4 : index
    %c9 = arith.constant 9 : index
    %c20_35 = arith.constant 20 : index
    %39 = vector.load %arg15[%c0_33, %c4_34, %c9, %c20_35] : memref<1x18x24x128xf32, #tpu.memory_space<vmem>>, vector<1x8x8x4xf32>
    %40 = vector.extract_strided_slice %16 {offsets = [2, 0], sizes = [1, 4], strides = [1, 1]} : vector<31x4xf32> to vector<1x4xf32>
    %41 = vector.shape_cast %40 : vector<1x4xf32> to vector<4xf32>
    %42 = vector.shape_cast %41 : vector<4xf32> to vector<1x1x1x4xf32>
    %43 = vector.broadcast %42 : vector<1x1x1x4xf32> to vector<1x8x8x4xf32>
    %44 = arith.mulf %39, %43 : vector<1x8x8x4xf32>
    %45 = arith.addf %38, %44 : vector<1x8x8x4xf32>
    %c0_36 = arith.constant 0 : index
    %c5_37 = arith.constant 5 : index
    %c7_38 = arith.constant 7 : index
    %c20_39 = arith.constant 20 : index
    %46 = vector.load %arg15[%c0_36, %c5_37, %c7_38, %c20_39] : memref<1x18x24x128xf32, #tpu.memory_space<vmem>>, vector<1x8x8x4xf32>
    %47 = vector.extract_strided_slice %16 {offsets = [3, 0], sizes = [1, 4], strides = [1, 1]} : vector<31x4xf32> to vector<1x4xf32>
    %48 = vector.shape_cast %47 : vector<1x4xf32> to vector<4xf32>
    %49 = vector.shape_cast %48 : vector<4xf32> to vector<1x1x1x4xf32>
    %50 = vector.broadcast %49 : vector<1x1x1x4xf32> to vector<1x8x8x4xf32>
    %51 = arith.mulf %46, %50 : vector<1x8x8x4xf32>
    %52 = arith.addf %45, %51 : vector<1x8x8x4xf32>
    %c0_40 = arith.constant 0 : index
    %c5_41 = arith.constant 5 : index
    %c9_42 = arith.constant 9 : index
    %c20_43 = arith.constant 20 : index
    %53 = vector.load %arg15[%c0_40, %c5_41, %c9_42, %c20_43] : memref<1x18x24x128xf32, #tpu.memory_space<vmem>>, vector<1x8x8x4xf32>
    %54 = vector.extract_strided_slice %16 {offsets = [5, 0], sizes = [1, 4], strides = [1, 1]} : vector<31x4xf32> to vector<1x4xf32>
    %55 = vector.shape_cast %54 : vector<1x4xf32> to vector<4xf32>
    %56 = vector.shape_cast %55 : vector<4xf32> to vector<1x1x1x4xf32>
    %57 = vector.broadcast %56 : vector<1x1x1x4xf32> to vector<1x8x8x4xf32>
    %58 = arith.mulf %53, %57 : vector<1x8x8x4xf32>
    %59 = arith.addf %52, %58 : vector<1x8x8x4xf32>
    %c0_44 = arith.constant 0 : index
    %c6 = arith.constant 6 : index
    %c7_45 = arith.constant 7 : index
    %c20_46 = arith.constant 20 : index
    %60 = vector.load %arg15[%c0_44, %c6, %c7_45, %c20_46] : memref<1x18x24x128xf32, #tpu.memory_space<vmem>>, vector<1x8x8x4xf32>
    %61 = vector.extract_strided_slice %16 {offsets = [6, 0], sizes = [1, 4], strides = [1, 1]} : vector<31x4xf32> to vector<1x4xf32>
    %62 = vector.shape_cast %61 : vector<1x4xf32> to vector<4xf32>
    %63 = vector.shape_cast %62 : vector<4xf32> to vector<1x1x1x4xf32>
    %64 = vector.broadcast %63 : vector<1x1x1x4xf32> to vector<1x8x8x4xf32>
    %65 = arith.mulf %60, %64 : vector<1x8x8x4xf32>
    %66 = arith.addf %59, %65 : vector<1x8x8x4xf32>
    %c0_47 = arith.constant 0 : index
    %c6_48 = arith.constant 6 : index
    %c8_49 = arith.constant 8 : index
    %c20_50 = arith.constant 20 : index
    %67 = vector.load %arg15[%c0_47, %c6_48, %c8_49, %c20_50] : memref<1x18x24x128xf32, #tpu.memory_space<vmem>>, vector<1x8x8x4xf32>
    %68 = vector.extract_strided_slice %16 {offsets = [7, 0], sizes = [1, 4], strides = [1, 1]} : vector<31x4xf32> to vector<1x4xf32>
    %69 = vector.shape_cast %68 : vector<1x4xf32> to vector<4xf32>
    %70 = vector.shape_cast %69 : vector<4xf32> to vector<1x1x1x4xf32>
    %71 = vector.broadcast %70 : vector<1x1x1x4xf32> to vector<1x8x8x4xf32>
    %72 = arith.mulf %67, %71 : vector<1x8x8x4xf32>
    %73 = arith.addf %66, %72 : vector<1x8x8x4xf32>
    %c0_51 = arith.constant 0 : index
    %c6_52 = arith.constant 6 : index
    %c9_53 = arith.constant 9 : index
    %c20_54 = arith.constant 20 : index
    %74 = vector.load %arg15[%c0_51, %c6_52, %c9_53, %c20_54] : memref<1x18x24x128xf32, #tpu.memory_space<vmem>>, vector<1x8x8x4xf32>
    %75 = vector.extract_strided_slice %16 {offsets = [8, 0], sizes = [1, 4], strides = [1, 1]} : vector<31x4xf32> to vector<1x4xf32>
    %76 = vector.shape_cast %75 : vector<1x4xf32> to vector<4xf32>
    %77 = vector.shape_cast %76 : vector<4xf32> to vector<1x1x1x4xf32>
    %78 = vector.broadcast %77 : vector<1x1x1x4xf32> to vector<1x8x8x4xf32>
    %79 = arith.mulf %74, %78 : vector<1x8x8x4xf32>
    %80 = arith.addf %73, %79 : vector<1x8x8x4xf32>
    %81 = vector.extract_strided_slice %15 {offsets = [0, 0, 0, 24], sizes = [1, 8, 8, 4], strides = [1, 1, 1, 1]} : vector<1x8x8x128xf32> to vector<1x8x8x4xf32>
    %82 = vector.extract_strided_slice %16 {offsets = [14, 0], sizes = [1, 4], strides = [1, 1]} : vector<31x4xf32> to vector<1x4xf32>
    %83 = vector.shape_cast %82 : vector<1x4xf32> to vector<4xf32>
    %84 = vector.shape_cast %83 : vector<4xf32> to vector<1x1x1x4xf32>
    %85 = vector.broadcast %84 : vector<1x1x1x4xf32> to vector<1x8x8x4xf32>
    %86 = arith.mulf %81, %85 : vector<1x8x8x4xf32>
    %c0_55 = arith.constant 0 : index
    %c5_56 = arith.constant 5 : index
    %c3 = arith.constant 3 : index
    %c24 = arith.constant 24 : index
    %87 = vector.load %arg15[%c0_55, %c5_56, %c3, %c24] : memref<1x18x24x128xf32, #tpu.memory_space<vmem>>, vector<1x8x8x4xf32>
    %88 = vector.extract_strided_slice %16 {offsets = [9, 0], sizes = [1, 4], strides = [1, 1]} : vector<31x4xf32> to vector<1x4xf32>
    %89 = vector.shape_cast %88 : vector<1x4xf32> to vector<4xf32>
    %90 = vector.shape_cast %89 : vector<4xf32> to vector<1x1x1x4xf32>
    %91 = vector.broadcast %90 : vector<1x1x1x4xf32> to vector<1x8x8x4xf32>
    %92 = arith.mulf %87, %91 : vector<1x8x8x4xf32>
    %93 = arith.addf %86, %92 : vector<1x8x8x4xf32>
    %c0_57 = arith.constant 0 : index
    %c5_58 = arith.constant 5 : index
    %c4_59 = arith.constant 4 : index
    %c24_60 = arith.constant 24 : index
    %94 = vector.load %arg15[%c0_57, %c5_58, %c4_59, %c24_60] : memref<1x18x24x128xf32, #tpu.memory_space<vmem>>, vector<1x8x8x4xf32>
    %95 = vector.extract_strided_slice %16 {offsets = [10, 0], sizes = [1, 4], strides = [1, 1]} : vector<31x4xf32> to vector<1x4xf32>
    %96 = vector.shape_cast %95 : vector<1x4xf32> to vector<4xf32>
    %97 = vector.shape_cast %96 : vector<4xf32> to vector<1x1x1x4xf32>
    %98 = vector.broadcast %97 : vector<1x1x1x4xf32> to vector<1x8x8x4xf32>
    %99 = arith.mulf %94, %98 : vector<1x8x8x4xf32>
    %100 = arith.addf %93, %99 : vector<1x8x8x4xf32>
    %c0_61 = arith.constant 0 : index
    %c5_62 = arith.constant 5 : index
    %c5_63 = arith.constant 5 : index
    %c24_64 = arith.constant 24 : index
    %101 = vector.load %arg15[%c0_61, %c5_62, %c5_63, %c24_64] : memref<1x18x24x128xf32, #tpu.memory_space<vmem>>, vector<1x8x8x4xf32>
    %102 = vector.extract_strided_slice %16 {offsets = [11, 0], sizes = [1, 4], strides = [1, 1]} : vector<31x4xf32> to vector<1x4xf32>
    %103 = vector.shape_cast %102 : vector<1x4xf32> to vector<4xf32>
    %104 = vector.shape_cast %103 : vector<4xf32> to vector<1x1x1x4xf32>
    %105 = vector.broadcast %104 : vector<1x1x1x4xf32> to vector<1x8x8x4xf32>
    %106 = arith.mulf %101, %105 : vector<1x8x8x4xf32>
    %107 = arith.addf %100, %106 : vector<1x8x8x4xf32>
    %c0_65 = arith.constant 0 : index
    %c5_66 = arith.constant 5 : index
    %c6_67 = arith.constant 6 : index
    %c24_68 = arith.constant 24 : index
    %108 = vector.load %arg15[%c0_65, %c5_66, %c6_67, %c24_68] : memref<1x18x24x128xf32, #tpu.memory_space<vmem>>, vector<1x8x8x4xf32>
    %109 = vector.extract_strided_slice %16 {offsets = [12, 0], sizes = [1, 4], strides = [1, 1]} : vector<31x4xf32> to vector<1x4xf32>
    %110 = vector.shape_cast %109 : vector<1x4xf32> to vector<4xf32>
    %111 = vector.shape_cast %110 : vector<4xf32> to vector<1x1x1x4xf32>
    %112 = vector.broadcast %111 : vector<1x1x1x4xf32> to vector<1x8x8x4xf32>
    %113 = arith.mulf %108, %112 : vector<1x8x8x4xf32>
    %114 = arith.addf %107, %113 : vector<1x8x8x4xf32>
    %c0_69 = arith.constant 0 : index
    %c5_70 = arith.constant 5 : index
    %c7_71 = arith.constant 7 : index
    %c24_72 = arith.constant 24 : index
    %115 = vector.load %arg15[%c0_69, %c5_70, %c7_71, %c24_72] : memref<1x18x24x128xf32, #tpu.memory_space<vmem>>, vector<1x8x8x4xf32>
    %116 = vector.extract_strided_slice %16 {offsets = [13, 0], sizes = [1, 4], strides = [1, 1]} : vector<31x4xf32> to vector<1x4xf32>
    %117 = vector.shape_cast %116 : vector<1x4xf32> to vector<4xf32>
    %118 = vector.shape_cast %117 : vector<4xf32> to vector<1x1x1x4xf32>
    %119 = vector.broadcast %118 : vector<1x1x1x4xf32> to vector<1x8x8x4xf32>
    %120 = arith.mulf %115, %119 : vector<1x8x8x4xf32>
    %121 = arith.addf %114, %120 : vector<1x8x8x4xf32>
    %c0_73 = arith.constant 0 : index
    %c5_74 = arith.constant 5 : index
    %c9_75 = arith.constant 9 : index
    %c24_76 = arith.constant 24 : index
    %122 = vector.load %arg15[%c0_73, %c5_74, %c9_75, %c24_76] : memref<1x18x24x128xf32, #tpu.memory_space<vmem>>, vector<1x8x8x4xf32>
    %123 = vector.extract_strided_slice %16 {offsets = [15, 0], sizes = [1, 4], strides = [1, 1]} : vector<31x4xf32> to vector<1x4xf32>
    %124 = vector.shape_cast %123 : vector<1x4xf32> to vector<4xf32>
    %125 = vector.shape_cast %124 : vector<4xf32> to vector<1x1x1x4xf32>
    %126 = vector.broadcast %125 : vector<1x1x1x4xf32> to vector<1x8x8x4xf32>
    %127 = arith.mulf %122, %126 : vector<1x8x8x4xf32>
    %128 = arith.addf %121, %127 : vector<1x8x8x4xf32>
    %c0_77 = arith.constant 0 : index
    %c5_78 = arith.constant 5 : index
    %c10 = arith.constant 10 : index
    %c24_79 = arith.constant 24 : index
    %129 = vector.load %arg15[%c0_77, %c5_78, %c10, %c24_79] : memref<1x18x24x128xf32, #tpu.memory_space<vmem>>, vector<1x8x8x4xf32>
    %130 = vector.extract_strided_slice %16 {offsets = [16, 0], sizes = [1, 4], strides = [1, 1]} : vector<31x4xf32> to vector<1x4xf32>
    %131 = vector.shape_cast %130 : vector<1x4xf32> to vector<4xf32>
    %132 = vector.shape_cast %131 : vector<4xf32> to vector<1x1x1x4xf32>
    %133 = vector.broadcast %132 : vector<1x1x1x4xf32> to vector<1x8x8x4xf32>
    %134 = arith.mulf %129, %133 : vector<1x8x8x4xf32>
    %135 = arith.addf %128, %134 : vector<1x8x8x4xf32>
    %c0_80 = arith.constant 0 : index
    %c5_81 = arith.constant 5 : index
    %c11 = arith.constant 11 : index
    %c24_82 = arith.constant 24 : index
    %136 = vector.load %arg15[%c0_80, %c5_81, %c11, %c24_82] : memref<1x18x24x128xf32, #tpu.memory_space<vmem>>, vector<1x8x8x4xf32>
    %137 = vector.extract_strided_slice %16 {offsets = [17, 0], sizes = [1, 4], strides = [1, 1]} : vector<31x4xf32> to vector<1x4xf32>
    %138 = vector.shape_cast %137 : vector<1x4xf32> to vector<4xf32>
    %139 = vector.shape_cast %138 : vector<4xf32> to vector<1x1x1x4xf32>
    %140 = vector.broadcast %139 : vector<1x1x1x4xf32> to vector<1x8x8x4xf32>
    %141 = arith.mulf %136, %140 : vector<1x8x8x4xf32>
    %142 = arith.addf %135, %141 : vector<1x8x8x4xf32>
    %c0_83 = arith.constant 0 : index
    %c5_84 = arith.constant 5 : index
    %c12 = arith.constant 12 : index
    %c24_85 = arith.constant 24 : index
    %143 = vector.load %arg15[%c0_83, %c5_84, %c12, %c24_85] : memref<1x18x24x128xf32, #tpu.memory_space<vmem>>, vector<1x8x8x4xf32>
    %144 = vector.extract_strided_slice %16 {offsets = [18, 0], sizes = [1, 4], strides = [1, 1]} : vector<31x4xf32> to vector<1x4xf32>
    %145 = vector.shape_cast %144 : vector<1x4xf32> to vector<4xf32>
    %146 = vector.shape_cast %145 : vector<4xf32> to vector<1x1x1x4xf32>
    %147 = vector.broadcast %146 : vector<1x1x1x4xf32> to vector<1x8x8x4xf32>
    %148 = arith.mulf %143, %147 : vector<1x8x8x4xf32>
    %149 = arith.addf %142, %148 : vector<1x8x8x4xf32>
    %c0_86 = arith.constant 0 : index
    %c5_87 = arith.constant 5 : index
    %c13_88 = arith.constant 13 : index
    %c24_89 = arith.constant 24 : index
    %150 = vector.load %arg15[%c0_86, %c5_87, %c13_88, %c24_89] : memref<1x18x24x128xf32, #tpu.memory_space<vmem>>, vector<1x8x8x4xf32>
    %151 = vector.extract_strided_slice %16 {offsets = [19, 0], sizes = [1, 4], strides = [1, 1]} : vector<31x4xf32> to vector<1x4xf32>
    %152 = vector.shape_cast %151 : vector<1x4xf32> to vector<4xf32>
    %153 = vector.shape_cast %152 : vector<4xf32> to vector<1x1x1x4xf32>
    %154 = vector.broadcast %153 : vector<1x1x1x4xf32> to vector<1x8x8x4xf32>
    %155 = arith.mulf %150, %154 : vector<1x8x8x4xf32>
    %156 = arith.addf %149, %155 : vector<1x8x8x4xf32>
    %157 = vector.extract_strided_slice %15 {offsets = [0, 0, 0, 28], sizes = [1, 8, 8, 4], strides = [1, 1, 1, 1]} : vector<1x8x8x128xf32> to vector<1x8x8x4xf32>
    %158 = vector.extract_strided_slice %16 {offsets = [25, 0], sizes = [1, 4], strides = [1, 1]} : vector<31x4xf32> to vector<1x4xf32>
    %159 = vector.shape_cast %158 : vector<1x4xf32> to vector<4xf32>
    %160 = vector.shape_cast %159 : vector<4xf32> to vector<1x1x1x4xf32>
    %161 = vector.broadcast %160 : vector<1x1x1x4xf32> to vector<1x8x8x4xf32>
    %162 = arith.mulf %157, %161 : vector<1x8x8x4xf32>
    %c0_90 = arith.constant 0 : index
    %c0_91 = arith.constant 0 : index
    %c8_92 = arith.constant 8 : index
    %c28 = arith.constant 28 : index
    %163 = vector.load %arg15[%c0_90, %c0_91, %c8_92, %c28] : memref<1x18x24x128xf32, #tpu.memory_space<vmem>>, vector<1x8x8x4xf32>
    %164 = vector.extract_strided_slice %16 {offsets = [20, 0], sizes = [1, 4], strides = [1, 1]} : vector<31x4xf32> to vector<1x4xf32>
    %165 = vector.shape_cast %164 : vector<1x4xf32> to vector<4xf32>
    %166 = vector.shape_cast %165 : vector<4xf32> to vector<1x1x1x4xf32>
    %167 = vector.broadcast %166 : vector<1x1x1x4xf32> to vector<1x8x8x4xf32>
    %168 = arith.mulf %163, %167 : vector<1x8x8x4xf32>
    %169 = arith.addf %162, %168 : vector<1x8x8x4xf32>
    %c0_93 = arith.constant 0 : index
    %c1 = arith.constant 1 : index
    %c8_94 = arith.constant 8 : index
    %c28_95 = arith.constant 28 : index
    %170 = vector.load %arg15[%c0_93, %c1, %c8_94, %c28_95] : memref<1x18x24x128xf32, #tpu.memory_space<vmem>>, vector<1x8x8x4xf32>
    %171 = vector.extract_strided_slice %16 {offsets = [21, 0], sizes = [1, 4], strides = [1, 1]} : vector<31x4xf32> to vector<1x4xf32>
    %172 = vector.shape_cast %171 : vector<1x4xf32> to vector<4xf32>
    %173 = vector.shape_cast %172 : vector<4xf32> to vector<1x1x1x4xf32>
    %174 = vector.broadcast %173 : vector<1x1x1x4xf32> to vector<1x8x8x4xf32>
    %175 = arith.mulf %170, %174 : vector<1x8x8x4xf32>
    %176 = arith.addf %169, %175 : vector<1x8x8x4xf32>
    %c0_96 = arith.constant 0 : index
    %c2 = arith.constant 2 : index
    %c8_97 = arith.constant 8 : index
    %c28_98 = arith.constant 28 : index
    %177 = vector.load %arg15[%c0_96, %c2, %c8_97, %c28_98] : memref<1x18x24x128xf32, #tpu.memory_space<vmem>>, vector<1x8x8x4xf32>
    %178 = vector.extract_strided_slice %16 {offsets = [22, 0], sizes = [1, 4], strides = [1, 1]} : vector<31x4xf32> to vector<1x4xf32>
    %179 = vector.shape_cast %178 : vector<1x4xf32> to vector<4xf32>
    %180 = vector.shape_cast %179 : vector<4xf32> to vector<1x1x1x4xf32>
    %181 = vector.broadcast %180 : vector<1x1x1x4xf32> to vector<1x8x8x4xf32>
    %182 = arith.mulf %177, %181 : vector<1x8x8x4xf32>
    %183 = arith.addf %176, %182 : vector<1x8x8x4xf32>
    %c0_99 = arith.constant 0 : index
    %c3_100 = arith.constant 3 : index
    %c8_101 = arith.constant 8 : index
    %c28_102 = arith.constant 28 : index
    %184 = vector.load %arg15[%c0_99, %c3_100, %c8_101, %c28_102] : memref<1x18x24x128xf32, #tpu.memory_space<vmem>>, vector<1x8x8x4xf32>
    %185 = vector.extract_strided_slice %16 {offsets = [23, 0], sizes = [1, 4], strides = [1, 1]} : vector<31x4xf32> to vector<1x4xf32>
    %186 = vector.shape_cast %185 : vector<1x4xf32> to vector<4xf32>
    %187 = vector.shape_cast %186 : vector<4xf32> to vector<1x1x1x4xf32>
    %188 = vector.broadcast %187 : vector<1x1x1x4xf32> to vector<1x8x8x4xf32>
    %189 = arith.mulf %184, %188 : vector<1x8x8x4xf32>
    %190 = arith.addf %183, %189 : vector<1x8x8x4xf32>
    %c0_103 = arith.constant 0 : index
    %c4_104 = arith.constant 4 : index
    %c8_105 = arith.constant 8 : index
    %c28_106 = arith.constant 28 : index
    %191 = vector.load %arg15[%c0_103, %c4_104, %c8_105, %c28_106] : memref<1x18x24x128xf32, #tpu.memory_space<vmem>>, vector<1x8x8x4xf32>
    %192 = vector.extract_strided_slice %16 {offsets = [24, 0], sizes = [1, 4], strides = [1, 1]} : vector<31x4xf32> to vector<1x4xf32>
    %193 = vector.shape_cast %192 : vector<1x4xf32> to vector<4xf32>
    %194 = vector.shape_cast %193 : vector<4xf32> to vector<1x1x1x4xf32>
    %195 = vector.broadcast %194 : vector<1x1x1x4xf32> to vector<1x8x8x4xf32>
    %196 = arith.mulf %191, %195 : vector<1x8x8x4xf32>
    %197 = arith.addf %190, %196 : vector<1x8x8x4xf32>
    %c0_107 = arith.constant 0 : index
    %c6_108 = arith.constant 6 : index
    %c8_109 = arith.constant 8 : index
    %c28_110 = arith.constant 28 : index
    %198 = vector.load %arg15[%c0_107, %c6_108, %c8_109, %c28_110] : memref<1x18x24x128xf32, #tpu.memory_space<vmem>>, vector<1x8x8x4xf32>
    %199 = vector.extract_strided_slice %16 {offsets = [26, 0], sizes = [1, 4], strides = [1, 1]} : vector<31x4xf32> to vector<1x4xf32>
    %200 = vector.shape_cast %199 : vector<1x4xf32> to vector<4xf32>
    %201 = vector.shape_cast %200 : vector<4xf32> to vector<1x1x1x4xf32>
    %202 = vector.broadcast %201 : vector<1x1x1x4xf32> to vector<1x8x8x4xf32>
    %203 = arith.mulf %198, %202 : vector<1x8x8x4xf32>
    %204 = arith.addf %197, %203 : vector<1x8x8x4xf32>
    %c0_111 = arith.constant 0 : index
    %c7_112 = arith.constant 7 : index
    %c8_113 = arith.constant 8 : index
    %c28_114 = arith.constant 28 : index
    %205 = vector.load %arg15[%c0_111, %c7_112, %c8_113, %c28_114] : memref<1x18x24x128xf32, #tpu.memory_space<vmem>>, vector<1x8x8x4xf32>
    %206 = vector.extract_strided_slice %16 {offsets = [27, 0], sizes = [1, 4], strides = [1, 1]} : vector<31x4xf32> to vector<1x4xf32>
    %207 = vector.shape_cast %206 : vector<1x4xf32> to vector<4xf32>
    %208 = vector.shape_cast %207 : vector<4xf32> to vector<1x1x1x4xf32>
    %209 = vector.broadcast %208 : vector<1x1x1x4xf32> to vector<1x8x8x4xf32>
    %210 = arith.mulf %205, %209 : vector<1x8x8x4xf32>
    %211 = arith.addf %204, %210 : vector<1x8x8x4xf32>
    %c0_115 = arith.constant 0 : index
    %c8_116 = arith.constant 8 : index
    %c8_117 = arith.constant 8 : index
    %c28_118 = arith.constant 28 : index
    %212 = vector.load %arg15[%c0_115, %c8_116, %c8_117, %c28_118] : memref<1x18x24x128xf32, #tpu.memory_space<vmem>>, vector<1x8x8x4xf32>
    %213 = vector.extract_strided_slice %16 {offsets = [28, 0], sizes = [1, 4], strides = [1, 1]} : vector<31x4xf32> to vector<1x4xf32>
    %214 = vector.shape_cast %213 : vector<1x4xf32> to vector<4xf32>
    %215 = vector.shape_cast %214 : vector<4xf32> to vector<1x1x1x4xf32>
    %216 = vector.broadcast %215 : vector<1x1x1x4xf32> to vector<1x8x8x4xf32>
    %217 = arith.mulf %212, %216 : vector<1x8x8x4xf32>
    %218 = arith.addf %211, %217 : vector<1x8x8x4xf32>
    %c0_119 = arith.constant 0 : index
    %c9_120 = arith.constant 9 : index
    %c8_121 = arith.constant 8 : index
    %c28_122 = arith.constant 28 : index
    %219 = vector.load %arg15[%c0_119, %c9_120, %c8_121, %c28_122] : memref<1x18x24x128xf32, #tpu.memory_space<vmem>>, vector<1x8x8x4xf32>
    %220 = vector.extract_strided_slice %16 {offsets = [29, 0], sizes = [1, 4], strides = [1, 1]} : vector<31x4xf32> to vector<1x4xf32>
    %221 = vector.shape_cast %220 : vector<1x4xf32> to vector<4xf32>
    %222 = vector.shape_cast %221 : vector<4xf32> to vector<1x1x1x4xf32>
    %223 = vector.broadcast %222 : vector<1x1x1x4xf32> to vector<1x8x8x4xf32>
    %224 = arith.mulf %219, %223 : vector<1x8x8x4xf32>
    %225 = arith.addf %218, %224 : vector<1x8x8x4xf32>
    %c0_123 = arith.constant 0 : index
    %c10_124 = arith.constant 10 : index
    %c8_125 = arith.constant 8 : index
    %c28_126 = arith.constant 28 : index
    %226 = vector.load %arg15[%c0_123, %c10_124, %c8_125, %c28_126] : memref<1x18x24x128xf32, #tpu.memory_space<vmem>>, vector<1x8x8x4xf32>
    %227 = vector.extract_strided_slice %16 {offsets = [30, 0], sizes = [1, 4], strides = [1, 1]} : vector<31x4xf32> to vector<1x4xf32>
    %228 = vector.shape_cast %227 : vector<1x4xf32> to vector<4xf32>
    %229 = vector.shape_cast %228 : vector<4xf32> to vector<1x1x1x4xf32>
    %230 = vector.broadcast %229 : vector<1x1x1x4xf32> to vector<1x8x8x4xf32>
    %231 = arith.mulf %226, %230 : vector<1x8x8x4xf32>
    %232 = arith.addf %225, %231 : vector<1x8x8x4xf32>
    %233 = tpu.concatenate %18, %80, %156, %232 in 3 : vector<1x8x8x20xf32>, vector<1x8x8x4xf32>, vector<1x8x8x4xf32>, vector<1x8x8x4xf32> -> vector<1x8x8x32xf32>
    %234 = vector.shape_cast %233 : vector<1x8x8x32xf32> to vector<64x32xf32>
    %235 = arith.truncf %234 : vector<64x32xf32> to vector<64x32xbf16>
    %c0_127 = arith.constant 0 : index
    %c0_128 = arith.constant 0 : index
    %236 = vector.load %arg5[%c0_127, %c0_128] : memref<32x128xbf16, #tpu.memory_space<vmem>>, vector<32x128xbf16>
    %cst_129 = arith.constant dense<0.000000e+00> : vector<64x128xf32>
    %237 = tpu.matmul %235, %236, %cst_129 {dimension_numbers = #tpu.dot_dimension_numbers<[1], [0], [0], [1], [0, 0, 1, 1], [], []>} : vector<64x32xbf16>, vector<32x128xbf16>, vector<64x128xf32> -> vector<64x128xf32>
    %c0_130 = arith.constant 0 : index
    %c0_131 = arith.constant 0 : index
    %238 = vector.load %arg6[%c0_130, %c0_131] : memref<1x128xf32, #tpu.memory_space<vmem>>, vector<1x128xf32>
    %239 = vector.broadcast %238 : vector<1x128xf32> to vector<64x128xf32>
    %240 = arith.addf %237, %239 : vector<64x128xf32>
    %241 = arith.mulf %240, %240 : vector<64x128xf32>
    %242 = arith.mulf %240, %241 : vector<64x128xf32>
    %cst_132 = arith.constant 4.471500e-02 : f32
    %243 = vector.broadcast %cst_132 : f32 to vector<64x128xf32>
    %244 = arith.mulf %243, %242 : vector<64x128xf32>
    %245 = arith.addf %240, %244 : vector<64x128xf32>
    %cst_133 = arith.constant 0.797884583 : f32
    %246 = vector.broadcast %cst_133 : f32 to vector<64x128xf32>
    %247 = arith.mulf %246, %245 : vector<64x128xf32>
    %248 = math.tanh %247 : vector<64x128xf32>
    %cst_134 = arith.constant 1.000000e+00 : f32
    %249 = vector.broadcast %cst_134 : f32 to vector<64x128xf32>
    %250 = arith.addf %249, %248 : vector<64x128xf32>
    %cst_135 = arith.constant 5.000000e-01 : f32
    %251 = vector.broadcast %cst_135 : f32 to vector<64x128xf32>
    %252 = arith.mulf %251, %250 : vector<64x128xf32>
    %253 = arith.mulf %240, %252 : vector<64x128xf32>
    %254 = arith.truncf %253 : vector<64x128xf32> to vector<64x128xbf16>
    %c0_136 = arith.constant 0 : index
    %c0_137 = arith.constant 0 : index
    %255 = vector.load %arg7[%c0_136, %c0_137] : memref<128x128xbf16, #tpu.memory_space<vmem>>, vector<128x128xbf16>
    %cst_138 = arith.constant dense<0.000000e+00> : vector<64x128xf32>
    %256 = tpu.matmul %254, %255, %cst_138 {dimension_numbers = #tpu.dot_dimension_numbers<[1], [0], [0], [1], [0, 0, 1, 1], [], []>} : vector<64x128xbf16>, vector<128x128xbf16>, vector<64x128xf32> -> vector<64x128xf32>
    %c0_139 = arith.constant 0 : index
    %c0_140 = arith.constant 0 : index
    %257 = vector.load %arg8[%c0_139, %c0_140] : memref<1x128xf32, #tpu.memory_space<vmem>>, vector<1x128xf32>
    %258 = vector.broadcast %257 : vector<1x128xf32> to vector<64x128xf32>
    %259 = arith.addf %256, %258 : vector<64x128xf32>
    %260 = vector.shape_cast %259 : vector<64x128xf32> to vector<1x8x8x128xf32>
    %261 = arith.addf %15, %260 : vector<1x8x8x128xf32>
    %c0_141 = arith.constant 0 : index
    %c0_142 = arith.constant 0 : index
    %262 = vector.load %arg9[%c0_141, %c0_142] : memref<31x4xf32, #tpu.memory_space<vmem>>, vector<31x4xf32>
    %c0_143 = arith.constant 0 : index
    %c5_144 = arith.constant 5 : index
    %c8_145 = arith.constant 8 : index
    %c0_146 = arith.constant 0 : index
    %263 = vector.load %arg15[%c0_143, %c5_144, %c8_145, %c0_146] : memref<1x18x24x128xf32, #tpu.memory_space<vmem>>, vector<1x8x8x128xf32>
    tpu.vector_store %arg15[%c0_143, %c5_144, %c8_145, %c0_146], %261 {strides = array<i32>} : memref<1x18x24x128xf32, #tpu.memory_space<vmem>>, vector<1x8x8x128xf32>,
    %264 = vector.extract_strided_slice %261 {offsets = [0, 0, 0, 0], sizes = [1, 8, 8, 20], strides = [1, 1, 1, 1]} : vector<1x8x8x128xf32> to vector<1x8x8x20xf32>
    %265 = vector.extract_strided_slice %261 {offsets = [0, 0, 0, 20], sizes = [1, 8, 8, 4], strides = [1, 1, 1, 1]} : vector<1x8x8x128xf32> to vector<1x8x8x4xf32>
    %266 = vector.extract_strided_slice %262 {offsets = [4, 0], sizes = [1, 4], strides = [1, 1]} : vector<31x4xf32> to vector<1x4xf32>
    %267 = vector.shape_cast %266 : vector<1x4xf32> to vector<4xf32>
    %268 = vector.shape_cast %267 : vector<4xf32> to vector<1x1x1x4xf32>
    %269 = vector.broadcast %268 : vector<1x1x1x4xf32> to vector<1x8x8x4xf32>
    %270 = arith.mulf %265, %269 : vector<1x8x8x4xf32>
    %c0_147 = arith.constant 0 : index
    %c4_148 = arith.constant 4 : index
    %c7_149 = arith.constant 7 : index
    %c20_150 = arith.constant 20 : index
    %271 = vector.load %arg15[%c0_147, %c4_148, %c7_149, %c20_150] : memref<1x18x24x128xf32, #tpu.memory_space<vmem>>, vector<1x8x8x4xf32>
    %272 = vector.extract_strided_slice %262 {offsets = [0, 0], sizes = [1, 4], strides = [1, 1]} : vector<31x4xf32> to vector<1x4xf32>
    %273 = vector.shape_cast %272 : vector<1x4xf32> to vector<4xf32>
    %274 = vector.shape_cast %273 : vector<4xf32> to vector<1x1x1x4xf32>
    %275 = vector.broadcast %274 : vector<1x1x1x4xf32> to vector<1x8x8x4xf32>
    %276 = arith.mulf %271, %275 : vector<1x8x8x4xf32>
    %277 = arith.addf %270, %276 : vector<1x8x8x4xf32>
    %c0_151 = arith.constant 0 : index
    %c4_152 = arith.constant 4 : index
    %c8_153 = arith.constant 8 : index
    %c20_154 = arith.constant 20 : index
    %278 = vector.load %arg15[%c0_151, %c4_152, %c8_153, %c20_154] : memref<1x18x24x128xf32, #tpu.memory_space<vmem>>, vector<1x8x8x4xf32>
    %279 = vector.extract_strided_slice %262 {offsets = [1, 0], sizes = [1, 4], strides = [1, 1]} : vector<31x4xf32> to vector<1x4xf32>
    %280 = vector.shape_cast %279 : vector<1x4xf32> to vector<4xf32>
    %281 = vector.shape_cast %280 : vector<4xf32> to vector<1x1x1x4xf32>
    %282 = vector.broadcast %281 : vector<1x1x1x4xf32> to vector<1x8x8x4xf32>
    %283 = arith.mulf %278, %282 : vector<1x8x8x4xf32>
    %284 = arith.addf %277, %283 : vector<1x8x8x4xf32>
    %c0_155 = arith.constant 0 : index
    %c4_156 = arith.constant 4 : index
    %c9_157 = arith.constant 9 : index
    %c20_158 = arith.constant 20 : index
    %285 = vector.load %arg15[%c0_155, %c4_156, %c9_157, %c20_158] : memref<1x18x24x128xf32, #tpu.memory_space<vmem>>, vector<1x8x8x4xf32>
    %286 = vector.extract_strided_slice %262 {offsets = [2, 0], sizes = [1, 4], strides = [1, 1]} : vector<31x4xf32> to vector<1x4xf32>
    %287 = vector.shape_cast %286 : vector<1x4xf32> to vector<4xf32>
    %288 = vector.shape_cast %287 : vector<4xf32> to vector<1x1x1x4xf32>
    %289 = vector.broadcast %288 : vector<1x1x1x4xf32> to vector<1x8x8x4xf32>
    %290 = arith.mulf %285, %289 : vector<1x8x8x4xf32>
    %291 = arith.addf %284, %290 : vector<1x8x8x4xf32>
    %c0_159 = arith.constant 0 : index
    %c5_160 = arith.constant 5 : index
    %c7_161 = arith.constant 7 : index
    %c20_162 = arith.constant 20 : index
    %292 = vector.load %arg15[%c0_159, %c5_160, %c7_161, %c20_162] : memref<1x18x24x128xf32, #tpu.memory_space<vmem>>, vector<1x8x8x4xf32>
    %293 = vector.extract_strided_slice %262 {offsets = [3, 0], sizes = [1, 4], strides = [1, 1]} : vector<31x4xf32> to vector<1x4xf32>
    %294 = vector.shape_cast %293 : vector<1x4xf32> to vector<4xf32>
    %295 = vector.shape_cast %294 : vector<4xf32> to vector<1x1x1x4xf32>
    %296 = vector.broadcast %295 : vector<1x1x1x4xf32> to vector<1x8x8x4xf32>
    %297 = arith.mulf %292, %296 : vector<1x8x8x4xf32>
    %298 = arith.addf %291, %297 : vector<1x8x8x4xf32>
    %c0_163 = arith.constant 0 : index
    %c5_164 = arith.constant 5 : index
    %c9_165 = arith.constant 9 : index
    %c20_166 = arith.constant 20 : index
    %299 = vector.load %arg15[%c0_163, %c5_164, %c9_165, %c20_166] : memref<1x18x24x128xf32, #tpu.memory_space<vmem>>, vector<1x8x8x4xf32>
    %300 = vector.extract_strided_slice %262 {offsets = [5, 0], sizes = [1, 4], strides = [1, 1]} : vector<31x4xf32> to vector<1x4xf32>
    %301 = vector.shape_cast %300 : vector<1x4xf32> to vector<4xf32>
    %302 = vector.shape_cast %301 : vector<4xf32> to vector<1x1x1x4xf32>
    %303 = vector.broadcast %302 : vector<1x1x1x4xf32> to vector<1x8x8x4xf32>
    %304 = arith.mulf %299, %303 : vector<1x8x8x4xf32>
    %305 = arith.addf %298, %304 : vector<1x8x8x4xf32>
    %c0_167 = arith.constant 0 : index
    %c6_168 = arith.constant 6 : index
    %c7_169 = arith.constant 7 : index
    %c20_170 = arith.constant 20 : index
    %306 = vector.load %arg15[%c0_167, %c6_168, %c7_169, %c20_170] : memref<1x18x24x128xf32, #tpu.memory_space<vmem>>, vector<1x8x8x4xf32>
    %307 = vector.extract_strided_slice %262 {offsets = [6, 0], sizes = [1, 4], strides = [1, 1]} : vector<31x4xf32> to vector<1x4xf32>
    %308 = vector.shape_cast %307 : vector<1x4xf32> to vector<4xf32>
    %309 = vector.shape_cast %308 : vector<4xf32> to vector<1x1x1x4xf32>
    %310 = vector.broadcast %309 : vector<1x1x1x4xf32> to vector<1x8x8x4xf32>
    %311 = arith.mulf %306, %310 : vector<1x8x8x4xf32>
    %312 = arith.addf %305, %311 : vector<1x8x8x4xf32>
    %c0_171 = arith.constant 0 : index
    %c6_172 = arith.constant 6 : index
    %c8_173 = arith.constant 8 : index
    %c20_174 = arith.constant 20 : index
    %313 = vector.load %arg15[%c0_171, %c6_172, %c8_173, %c20_174] : memref<1x18x24x128xf32, #tpu.memory_space<vmem>>, vector<1x8x8x4xf32>
    %314 = vector.extract_strided_slice %262 {offsets = [7, 0], sizes = [1, 4], strides = [1, 1]} : vector<31x4xf32> to vector<1x4xf32>
    %315 = vector.shape_cast %314 : vector<1x4xf32> to vector<4xf32>
    %316 = vector.shape_cast %315 : vector<4xf32> to vector<1x1x1x4xf32>
    %317 = vector.broadcast %316 : vector<1x1x1x4xf32> to vector<1x8x8x4xf32>
    %318 = arith.mulf %313, %317 : vector<1x8x8x4xf32>
    %319 = arith.addf %312, %318 : vector<1x8x8x4xf32>
    %c0_175 = arith.constant 0 : index
    %c6_176 = arith.constant 6 : index
    %c9_177 = arith.constant 9 : index
    %c20_178 = arith.constant 20 : index
    %320 = vector.load %arg15[%c0_175, %c6_176, %c9_177, %c20_178] : memref<1x18x24x128xf32, #tpu.memory_space<vmem>>, vector<1x8x8x4xf32>
    %321 = vector.extract_strided_slice %262 {offsets = [8, 0], sizes = [1, 4], strides = [1, 1]} : vector<31x4xf32> to vector<1x4xf32>
    %322 = vector.shape_cast %321 : vector<1x4xf32> to vector<4xf32>
    %323 = vector.shape_cast %322 : vector<4xf32> to vector<1x1x1x4xf32>
    %324 = vector.broadcast %323 : vector<1x1x1x4xf32> to vector<1x8x8x4xf32>
    %325 = arith.mulf %320, %324 : vector<1x8x8x4xf32>
    %326 = arith.addf %319, %325 : vector<1x8x8x4xf32>
    %327 = vector.extract_strided_slice %261 {offsets = [0, 0, 0, 24], sizes = [1, 8, 8, 4], strides = [1, 1, 1, 1]} : vector<1x8x8x128xf32> to vector<1x8x8x4xf32>
    %328 = vector.extract_strided_slice %262 {offsets = [14, 0], sizes = [1, 4], strides = [1, 1]} : vector<31x4xf32> to vector<1x4xf32>
    %329 = vector.shape_cast %328 : vector<1x4xf32> to vector<4xf32>
    %330 = vector.shape_cast %329 : vector<4xf32> to vector<1x1x1x4xf32>
    %331 = vector.broadcast %330 : vector<1x1x1x4xf32> to vector<1x8x8x4xf32>
    %332 = arith.mulf %327, %331 : vector<1x8x8x4xf32>
    %c0_179 = arith.constant 0 : index
    %c5_180 = arith.constant 5 : index
    %c3_181 = arith.constant 3 : index
    %c24_182 = arith.constant 24 : index
    %333 = vector.load %arg15[%c0_179, %c5_180, %c3_181, %c24_182] : memref<1x18x24x128xf32, #tpu.memory_space<vmem>>, vector<1x8x8x4xf32>
    %334 = vector.extract_strided_slice %262 {offsets = [9, 0], sizes = [1, 4], strides = [1, 1]} : vector<31x4xf32> to vector<1x4xf32>
    %335 = vector.shape_cast %334 : vector<1x4xf32> to vector<4xf32>
    %336 = vector.shape_cast %335 : vector<4xf32> to vector<1x1x1x4xf32>
    %337 = vector.broadcast %336 : vector<1x1x1x4xf32> to vector<1x8x8x4xf32>
    %338 = arith.mulf %333, %337 : vector<1x8x8x4xf32>
    %339 = arith.addf %332, %338 : vector<1x8x8x4xf32>
    %c0_183 = arith.constant 0 : index
    %c5_184 = arith.constant 5 : index
    %c4_185 = arith.constant 4 : index
    %c24_186 = arith.constant 24 : index
    %340 = vector.load %arg15[%c0_183, %c5_184, %c4_185, %c24_186] : memref<1x18x24x128xf32, #tpu.memory_space<vmem>>, vector<1x8x8x4xf32>
    %341 = vector.extract_strided_slice %262 {offsets = [10, 0], sizes = [1, 4], strides = [1, 1]} : vector<31x4xf32> to vector<1x4xf32>
    %342 = vector.shape_cast %341 : vector<1x4xf32> to vector<4xf32>
    %343 = vector.shape_cast %342 : vector<4xf32> to vector<1x1x1x4xf32>
    %344 = vector.broadcast %343 : vector<1x1x1x4xf32> to vector<1x8x8x4xf32>
    %345 = arith.mulf %340, %344 : vector<1x8x8x4xf32>
    %346 = arith.addf %339, %345 : vector<1x8x8x4xf32>
    %c0_187 = arith.constant 0 : index
    %c5_188 = arith.constant 5 : index
    %c5_189 = arith.constant 5 : index
    %c24_190 = arith.constant 24 : index
    %347 = vector.load %arg15[%c0_187, %c5_188, %c5_189, %c24_190] : memref<1x18x24x128xf32, #tpu.memory_space<vmem>>, vector<1x8x8x4xf32>
    %348 = vector.extract_strided_slice %262 {offsets = [11, 0], sizes = [1, 4], strides = [1, 1]} : vector<31x4xf32> to vector<1x4xf32>
    %349 = vector.shape_cast %348 : vector<1x4xf32> to vector<4xf32>
    %350 = vector.shape_cast %349 : vector<4xf32> to vector<1x1x1x4xf32>
    %351 = vector.broadcast %350 : vector<1x1x1x4xf32> to vector<1x8x8x4xf32>
    %352 = arith.mulf %347, %351 : vector<1x8x8x4xf32>
    %353 = arith.addf %346, %352 : vector<1x8x8x4xf32>
    %c0_191 = arith.constant 0 : index
    %c5_192 = arith.constant 5 : index
    %c6_193 = arith.constant 6 : index
    %c24_194 = arith.constant 24 : index
    %354 = vector.load %arg15[%c0_191, %c5_192, %c6_193, %c24_194] : memref<1x18x24x128xf32, #tpu.memory_space<vmem>>, vector<1x8x8x4xf32>
    %355 = vector.extract_strided_slice %262 {offsets = [12, 0], sizes = [1, 4], strides = [1, 1]} : vector<31x4xf32> to vector<1x4xf32>
    %356 = vector.shape_cast %355 : vector<1x4xf32> to vector<4xf32>
    %357 = vector.shape_cast %356 : vector<4xf32> to vector<1x1x1x4xf32>
    %358 = vector.broadcast %357 : vector<1x1x1x4xf32> to vector<1x8x8x4xf32>
    %359 = arith.mulf %354, %358 : vector<1x8x8x4xf32>
    %360 = arith.addf %353, %359 : vector<1x8x8x4xf32>
    %c0_195 = arith.constant 0 : index
    %c5_196 = arith.constant 5 : index
    %c7_197 = arith.constant 7 : index
    %c24_198 = arith.constant 24 : index
    %361 = vector.load %arg15[%c0_195, %c5_196, %c7_197, %c24_198] : memref<1x18x24x128xf32, #tpu.memory_space<vmem>>, vector<1x8x8x4xf32>
    %362 = vector.extract_strided_slice %262 {offsets = [13, 0], sizes = [1, 4], strides = [1, 1]} : vector<31x4xf32> to vector<1x4xf32>
    %363 = vector.shape_cast %362 : vector<1x4xf32> to vector<4xf32>
    %364 = vector.shape_cast %363 : vector<4xf32> to vector<1x1x1x4xf32>
    %365 = vector.broadcast %364 : vector<1x1x1x4xf32> to vector<1x8x8x4xf32>
    %366 = arith.mulf %361, %365 : vector<1x8x8x4xf32>
    %367 = arith.addf %360, %366 : vector<1x8x8x4xf32>
    %c0_199 = arith.constant 0 : index
    %c5_200 = arith.constant 5 : index
    %c9_201 = arith.constant 9 : index
    %c24_202 = arith.constant 24 : index
    %368 = vector.load %arg15[%c0_199, %c5_200, %c9_201, %c24_202] : memref<1x18x24x128xf32, #tpu.memory_space<vmem>>, vector<1x8x8x4xf32>
    %369 = vector.extract_strided_slice %262 {offsets = [15, 0], sizes = [1, 4], strides = [1, 1]} : vector<31x4xf32> to vector<1x4xf32>
    %370 = vector.shape_cast %369 : vector<1x4xf32> to vector<4xf32>
    %371 = vector.shape_cast %370 : vector<4xf32> to vector<1x1x1x4xf32>
    %372 = vector.broadcast %371 : vector<1x1x1x4xf32> to vector<1x8x8x4xf32>
    %373 = arith.mulf %368, %372 : vector<1x8x8x4xf32>
    %374 = arith.addf %367, %373 : vector<1x8x8x4xf32>
    %c0_203 = arith.constant 0 : index
    %c5_204 = arith.constant 5 : index
    %c10_205 = arith.constant 10 : index
    %c24_206 = arith.constant 24 : index
    %375 = vector.load %arg15[%c0_203, %c5_204, %c10_205, %c24_206] : memref<1x18x24x128xf32, #tpu.memory_space<vmem>>, vector<1x8x8x4xf32>
    %376 = vector.extract_strided_slice %262 {offsets = [16, 0], sizes = [1, 4], strides = [1, 1]} : vector<31x4xf32> to vector<1x4xf32>
    %377 = vector.shape_cast %376 : vector<1x4xf32> to vector<4xf32>
    %378 = vector.shape_cast %377 : vector<4xf32> to vector<1x1x1x4xf32>
    %379 = vector.broadcast %378 : vector<1x1x1x4xf32> to vector<1x8x8x4xf32>
    %380 = arith.mulf %375, %379 : vector<1x8x8x4xf32>
    %381 = arith.addf %374, %380 : vector<1x8x8x4xf32>
    %c0_207 = arith.constant 0 : index
    %c5_208 = arith.constant 5 : index
    %c11_209 = arith.constant 11 : index
    %c24_210 = arith.constant 24 : index
    %382 = vector.load %arg15[%c0_207, %c5_208, %c11_209, %c24_210] : memref<1x18x24x128xf32, #tpu.memory_space<vmem>>, vector<1x8x8x4xf32>
    %383 = vector.extract_strided_slice %262 {offsets = [17, 0], sizes = [1, 4], strides = [1, 1]} : vector<31x4xf32> to vector<1x4xf32>
    %384 = vector.shape_cast %383 : vector<1x4xf32> to vector<4xf32>
    %385 = vector.shape_cast %384 : vector<4xf32> to vector<1x1x1x4xf32>
    %386 = vector.broadcast %385 : vector<1x1x1x4xf32> to vector<1x8x8x4xf32>
    %387 = arith.mulf %382, %386 : vector<1x8x8x4xf32>
    %388 = arith.addf %381, %387 : vector<1x8x8x4xf32>
    %c0_211 = arith.constant 0 : index
    %c5_212 = arith.constant 5 : index
    %c12_213 = arith.constant 12 : index
    %c24_214 = arith.constant 24 : index
    %389 = vector.load %arg15[%c0_211, %c5_212, %c12_213, %c24_214] : memref<1x18x24x128xf32, #tpu.memory_space<vmem>>, vector<1x8x8x4xf32>
    %390 = vector.extract_strided_slice %262 {offsets = [18, 0], sizes = [1, 4], strides = [1, 1]} : vector<31x4xf32> to vector<1x4xf32>
    %391 = vector.shape_cast %390 : vector<1x4xf32> to vector<4xf32>
    %392 = vector.shape_cast %391 : vector<4xf32> to vector<1x1x1x4xf32>
    %393 = vector.broadcast %392 : vector<1x1x1x4xf32> to vector<1x8x8x4xf32>
    %394 = arith.mulf %389, %393 : vector<1x8x8x4xf32>
    %395 = arith.addf %388, %394 : vector<1x8x8x4xf32>
    %c0_215 = arith.constant 0 : index
    %c5_216 = arith.constant 5 : index
    %c13_217 = arith.constant 13 : index
    %c24_218 = arith.constant 24 : index
    %396 = vector.load %arg15[%c0_215, %c5_216, %c13_217, %c24_218] : memref<1x18x24x128xf32, #tpu.memory_space<vmem>>, vector<1x8x8x4xf32>
    %397 = vector.extract_strided_slice %262 {offsets = [19, 0], sizes = [1, 4], strides = [1, 1]} : vector<31x4xf32> to vector<1x4xf32>
    %398 = vector.shape_cast %397 : vector<1x4xf32> to vector<4xf32>
    %399 = vector.shape_cast %398 : vector<4xf32> to vector<1x1x1x4xf32>
    %400 = vector.broadcast %399 : vector<1x1x1x4xf32> to vector<1x8x8x4xf32>
    %401 = arith.mulf %396, %400 : vector<1x8x8x4xf32>
    %402 = arith.addf %395, %401 : vector<1x8x8x4xf32>
    %403 = vector.extract_strided_slice %261 {offsets = [0, 0, 0, 28], sizes = [1, 8, 8, 4], strides = [1, 1, 1, 1]} : vector<1x8x8x128xf32> to vector<1x8x8x4xf32>
    %404 = vector.extract_strided_slice %262 {offsets = [25, 0], sizes = [1, 4], strides = [1, 1]} : vector<31x4xf32> to vector<1x4xf32>
    %405 = vector.shape_cast %404 : vector<1x4xf32> to vector<4xf32>
    %406 = vector.shape_cast %405 : vector<4xf32> to vector<1x1x1x4xf32>
    %407 = vector.broadcast %406 : vector<1x1x1x4xf32> to vector<1x8x8x4xf32>
    %408 = arith.mulf %403, %407 : vector<1x8x8x4xf32>
    %c0_219 = arith.constant 0 : index
    %c0_220 = arith.constant 0 : index
    %c8_221 = arith.constant 8 : index
    %c28_222 = arith.constant 28 : index
    %409 = vector.load %arg15[%c0_219, %c0_220, %c8_221, %c28_222] : memref<1x18x24x128xf32, #tpu.memory_space<vmem>>, vector<1x8x8x4xf32>
    %410 = vector.extract_strided_slice %262 {offsets = [20, 0], sizes = [1, 4], strides = [1, 1]} : vector<31x4xf32> to vector<1x4xf32>
    %411 = vector.shape_cast %410 : vector<1x4xf32> to vector<4xf32>
    %412 = vector.shape_cast %411 : vector<4xf32> to vector<1x1x1x4xf32>
    %413 = vector.broadcast %412 : vector<1x1x1x4xf32> to vector<1x8x8x4xf32>
    %414 = arith.mulf %409, %413 : vector<1x8x8x4xf32>
    %415 = arith.addf %408, %414 : vector<1x8x8x4xf32>
    %c0_223 = arith.constant 0 : index
    %c1_224 = arith.constant 1 : index
    %c8_225 = arith.constant 8 : index
    %c28_226 = arith.constant 28 : index
    %416 = vector.load %arg15[%c0_223, %c1_224, %c8_225, %c28_226] : memref<1x18x24x128xf32, #tpu.memory_space<vmem>>, vector<1x8x8x4xf32>
    %417 = vector.extract_strided_slice %262 {offsets = [21, 0], sizes = [1, 4], strides = [1, 1]} : vector<31x4xf32> to vector<1x4xf32>
    %418 = vector.shape_cast %417 : vector<1x4xf32> to vector<4xf32>
    %419 = vector.shape_cast %418 : vector<4xf32> to vector<1x1x1x4xf32>
    %420 = vector.broadcast %419 : vector<1x1x1x4xf32> to vector<1x8x8x4xf32>
    %421 = arith.mulf %416, %420 : vector<1x8x8x4xf32>
    %422 = arith.addf %415, %421 : vector<1x8x8x4xf32>
    %c0_227 = arith.constant 0 : index
    %c2_228 = arith.constant 2 : index
    %c8_229 = arith.constant 8 : index
    %c28_230 = arith.constant 28 : index
    %423 = vector.load %arg15[%c0_227, %c2_228, %c8_229, %c28_230] : memref<1x18x24x128xf32, #tpu.memory_space<vmem>>, vector<1x8x8x4xf32>
    %424 = vector.extract_strided_slice %262 {offsets = [22, 0], sizes = [1, 4], strides = [1, 1]} : vector<31x4xf32> to vector<1x4xf32>
    %425 = vector.shape_cast %424 : vector<1x4xf32> to vector<4xf32>
    %426 = vector.shape_cast %425 : vector<4xf32> to vector<1x1x1x4xf32>
    %427 = vector.broadcast %426 : vector<1x1x1x4xf32> to vector<1x8x8x4xf32>
    %428 = arith.mulf %423, %427 : vector<1x8x8x4xf32>
    %429 = arith.addf %422, %428 : vector<1x8x8x4xf32>
    %c0_231 = arith.constant 0 : index
    %c3_232 = arith.constant 3 : index
    %c8_233 = arith.constant 8 : index
    %c28_234 = arith.constant 28 : index
    %430 = vector.load %arg15[%c0_231, %c3_232, %c8_233, %c28_234] : memref<1x18x24x128xf32, #tpu.memory_space<vmem>>, vector<1x8x8x4xf32>
    %431 = vector.extract_strided_slice %262 {offsets = [23, 0], sizes = [1, 4], strides = [1, 1]} : vector<31x4xf32> to vector<1x4xf32>
    %432 = vector.shape_cast %431 : vector<1x4xf32> to vector<4xf32>
    %433 = vector.shape_cast %432 : vector<4xf32> to vector<1x1x1x4xf32>
    %434 = vector.broadcast %433 : vector<1x1x1x4xf32> to vector<1x8x8x4xf32>
    %435 = arith.mulf %430, %434 : vector<1x8x8x4xf32>
    %436 = arith.addf %429, %435 : vector<1x8x8x4xf32>
    %c0_235 = arith.constant 0 : index
    %c4_236 = arith.constant 4 : index
    %c8_237 = arith.constant 8 : index
    %c28_238 = arith.constant 28 : index
    %437 = vector.load %arg15[%c0_235, %c4_236, %c8_237, %c28_238] : memref<1x18x24x128xf32, #tpu.memory_space<vmem>>, vector<1x8x8x4xf32>
    %438 = vector.extract_strided_slice %262 {offsets = [24, 0], sizes = [1, 4], strides = [1, 1]} : vector<31x4xf32> to vector<1x4xf32>
    %439 = vector.shape_cast %438 : vector<1x4xf32> to vector<4xf32>
    %440 = vector.shape_cast %439 : vector<4xf32> to vector<1x1x1x4xf32>
    %441 = vector.broadcast %440 : vector<1x1x1x4xf32> to vector<1x8x8x4xf32>
    %442 = arith.mulf %437, %441 : vector<1x8x8x4xf32>
    %443 = arith.addf %436, %442 : vector<1x8x8x4xf32>
    %c0_239 = arith.constant 0 : index
    %c6_240 = arith.constant 6 : index
    %c8_241 = arith.constant 8 : index
    %c28_242 = arith.constant 28 : index
    %444 = vector.load %arg15[%c0_239, %c6_240, %c8_241, %c28_242] : memref<1x18x24x128xf32, #tpu.memory_space<vmem>>, vector<1x8x8x4xf32>
    %445 = vector.extract_strided_slice %262 {offsets = [26, 0], sizes = [1, 4], strides = [1, 1]} : vector<31x4xf32> to vector<1x4xf32>
    %446 = vector.shape_cast %445 : vector<1x4xf32> to vector<4xf32>
    %447 = vector.shape_cast %446 : vector<4xf32> to vector<1x1x1x4xf32>
    %448 = vector.broadcast %447 : vector<1x1x1x4xf32> to vector<1x8x8x4xf32>
    %449 = arith.mulf %444, %448 : vector<1x8x8x4xf32>
    %450 = arith.addf %443, %449 : vector<1x8x8x4xf32>
    %c0_243 = arith.constant 0 : index
    %c7_244 = arith.constant 7 : index
    %c8_245 = arith.constant 8 : index
    %c28_246 = arith.constant 28 : index
    %451 = vector.load %arg15[%c0_243, %c7_244, %c8_245, %c28_246] : memref<1x18x24x128xf32, #tpu.memory_space<vmem>>, vector<1x8x8x4xf32>
    %452 = vector.extract_strided_slice %262 {offsets = [27, 0], sizes = [1, 4], strides = [1, 1]} : vector<31x4xf32> to vector<1x4xf32>
    %453 = vector.shape_cast %452 : vector<1x4xf32> to vector<4xf32>
    %454 = vector.shape_cast %453 : vector<4xf32> to vector<1x1x1x4xf32>
    %455 = vector.broadcast %454 : vector<1x1x1x4xf32> to vector<1x8x8x4xf32>
    %456 = arith.mulf %451, %455 : vector<1x8x8x4xf32>
    %457 = arith.addf %450, %456 : vector<1x8x8x4xf32>
    %c0_247 = arith.constant 0 : index
    %c8_248 = arith.constant 8 : index
    %c8_249 = arith.constant 8 : index
    %c28_250 = arith.constant 28 : index
    %458 = vector.load %arg15[%c0_247, %c8_248, %c8_249, %c28_250] : memref<1x18x24x128xf32, #tpu.memory_space<vmem>>, vector<1x8x8x4xf32>
    %459 = vector.extract_strided_slice %262 {offsets = [28, 0], sizes = [1, 4], strides = [1, 1]} : vector<31x4xf32> to vector<1x4xf32>
    %460 = vector.shape_cast %459 : vector<1x4xf32> to vector<4xf32>
    %461 = vector.shape_cast %460 : vector<4xf32> to vector<1x1x1x4xf32>
    %462 = vector.broadcast %461 : vector<1x1x1x4xf32> to vector<1x8x8x4xf32>
    %463 = arith.mulf %458, %462 : vector<1x8x8x4xf32>
    %464 = arith.addf %457, %463 : vector<1x8x8x4xf32>
    %c0_251 = arith.constant 0 : index
    %c9_252 = arith.constant 9 : index
    %c8_253 = arith.constant 8 : index
    %c28_254 = arith.constant 28 : index
    %465 = vector.load %arg15[%c0_251, %c9_252, %c8_253, %c28_254] : memref<1x18x24x128xf32, #tpu.memory_space<vmem>>, vector<1x8x8x4xf32>
    %466 = vector.extract_strided_slice %262 {offsets = [29, 0], sizes = [1, 4], strides = [1, 1]} : vector<31x4xf32> to vector<1x4xf32>
    %467 = vector.shape_cast %466 : vector<1x4xf32> to vector<4xf32>
    %468 = vector.shape_cast %467 : vector<4xf32> to vector<1x1x1x4xf32>
    %469 = vector.broadcast %468 : vector<1x1x1x4xf32> to vector<1x8x8x4xf32>
    %470 = arith.mulf %465, %469 : vector<1x8x8x4xf32>
    %471 = arith.addf %464, %470 : vector<1x8x8x4xf32>
    %c0_255 = arith.constant 0 : index
    %c10_256 = arith.constant 10 : index
    %c8_257 = arith.constant 8 : index
    %c28_258 = arith.constant 28 : index
    %472 = vector.load %arg15[%c0_255, %c10_256, %c8_257, %c28_258] : memref<1x18x24x128xf32, #tpu.memory_space<vmem>>, vector<1x8x8x4xf32>
    %473 = vector.extract_strided_slice %262 {offsets = [30, 0], sizes = [1, 4], strides = [1, 1]} : vector<31x4xf32> to vector<1x4xf32>
    %474 = vector.shape_cast %473 : vector<1x4xf32> to vector<4xf32>
    %475 = vector.shape_cast %474 : vector<4xf32> to vector<1x1x1x4xf32>
    %476 = vector.broadcast %475 : vector<1x1x1x4xf32> to vector<1x8x8x4xf32>
    %477 = arith.mulf %472, %476 : vector<1x8x8x4xf32>
    %478 = arith.addf %471, %477 : vector<1x8x8x4xf32>
    %479 = tpu.concatenate %264, %326, %402, %478 in 3 : vector<1x8x8x20xf32>, vector<1x8x8x4xf32>, vector<1x8x8x4xf32>, vector<1x8x8x4xf32> -> vector<1x8x8x32xf32>
    %480 = vector.shape_cast %479 : vector<1x8x8x32xf32> to vector<64x32xf32>
    %481 = arith.truncf %480 : vector<64x32xf32> to vector<64x32xbf16>
    %c0_259 = arith.constant 0 : index
    %c0_260 = arith.constant 0 : index
    %482 = vector.load %arg10[%c0_259, %c0_260] : memref<32x128xbf16, #tpu.memory_space<vmem>>, vector<32x128xbf16>
    %cst_261 = arith.constant dense<0.000000e+00> : vector<64x128xf32>
    %483 = tpu.matmul %481, %482, %cst_261 {dimension_numbers = #tpu.dot_dimension_numbers<[1], [0], [0], [1], [0, 0, 1, 1], [], []>} : vector<64x32xbf16>, vector<32x128xbf16>, vector<64x128xf32> -> vector<64x128xf32>
    %c0_262 = arith.constant 0 : index
    %c0_263 = arith.constant 0 : index
    %484 = vector.load %arg11[%c0_262, %c0_263] : memref<1x128xf32, #tpu.memory_space<vmem>>, vector<1x128xf32>
    %485 = vector.broadcast %484 : vector<1x128xf32> to vector<64x128xf32>
    %486 = arith.addf %483, %485 : vector<64x128xf32>
    %487 = arith.mulf %486, %486 : vector<64x128xf32>
    %488 = arith.mulf %486, %487 : vector<64x128xf32>
    %cst_264 = arith.constant 4.471500e-02 : f32
    %489 = vector.broadcast %cst_264 : f32 to vector<64x128xf32>
    %490 = arith.mulf %489, %488 : vector<64x128xf32>
    %491 = arith.addf %486, %490 : vector<64x128xf32>
    %cst_265 = arith.constant 0.797884583 : f32
    %492 = vector.broadcast %cst_265 : f32 to vector<64x128xf32>
    %493 = arith.mulf %492, %491 : vector<64x128xf32>
    %494 = math.tanh %493 : vector<64x128xf32>
    %cst_266 = arith.constant 1.000000e+00 : f32
    %495 = vector.broadcast %cst_266 : f32 to vector<64x128xf32>
    %496 = arith.addf %495, %494 : vector<64x128xf32>
    %cst_267 = arith.constant 5.000000e-01 : f32
    %497 = vector.broadcast %cst_267 : f32 to vector<64x128xf32>
    %498 = arith.mulf %497, %496 : vector<64x128xf32>
    %499 = arith.mulf %486, %498 : vector<64x128xf32>
    %500 = arith.truncf %499 : vector<64x128xf32> to vector<64x128xbf16>
    %c0_268 = arith.constant 0 : index
    %c0_269 = arith.constant 0 : index
    %501 = vector.load %arg12[%c0_268, %c0_269] : memref<128x128xbf16, #tpu.memory_space<vmem>>, vector<128x128xbf16>
    %cst_270 = arith.constant dense<0.000000e+00> : vector<64x128xf32>
    %502 = tpu.matmul %500, %501, %cst_270 {dimension_numbers = #tpu.dot_dimension_numbers<[1], [0], [0], [1], [0, 0, 1, 1], [], []>} : vector<64x128xbf16>, vector<128x128xbf16>, vector<64x128xf32> -> vector<64x128xf32>
    %c0_271 = arith.constant 0 : index
    %c0_272 = arith.constant 0 : index
    %503 = vector.load %arg13[%c0_271, %c0_272] : memref<1x128xf32, #tpu.memory_space<vmem>>, vector<1x128xf32>
    %504 = vector.broadcast %503 : vector<1x128xf32> to vector<64x128xf32>
    %505 = arith.addf %502, %504 : vector<64x128xf32>
    %506 = vector.shape_cast %505 : vector<64x128xf32> to vector<1x8x8x128xf32>
    %507 = arith.addf %261, %506 : vector<1x8x8x128xf32>
    %508 = vector.shape_cast %507 : vector<1x8x8x128xf32> to vector<1x64x128xf32>
    %c0_273 = arith.constant 0 : index
    %c0_274 = arith.constant 0 : index
    %c0_275 = arith.constant 0 : index
    %509 = vector.load %arg14[%c0_273, %c0_274, %c0_275] : memref<1x64x128xf32, #tpu.memory_space<vmem>>, vector<1x64x128xf32>
    tpu.vector_store %arg14[%c0_273, %c0_274, %c0_275], %508 {strides = array<i32>} : memref<1x64x128xf32, #tpu.memory_space<vmem>>, vector<1x64x128xf32>,
    return
  }
  func.func @transform_0(%arg0: i32) -> (i32, i32, i32) {
    %c0_i32 = arith.constant 0 : i32
    %c0_i32_0 = arith.constant 0 : i32
    %c0_i32_1 = arith.constant 0 : i32
    return %arg0, %c0_i32, %c0_i32_0 : i32, i32, i32
  }
  func.func @transform_1(%arg0: i32) -> (i32, i32) {
    %c0_i32 = arith.constant 0 : i32
    %c0_i32_0 = arith.constant 0 : i32
    %c0_i32_1 = arith.constant 0 : i32
    return %c0_i32, %c0_i32_0 : i32, i32
  }
  func.func @transform_2(%arg0: i32) -> (i32, i32) {
    %c0_i32 = arith.constant 0 : i32
    %c0_i32_0 = arith.constant 0 : i32
    %c0_i32_1 = arith.constant 0 : i32
    return %c0_i32, %c0_i32_0 : i32, i32
  }
  func.func @transform_3(%arg0: i32) -> (i32, i32) {
    %c0_i32 = arith.constant 0 : i32
    %c0_i32_0 = arith.constant 0 : i32
    %c0_i32_1 = arith.constant 0 : i32
    return %c0_i32, %c0_i32_0 : i32, i32
  }
  func.func @transform_4(%arg0: i32) -> (i32, i32) {
    %c0_i32 = arith.constant 0 : i32
    %c0_i32_0 = arith.constant 0 : i32
    %c0_i32_1 = arith.constant 0 : i32
    return %c0_i32, %c0_i32_0 : i32, i32
  }
  func.func @transform_5(%arg0: i32) -> (i32, i32) {
    %c0_i32 = arith.constant 0 : i32
    %c0_i32_0 = arith.constant 0 : i32
    %c0_i32_1 = arith.constant 0 : i32
    return %c0_i32, %c0_i32_0 : i32, i32
  }
  func.func @transform_6(%arg0: i32) -> (i32, i32) {
    %c0_i32 = arith.constant 0 : i32
    %c0_i32_0 = arith.constant 0 : i32
    %c0_i32_1 = arith.constant 0 : i32
    return %c0_i32, %c0_i32_0 : i32, i32
  }
  func.func @transform_7(%arg0: i32) -> (i32, i32) {
    %c0_i32 = arith.constant 0 : i32
    %c0_i32_0 = arith.constant 0 : i32
    %c0_i32_1 = arith.constant 0 : i32
    return %c0_i32, %c0_i32_0 : i32, i32
  }
  func.func @transform_8(%arg0: i32) -> (i32, i32) {
    %c0_i32 = arith.constant 0 : i32
    %c0_i32_0 = arith.constant 0 : i32
    %c0_i32_1 = arith.constant 0 : i32
    return %c0_i32, %c0_i32_0 : i32, i32
  }
  func.func @transform_9(%arg0: i32) -> (i32, i32) {
    %c0_i32 = arith.constant 0 : i32
    %c0_i32_0 = arith.constant 0 : i32
    %c0_i32_1 = arith.constant 0 : i32
    return %c0_i32, %c0_i32_0 : i32, i32
  }
  func.func @transform_10(%arg0: i32) -> (i32, i32) {
    %c0_i32 = arith.constant 0 : i32
    %c0_i32_0 = arith.constant 0 : i32
    %c0_i32_1 = arith.constant 0 : i32
    return %c0_i32, %c0_i32_0 : i32, i32
  }
  func.func @transform_11(%arg0: i32) -> (i32, i32) {
    %c0_i32 = arith.constant 0 : i32
    %c0_i32_0 = arith.constant 0 : i32
    %c0_i32_1 = arith.constant 0 : i32
    return %c0_i32, %c0_i32_0 : i32, i32
  }
  func.func @transform_12(%arg0: i32) -> (i32, i32) {
    %c0_i32 = arith.constant 0 : i32
    %c0_i32_0 = arith.constant 0 : i32
    %c0_i32_1 = arith.constant 0 : i32
    return %c0_i32, %c0_i32_0 : i32, i32
  }
  func.func @transform_13(%arg0: i32) -> (i32, i32, i32) {
    %c0_i32 = arith.constant 0 : i32
    %c0_i32_0 = arith.constant 0 : i32
    %c0_i32_1 = arith.constant 0 : i32
    return %arg0, %c0_i32, %c0_i32_0 : i32, i32, i32
  }
}

</mosaic_0001>

<llo_original>
// kernel: tpu_custom_call.1
$region0: #{tpu_custom_call.1}
  #allocation0 [shape = 'u32[]', space=smem, size = 0x4, offset = 0x4, fixed_abs, tag = 'smem constant byte address 0x4 - core index']
  #allocation1 [shape = 'u32[144,128]{1,0:T(1,128)}', space=vmem, size = 0x12000, scoped, tag = 'internal scratch']
  #allocation2 [shape = 'f32[1,18,24,128]{3,2,1,0:T(8,128)}', space=vmem, size = 0x36000, scoped, tag = 'scratch operand']
  %s0 = inlined_call_operand.vmem [shape: bf16[2,64,64], index: 0, kind: input, shape index: {}]
  %s1 = inlined_call_operand.hbm [shape: bf16[64,128], index: 1, kind: input, shape index: {}]
  %s2 = inlined_call_operand.hbm [shape: f32[1,128], index: 2, kind: input, shape index: {}]
  %s3 = inlined_call_operand.vmem [shape: f32[31,4], index: 3, kind: input, shape index: {}]
  %s4 = inlined_call_operand.hbm [shape: bf16[32,128], index: 4, kind: input, shape index: {}]
  %s5 = inlined_call_operand.hbm [shape: f32[1,128], index: 5, kind: input, shape index: {}]
  %s6 = inlined_call_operand.hbm [shape: bf16[128,128], index: 6, kind: input, shape index: {}]
  %s7 = inlined_call_operand.hbm [shape: f32[1,128], index: 7, kind: input, shape index: {}]
  %s8 = inlined_call_operand.vmem [shape: f32[31,4], index: 8, kind: input, shape index: {}]
  %s9 = inlined_call_operand.vmem [shape: bf16[32,128], index: 9, kind: input, shape index: {}]
  %s10 = inlined_call_operand.vmem [shape: f32[1,128], index: 10, kind: input, shape index: {}]
  %s11 = inlined_call_operand.hbm [shape: bf16[128,128], index: 11, kind: input, shape index: {}]
  %s12 = inlined_call_operand.vmem [shape: f32[1,128], index: 12, kind: input, shape index: {}]
  %s13 = inlined_call_operand.hbm [shape: f32[2,64,128], index: 13, kind: output, shape index: {}]
  %s14 = sld [smem:[#allocation0]]
  $region113: #{tpu_custom_call.1} parent=0
    _
  %s16 = ssub.s32 1, %s14
  %s17 = scalar_select 0, %s16, %s14
  $region1: #{tpu_custom_call.1} parent=0
    #allocation3 [shape = 'u8[16384]{0}', space=vmem, size = 0x4000, scoped, tag = 'input window, operand 1, single buffered']
    #allocation4 [shape = 's32[2]{0}', space=sflag, size = 0x8, scoped, tag = 'scoped memory for tpu_custom_call.1']
    #allocation5 [shape = 's32[2]{0}', space=sflag, size = 0x8, scoped, tag = 'scoped memory for tpu_custom_call.1']
    #allocation6 [shape = 'u8[512]{0}', space=vmem, size = 0x400, scoped, tag = 'input window, operand 2, single buffered']
    #allocation7 [shape = 's32[1]{0}', space=sflag, size = 0x4, scoped, tag = 'scoped memory for tpu_custom_call.1']
    #allocation8 [shape = 'u8[8192]{0}', space=vmem, size = 0x2000, scoped, tag = 'input window, operand 4, single buffered']
    #allocation9 [shape = 'u8[512]{0}', space=vmem, size = 0x400, scoped, tag = 'input window, operand 5, single buffered']
    #allocation10 [shape = 's32[1]{0}', space=sflag, size = 0x4, scoped, tag = 'scoped memory for tpu_custom_call.1']
    #allocation11 [shape = 'u8[32768]{0}', space=vmem, size = 0x8000, scoped, tag = 'input window, operand 6, single buffered']
    #allocation12 [shape = 'u8[512]{0}', space=vmem, size = 0x400, scoped, tag = 'input window, operand 7, single buffered']
    #allocation13 [shape = 's32[1]{0}', space=sflag, size = 0x4, scoped, tag = 'scoped memory for tpu_custom_call.1']
    #allocation14 [shape = 'u8[32768]{0}', space=vmem, size = 0x8000, scoped, tag = 'input window, operand 11, single buffered']
    #allocation15 [shape = 'u8[65536]{0}', space=vmem, size = 0x10000, scoped, tag = 'output window, operand 0']
    %18 = vsyncpa [#allocation4], 0
    %19 = vsyncpa [#allocation7], 0
    %20 = vsyncpa [#allocation10], 0
    %21 = vsyncpa [#allocation13], 0
    %22 = vsyncpa [#allocation5], 0
    %s23 = scalar_lea.sflag [#allocation5], 1
    %24 = vsyncpa %s23, 0
    loop: start=0, step=1, limit=4
    $region2: #{tpu_custom_call.1} parent=1 // loop_pre_header
      _
    $region3: #{tpu_custom_call.1} parent=1 // loop_header
      %s26 = sphi 0, %s30
      %p27 = scmp.ge.s32.totalorder %s26, 4
      %s36 = sphi 0, %s38
      %s39 = sphi 0, %s36
      %s40 = sphi 0, %s39
      %s56 = sphi 0, %s40
      %s60 = sphi 0, %s60
      %s62 = sphi 0, %s60
      %s63 = sphi 0, %s62
      %s77 = sphi 0, %s63
      %s81 = sphi 0, %s81
      %s83 = sphi 0, %s81
      %s84 = sphi 0, %s83
      %s98 = sphi 0, %s84
      %s102 = sphi 0, %s102
      %s104 = sphi 0, %s102
      %s105 = sphi 0, %s104
      %s119 = sphi 0, %s105
      %s123 = sphi 0, %s123
      %s125 = sphi 0, %s123
      %s126 = sphi 0, %s125
      %s140 = sphi 0, %s126
      %s144 = sphi 0, %s144
      %s146 = sphi 0, %s144
      %s147 = sphi 0, %s146
      %s161 = sphi 0, %s147
      %s165 = sphi 0, %s165
      %s167 = sphi 0, %s165
      %s168 = sphi 0, %s167
      %s182 = sphi 0, %s168
      %s186 = sphi 0, %s186
      %s188 = sphi 0, %s186
      %s189 = sphi 0, %s188
      %s203 = sphi 0, %s189
      %s207 = sphi 0, %s207
      %s209 = sphi 0, %s207
      %s210 = sphi 0, %s209
      %s224 = sphi 0, %s210
      %s228 = sphi 0, %s228
      %s230 = sphi 0, %s228
      %s231 = sphi 0, %s230
      %s245 = sphi 0, %s231
      %s249 = sphi 0, %s249
      %s251 = sphi 0, %s249
      %s252 = sphi 0, %s251
      %s266 = sphi 0, %s252
      %s270 = sphi 0, %s270
      %s272 = sphi 0, %s270
      %s273 = sphi 0, %s272
      %s287 = sphi 0, %s273
      %s291 = sphi 0, %s291
      %s293 = sphi 0, %s291
      %s294 = sphi 0, %s293
      %s308 = sphi 0, %s294
      %s314 = sphi 0, %s316
      %s317 = sphi 0, %s314
      %s318 = sphi 0, %s317
      %s334 = sphi 0, %s318
    $region4: #{tpu_custom_call.1} parent=1 // loop_header_branch
      %29 = sbr.rel (%p27) target = $region8
    $region5: #{tpu_custom_call.1} parent=1 // loop_body
      %s31 = ssub.s32 %s26, 1
      %s32 = ssub.s32 %s26, 2
      %s33 = sadd.s32 %s26, 1
      %s34 = ssub.s32 %s26, %s33
      %p35 = scmp.eq.s32.totalorder %s34, 0
      %s37 = sadd.s32 %s36, 1
      %s38 = scalar_select %p35, %s36, %s37
      %p41 = pneg %p35
      %p42 = scmp.eq.s32.totalorder %s26, 1
      %p43 = por %p41, %p42
      %p44 = scmp.ne.s32.totalorder %s36, %s39
      %p45 = scmp.eq.s32.totalorder %s26, 0
      %p46 = por %p44, %p45
      %p47 = scmp.ne.s32.totalorder %s36, %s39
      %p48 = scmp.eq.s32.totalorder %s31, 1
      %p49 = por %p47, %p48
      %p50 = scmp.ne.s32.totalorder %s39, %s40
      %p51 = scmp.eq.s32.totalorder %s31, 0
      %p52 = por %p50, %p51
      %p53 = scmp.ne.s32.totalorder %s39, %s40
      %p54 = scmp.eq.s32.totalorder %s32, 1
      %p55 = por %p53, %p54
      %p57 = scmp.ne.s32.totalorder %s40, %s56
      %p58 = scmp.eq.s32.totalorder %s32, 0
      %p59 = por %p57, %p58
      %s61 = sadd.s32 %s60, 1
      %p64 = scmp.eq.s32.totalorder %s26, 1
      %p65 = scmp.ne.s32.totalorder %s60, %s62
      %p66 = scmp.eq.s32.totalorder %s26, 0
      %p67 = por %p65, %p66
      %p68 = scmp.ne.s32.totalorder %s60, %s62
      %p69 = scmp.eq.s32.totalorder %s31, 1
      %p70 = por %p68, %p69
      %p71 = scmp.ne.s32.totalorder %s62, %s63
      %p72 = scmp.eq.s32.totalorder %s31, 0
      %p73 = por %p71, %p72
      %p74 = scmp.ne.s32.totalorder %s62, %s63
      %p75 = scmp.eq.s32.totalorder %s32, 1
      %p76 = por %p74, %p75
      %p78 = scmp.ne.s32.totalorder %s63, %s77
      %p79 = scmp.eq.s32.totalorder %s32, 0
      %p80 = por %p78, %p79
      %s82 = sadd.s32 %s81, 1
      %p85 = scmp.eq.s32.totalorder %s26, 1
      %p86 = scmp.ne.s32.totalorder %s81, %s83
      %p87 = scmp.eq.s32.totalorder %s26, 0
      %p88 = por %p86, %p87
      %p89 = scmp.ne.s32.totalorder %s81, %s83
      %p90 = scmp.eq.s32.totalorder %s31, 1
      %p91 = por %p89, %p90
      %p92 = scmp.ne.s32.totalorder %s83, %s84
      %p93 = scmp.eq.s32.totalorder %s31, 0
      %p94 = por %p92, %p93
      %p95 = scmp.ne.s32.totalorder %s83, %s84
      %p96 = scmp.eq.s32.totalorder %s32, 1
      %p97 = por %p95, %p96
      %p99 = scmp.ne.s32.totalorder %s84, %s98
      %p100 = scmp.eq.s32.totalorder %s32, 0
      %p101 = por %p99, %p100
      %s103 = sadd.s32 %s102, 1
      %p106 = scmp.eq.s32.totalorder %s26, 1
      %p107 = scmp.ne.s32.totalorder %s102, %s104
      %p108 = scmp.eq.s32.totalorder %s26, 0
      %p109 = por %p107, %p108
      %p110 = scmp.ne.s32.totalorder %s102, %s104
      %p111 = scmp.eq.s32.totalorder %s31, 1
      %p112 = por %p110, %p111
      %p113 = scmp.ne.s32.totalorder %s104, %s105
      %p114 = scmp.eq.s32.totalorder %s31, 0
      %p115 = por %p113, %p114
      %p116 = scmp.ne.s32.totalorder %s104, %s105
      %p117 = scmp.eq.s32.totalorder %s32, 1
      %p118 = por %p116, %p117
      %p120 = scmp.ne.s32.totalorder %s105, %s119
      %p121 = scmp.eq.s32.totalorder %s32, 0
      %p122 = por %p120, %p121
      %s124 = sadd.s32 %s123, 1
      %p127 = scmp.eq.s32.totalorder %s26, 1
      %p128 = scmp.ne.s32.totalorder %s123, %s125
      %p129 = scmp.eq.s32.totalorder %s26, 0
      %p130 = por %p128, %p129
      %p131 = scmp.ne.s32.totalorder %s123, %s125
      %p132 = scmp.eq.s32.totalorder %s31, 1
      %p133 = por %p131, %p132
      %p134 = scmp.ne.s32.totalorder %s125, %s126
      %p135 = scmp.eq.s32.totalorder %s31, 0
      %p136 = por %p134, %p135
      %p137 = scmp.ne.s32.totalorder %s125, %s126
      %p138 = scmp.eq.s32.totalorder %s32, 1
      %p139 = por %p137, %p138
      %p141 = scmp.ne.s32.totalorder %s126, %s140
      %p142 = scmp.eq.s32.totalorder %s32, 0
      %p143 = por %p141, %p142
      %s145 = sadd.s32 %s144, 1
      %p148 = scmp.eq.s32.totalorder %s26, 1
      %p149 = scmp.ne.s32.totalorder %s144, %s146
      %p150 = scmp.eq.s32.totalorder %s26, 0
      %p151 = por %p149, %p150
      %p152 = scmp.ne.s32.totalorder %s144, %s146
      %p153 = scmp.eq.s32.totalorder %s31, 1
      %p154 = por %p152, %p153
      %p155 = scmp.ne.s32.totalorder %s146, %s147
      %p156 = scmp.eq.s32.totalorder %s31, 0
      %p157 = por %p155, %p156
      %p158 = scmp.ne.s32.totalorder %s146, %s147
      %p159 = scmp.eq.s32.totalorder %s32, 1
      %p160 = por %p158, %p159
      %p162 = scmp.ne.s32.totalorder %s147, %s161
      %p163 = scmp.eq.s32.totalorder %s32, 0
      %p164 = por %p162, %p163
      %s166 = sadd.s32 %s165, 1
      %p169 = scmp.eq.s32.totalorder %s26, 1
      %p170 = scmp.ne.s32.totalorder %s165, %s167
      %p171 = scmp.eq.s32.totalorder %s26, 0
      %p172 = por %p170, %p171
      %p173 = scmp.ne.s32.totalorder %s165, %s167
      %p174 = scmp.eq.s32.totalorder %s31, 1
      %p175 = por %p173, %p174
      %p176 = scmp.ne.s32.totalorder %s167, %s168
      %p177 = scmp.eq.s32.totalorder %s31, 0
      %p178 = por %p176, %p177
      %p179 = scmp.ne.s32.totalorder %s167, %s168
      %p180 = scmp.eq.s32.totalorder %s32, 1
      %p181 = por %p179, %p180
      %p183 = scmp.ne.s32.totalorder %s168, %s182
      %p184 = scmp.eq.s32.totalorder %s32, 0
      %p185 = por %p183, %p184
      %s187 = sadd.s32 %s186, 1
      %p190 = scmp.eq.s32.totalorder %s26, 1
      %p191 = scmp.ne.s32.totalorder %s186, %s188
      %p192 = scmp.eq.s32.totalorder %s26, 0
      %p193 = por %p191, %p192
      %p194 = scmp.ne.s32.totalorder %s186, %s188
      %p195 = scmp.eq.s32.totalorder %s31, 1
      %p196 = por %p194, %p195
      %p197 = scmp.ne.s32.totalorder %s188, %s189
      %p198 = scmp.eq.s32.totalorder %s31, 0
      %p199 = por %p197, %p198
      %p200 = scmp.ne.s32.totalorder %s188, %s189
      %p201 = scmp.eq.s32.totalorder %s32, 1
      %p202 = por %p200, %p201
      %p204 = scmp.ne.s32.totalorder %s189, %s203
      %p205 = scmp.eq.s32.totalorder %s32, 0
      %p206 = por %p204, %p205
      %s208 = sadd.s32 %s207, 1
      %p211 = scmp.eq.s32.totalorder %s26, 1
      %p212 = scmp.ne.s32.totalorder %s207, %s209
      %p213 = scmp.eq.s32.totalorder %s26, 0
      %p214 = por %p212, %p213
      %p215 = scmp.ne.s32.totalorder %s207, %s209
      %p216 = scmp.eq.s32.totalorder %s31, 1
      %p217 = por %p215, %p216
      %p218 = scmp.ne.s32.totalorder %s209, %s210
      %p219 = scmp.eq.s32.totalorder %s31, 0
      %p220 = por %p218, %p219
      %p221 = scmp.ne.s32.totalorder %s209, %s210
      %p222 = scmp.eq.s32.totalorder %s32, 1
      %p223 = por %p221, %p222
      %p225 = scmp.ne.s32.totalorder %s210, %s224
      %p226 = scmp.eq.s32.totalorder %s32, 0
      %p227 = por %p225, %p226
      %s229 = sadd.s32 %s228, 1
      %p232 = scmp.eq.s32.totalorder %s26, 1
      %p233 = scmp.ne.s32.totalorder %s228, %s230
      %p234 = scmp.eq.s32.totalorder %s26, 0
      %p235 = por %p233, %p234
      %p236 = scmp.ne.s32.totalorder %s228, %s230
      %p237 = scmp.eq.s32.totalorder %s31, 1
      %p238 = por %p236, %p237
      %p239 = scmp.ne.s32.totalorder %s230, %s231
      %p240 = scmp.eq.s32.totalorder %s31, 0
      %p241 = por %p239, %p240
      %p242 = scmp.ne.s32.totalorder %s230, %s231
      %p243 = scmp.eq.s32.totalorder %s32, 1
      %p244 = por %p242, %p243
      %p246 = scmp.ne.s32.totalorder %s231, %s245
      %p247 = scmp.eq.s32.totalorder %s32, 0
      %p248 = por %p246, %p247
      %s250 = sadd.s32 %s249, 1
      %p253 = scmp.eq.s32.totalorder %s26, 1
      %p254 = scmp.ne.s32.totalorder %s249, %s251
      %p255 = scmp.eq.s32.totalorder %s26, 0
      %p256 = por %p254, %p255
      %p257 = scmp.ne.s32.totalorder %s249, %s251
      %p258 = scmp.eq.s32.totalorder %s31, 1
      %p259 = por %p257, %p258
      %p260 = scmp.ne.s32.totalorder %s251, %s252
      %p261 = scmp.eq.s32.totalorder %s31, 0
      %p262 = por %p260, %p261
      %p263 = scmp.ne.s32.totalorder %s251, %s252
      %p264 = scmp.eq.s32.totalorder %s32, 1
      %p265 = por %p263, %p264
      %p267 = scmp.ne.s32.totalorder %s252, %s266
      %p268 = scmp.eq.s32.totalorder %s32, 0
      %p269 = por %p267, %p268
      %s271 = sadd.s32 %s270, 1
      %p274 = scmp.eq.s32.totalorder %s26, 1
      %p275 = scmp.ne.s32.totalorder %s270, %s272
      %p276 = scmp.eq.s32.totalorder %s26, 0
      %p277 = por %p275, %p276
      %p278 = scmp.ne.s32.totalorder %s270, %s272
      %p279 = scmp.eq.s32.totalorder %s31, 1
      %p280 = por %p278, %p279
      %p281 = scmp.ne.s32.totalorder %s272, %s273
      %p282 = scmp.eq.s32.totalorder %s31, 0
      %p283 = por %p281, %p282
      %p284 = scmp.ne.s32.totalorder %s272, %s273
      %p285 = scmp.eq.s32.totalorder %s32, 1
      %p286 = por %p284, %p285
      %p288 = scmp.ne.s32.totalorder %s273, %s287
      %p289 = scmp.eq.s32.totalorder %s32, 0
      %p290 = por %p288, %p289
      %s292 = sadd.s32 %s291, 1
      %p295 = scmp.eq.s32.totalorder %s26, 1
      %p296 = scmp.ne.s32.totalorder %s291, %s293
      %p297 = scmp.eq.s32.totalorder %s26, 0
      %p298 = por %p296, %p297
      %p299 = scmp.ne.s32.totalorder %s291, %s293
      %p300 = scmp.eq.s32.totalorder %s31, 1
      %p301 = por %p299, %p300
      %p302 = scmp.ne.s32.totalorder %s293, %s294
      %p303 = scmp.eq.s32.totalorder %s31, 0
      %p304 = por %p302, %p303
      %p305 = scmp.ne.s32.totalorder %s293, %s294
      %p306 = scmp.eq.s32.totalorder %s32, 1
      %p307 = por %p305, %p306
      %p309 = scmp.ne.s32.totalorder %s294, %s308
      %p310 = scmp.eq.s32.totalorder %s32, 0
      %p311 = por %p309, %p310
      %s312 = ssub.s32 %s26, %s33
      %p313 = scmp.eq.s32.totalorder %s312, 0
      %s315 = sadd.s32 %s314, 1
      %s316 = scalar_select %p313, %s314, %s315
      %p319 = pneg %p313
      %p320 = scmp.eq.s32.totalorder %s26, 1
      %p321 = por %p319, %p320
      %p322 = scmp.ne.s32.totalorder %s314, %s317
      %p323 = scmp.eq.s32.totalorder %s26, 0
      %p324 = por %p322, %p323
      %p325 = scmp.ne.s32.totalorder %s314, %s317
      %p326 = scmp.eq.s32.totalorder %s31, 1
      %p327 = por %p325, %p326
      %p328 = scmp.ne.s32.totalorder %s317, %s318
      %p329 = scmp.eq.s32.totalorder %s31, 0
      %p330 = por %p328, %p329
      %p331 = scmp.ne.s32.totalorder %s317, %s318
      %p332 = scmp.eq.s32.totalorder %s32, 1
      %p333 = por %p331, %p332
      %p335 = scmp.ne.s32.totalorder %s318, %s334
      %p336 = scmp.eq.s32.totalorder %s32, 0
      %p337 = por %p335, %p336
      %p338 = scmp.le.s32.totalorder 1, %s26
      %p339 = scmp.lt.s32.totalorder %s26, 3
      %p340 = pnand %p338, %p339
      %p341 = pneg %p340
      // Predicated region
      $region9: #{tpu_custom_call.1} parent=5 // pred_check
        _
      $region10: #{tpu_custom_call.1} parent=5 // pred_check_branch
        %343 = sbr.rel (%p340) target = $region12
      $region11: #{tpu_custom_call.1} parent=5 // pred_region
        %s344 = ssub.s32 %s26, 1
        // Predicated region
        $region13: #{tpu_custom_call.1} parent=11 // pred_check
          %p345 = pneg %p73
        $region14: #{tpu_custom_call.1} parent=11 // pred_check_branch
          %347 = sbr.rel (%p345) target = $region16
        $region15: #{tpu_custom_call.1} parent=11 // pred_region
          %s349 = ssub.s32 512, 512
          %350 = vsyncadd [#allocation4], %s349
          %s351 = sshll.u32 [#allocation3], 4
          %s352 = int_to_ptr.vmem [resolvable:$true] %s351
          %357 = dma.hbm_to_vmem [thread:$0]  %s1, 512, %s352, [#allocation4], 64, 64, 4
        $region16: #{tpu_custom_call.1} parent=11 // pred_fallthru
          _
        // Predicated region
        $region17: #{tpu_custom_call.1} parent=11 // pred_check
          %p358 = pneg %p94
        $region18: #{tpu_custom_call.1} parent=11 // pred_check_branch
          %360 = sbr.rel (%p358) target = $region20
        $region19: #{tpu_custom_call.1} parent=11 // pred_region
          %s362 = ssub.s32 16, 16
          %363 = vsyncadd [#allocation7], %s362
          %s365 = sshll.u32 [#allocation6], 4
          %s366 = int_to_ptr.vmem [resolvable:$true] %s365
          %368 = dma.hbm_to_vmem [thread:$0]  %s2, 16, %s366, [#allocation7]
        $region20: #{tpu_custom_call.1} parent=11 // pred_fallthru
          _
        // Predicated region
        $region21: #{tpu_custom_call.1} parent=11 // pred_check
          %p369 = pneg %p115
        $region22: #{tpu_custom_call.1} parent=11 // pred_check_branch
          %371 = sbr.rel (%p369) target = $region24
        $region23: #{tpu_custom_call.1} parent=11 // pred_region
          _
        $region24: #{tpu_custom_call.1} parent=11 // pred_fallthru
          _
        // Predicated region
        $region25: #{tpu_custom_call.1} parent=11 // pred_check
          %p372 = pneg %p136
        $region26: #{tpu_custom_call.1} parent=11 // pred_check_branch
          %374 = sbr.rel (%p372) target = $region28
        $region27: #{tpu_custom_call.1} parent=11 // pred_region
          %s376 = ssub.s32 256, 256
          %377 = vsyncadd [#allocation7], %s376
          %s378 = sshll.u32 [#allocation8], 4
          %s379 = int_to_ptr.vmem [resolvable:$true] %s378
          %384 = dma.hbm_to_vmem [thread:$0]  %s4, 256, %s379, [#allocation7], 64, 64, 4
        $region28: #{tpu_custom_call.1} parent=11 // pred_fallthru
          _
        // Predicated region
        $region29: #{tpu_custom_call.1} parent=11 // pred_check
          %p385 = pneg %p157
        $region30: #{tpu_custom_call.1} parent=11 // pred_check_branch
          %387 = sbr.rel (%p385) target = $region32
        $region31: #{tpu_custom_call.1} parent=11 // pred_region
          %s389 = ssub.s32 16, 16
          %390 = vsyncadd [#allocation10], %s389
          %s392 = sshll.u32 [#allocation9], 4
          %s393 = int_to_ptr.vmem [resolvable:$true] %s392
          %395 = dma.hbm_to_vmem [thread:$0]  %s5, 16, %s393, [#allocation10]
        $region32: #{tpu_custom_call.1} parent=11 // pred_fallthru
          _
        // Predicated region
        $region33: #{tpu_custom_call.1} parent=11 // pred_check
          %p396 = pneg %p178
        $region34: #{tpu_custom_call.1} parent=11 // pred_check_branch
          %398 = sbr.rel (%p396) target = $region36
        $region35: #{tpu_custom_call.1} parent=11 // pred_region
          %s400 = ssub.s32 1024, 1024
          %401 = vsyncadd [#allocation10], %s400
          %s402 = sshll.u32 [#allocation11], 4
          %s403 = int_to_ptr.vmem [resolvable:$true] %s402
          %408 = dma.hbm_to_vmem [thread:$0]  %s6, 1024, %s403, [#allocation10], 64, 64, 4
        $region36: #{tpu_custom_call.1} parent=11 // pred_fallthru
          _
        // Predicated region
        $region37: #{tpu_custom_call.1} parent=11 // pred_check
          %p409 = pneg %p199
        $region38: #{tpu_custom_call.1} parent=11 // pred_check_branch
          %411 = sbr.rel (%p409) target = $region40
        $region39: #{tpu_custom_call.1} parent=11 // pred_region
          %s413 = ssub.s32 16, 16
          %414 = vsyncadd [#allocation13], %s413
          %s416 = sshll.u32 [#allocation12], 4
          %s417 = int_to_ptr.vmem [resolvable:$true] %s416
          %419 = dma.hbm_to_vmem [thread:$0]  %s7, 16, %s417, [#allocation13]
        $region40: #{tpu_custom_call.1} parent=11 // pred_fallthru
          _
        // Predicated region
        $region41: #{tpu_custom_call.1} parent=11 // pred_check
          %p420 = pneg %p220
        $region42: #{tpu_custom_call.1} parent=11 // pred_check_branch
          %422 = sbr.rel (%p420) target = $region44
        $region43: #{tpu_custom_call.1} parent=11 // pred_region
          _
        $region44: #{tpu_custom_call.1} parent=11 // pred_fallthru
          _
        // Predicated region
        $region45: #{tpu_custom_call.1} parent=11 // pred_check
          %p423 = pneg %p241
        $region46: #{tpu_custom_call.1} parent=11 // pred_check_branch
          %425 = sbr.rel (%p423) target = $region48
        $region47: #{tpu_custom_call.1} parent=11 // pred_region
          _
        $region48: #{tpu_custom_call.1} parent=11 // pred_fallthru
          _
        // Predicated region
        $region49: #{tpu_custom_call.1} parent=11 // pred_check
          %p426 = pneg %p262
        $region50: #{tpu_custom_call.1} parent=11 // pred_check_branch
          %428 = sbr.rel (%p426) target = $region52
        $region51: #{tpu_custom_call.1} parent=11 // pred_region
          _
        $region52: #{tpu_custom_call.1} parent=11 // pred_fallthru
          _
        // Predicated region
        $region53: #{tpu_custom_call.1} parent=11 // pred_check
          %p429 = pneg %p283
        $region54: #{tpu_custom_call.1} parent=11 // pred_check_branch
          %431 = sbr.rel (%p429) target = $region56
        $region55: #{tpu_custom_call.1} parent=11 // pred_region
          %s433 = ssub.s32 1024, 1024
          %434 = vsyncadd [#allocation13], %s433
          %s435 = sshll.u32 [#allocation14], 4
          %s436 = int_to_ptr.vmem [resolvable:$true] %s435
          %441 = dma.hbm_to_vmem [thread:$0]  %s11, 1024, %s436, [#allocation13], 64, 64, 4
        $region56: #{tpu_custom_call.1} parent=11 // pred_fallthru
          _
        // Predicated region
        $region57: #{tpu_custom_call.1} parent=11 // pred_check
          %p442 = pneg %p304
        $region58: #{tpu_custom_call.1} parent=11 // pred_check_branch
          %444 = sbr.rel (%p442) target = $region60
        $region59: #{tpu_custom_call.1} parent=11 // pred_region
          _
        $region60: #{tpu_custom_call.1} parent=11 // pred_fallthru
          _
      $region12: #{tpu_custom_call.1} parent=5 // pred_fallthru
        _
      %p445 = scmp.lt.s32.totalorder %s26, 2
      // Predicated region
      $region61: #{tpu_custom_call.1} parent=5 // pred_check
        %p446 = pneg %p445
      $region62: #{tpu_custom_call.1} parent=5 // pred_check_branch
        %448 = sbr.rel (%p446) target = $region64
      $region63: #{tpu_custom_call.1} parent=5 // pred_region
        // Predicated region
        $region65: #{tpu_custom_call.1} parent=63 // pred_check
          %p449 = pneg %p46
        $region66: #{tpu_custom_call.1} parent=63 // pred_check_branch
          %451 = sbr.rel (%p449) target = $region68
        $region67: #{tpu_custom_call.1} parent=63 // pred_region
          %p452 = scmp.lt.s32.totalorder %s26, 1
          %s453 = scalar_select %p452, %s26, 1
          %s454 = smul.addr %s453, 8
          %s455 = smul.addr %s454, 4
          %s456 = scalar_lea.vmem %s0, %s455
        $region68: #{tpu_custom_call.1} parent=63 // pred_fallthru
          _
      $region64: #{tpu_custom_call.1} parent=5 // pred_fallthru
        _
      %p457 = scmp.le.s32.totalorder 1, %s26
      %p458 = scmp.lt.s32.totalorder %s26, 3
      %p459 = pnand %p457, %p458
      %p460 = pneg %p459
      // Predicated region
      $region69: #{tpu_custom_call.1} parent=5 // pred_check
        _
      $region70: #{tpu_custom_call.1} parent=5 // pred_check_branch
        %462 = sbr.rel (%p459) target = $region72
      $region71: #{tpu_custom_call.1} parent=5 // pred_region
        %s463 = ssub.s32 %s26, 1
        // Predicated region
        $region73: #{tpu_custom_call.1} parent=71 // pred_check
          %p464 = pneg %p73
        $region74: #{tpu_custom_call.1} parent=71 // pred_check_branch
          %466 = sbr.rel (%p464) target = $region76
        $region75: #{tpu_custom_call.1} parent=71 // pred_region
          %467 = dma.done [#allocation4], 512
        $region76: #{tpu_custom_call.1} parent=71 // pred_fallthru
          _
        // Predicated region
        $region77: #{tpu_custom_call.1} parent=71 // pred_check
          %p468 = pneg %p94
        $region78: #{tpu_custom_call.1} parent=71 // pred_check_branch
          %470 = sbr.rel (%p468) target = $region80
        $region79: #{tpu_custom_call.1} parent=71 // pred_region
          %471 = dma.done [#allocation7], 16
        $region80: #{tpu_custom_call.1} parent=71 // pred_fallthru
          _
        // Predicated region
        $region81: #{tpu_custom_call.1} parent=71 // pred_check
          %p472 = pneg %p136
        $region82: #{tpu_custom_call.1} parent=71 // pred_check_branch
          %474 = sbr.rel (%p472) target = $region84
        $region83: #{tpu_custom_call.1} parent=71 // pred_region
          %475 = dma.done [#allocation7], 256
        $region84: #{tpu_custom_call.1} parent=71 // pred_fallthru
          _
        // Predicated region
        $region85: #{tpu_custom_call.1} parent=71 // pred_check
          %p476 = pneg %p157
        $region86: #{tpu_custom_call.1} parent=71 // pred_check_branch
          %478 = sbr.rel (%p476) target = $region88
        $region87: #{tpu_custom_call.1} parent=71 // pred_region
          %479 = dma.done [#allocation10], 16
        $region88: #{tpu_custom_call.1} parent=71 // pred_fallthru
          _
        // Predicated region
        $region89: #{tpu_custom_call.1} parent=71 // pred_check
          %p480 = pneg %p178
        $region90: #{tpu_custom_call.1} parent=71 // pred_check_branch
          %482 = sbr.rel (%p480) target = $region92
        $region91: #{tpu_custom_call.1} parent=71 // pred_region
          %483 = dma.done [#allocation10], 1024
        $region92: #{tpu_custom_call.1} parent=71 // pred_fallthru
          _
        // Predicated region
        $region93: #{tpu_custom_call.1} parent=71 // pred_check
          %p484 = pneg %p199
        $region94: #{tpu_custom_call.1} parent=71 // pred_check_branch
          %486 = sbr.rel (%p484) target = $region96
        $region95: #{tpu_custom_call.1} parent=71 // pred_region
          %487 = dma.done [#allocation13], 16
        $region96: #{tpu_custom_call.1} parent=71 // pred_fallthru
          _
        // Predicated region
        $region97: #{tpu_custom_call.1} parent=71 // pred_check
          %p488 = pneg %p283
        $region98: #{tpu_custom_call.1} parent=71 // pred_check_branch
          %490 = sbr.rel (%p488) target = $region100
        $region99: #{tpu_custom_call.1} parent=71 // pred_region
          %491 = dma.done [#allocation13], 1024
        $region100: #{tpu_custom_call.1} parent=71 // pred_fallthru
          _
        %p492 = scmp.lt.s32.totalorder %s31, 1
        %s493 = scalar_select %p492, %s31, 1
        %s494 = smul.addr %s493, 8
        %s495 = smul.addr %s494, 4
        %s496 = scalar_lea.vmem %s0, %s495
        %p497 = pneg %p52
        %p498 = pneg %p49
        %p499 = pneg %p73
        %p500 = pneg %p70
        %p501 = pneg %p94
        %p502 = pneg %p91
        %p503 = pneg %p115
        %p504 = pneg %p112
        %p505 = pneg %p136
        %p506 = pneg %p133
        %p507 = pneg %p157
        %p508 = pneg %p154
        %p509 = pneg %p178
        %p510 = pneg %p175
        %p511 = pneg %p199
        %p512 = pneg %p196
        %p513 = pneg %p220
        %p514 = pneg %p217
        %p515 = pneg %p241
        %p516 = pneg %p238
        %p517 = pneg %p262
        %p518 = pneg %p259
        %p519 = pneg %p283
        %p520 = pneg %p280
        %p521 = pneg %p304
        %p522 = pneg %p301
        %p523 = pneg %p330
        %p524 = pneg %p327
        %s525 = sand.u32 %s317, 1
        %s526 = scalar_lea.sflag [#allocation5], %s525
        %s527 = sand.u32 %s317, 1
        %s528 = smul.addr %s527, 64
        %s529 = scalar_lea.vmem [#allocation15], %s528
        %p530 = scmp.lt.s32.totalorder %s31, 1
        %s531 = scalar_select %p530, %s31, 1
        %s532 = smul.addr %s531, 8
        %s533 = smul.addr %s532, 4
        %s534 = scalar_lea.vmem %s0, %s533
        %536 = vst [vmem:[#allocation2] sm:$0xff] 0.0
        %537 = vst [vmem:[#allocation2 + $0x8] sm:$0xff] 0.0
        %538 = vst [vmem:[#allocation2 + $0x10] sm:$0xff] 0.0
        %539 = vst [vmem:[#allocation2 + $0x18] sm:$0xff] 0.0
        %540 = vst [vmem:[#allocation2 + $0x20] sm:$0xff] 0.0
        %541 = vst [vmem:[#allocation2 + $0x28] sm:$0xff] 0.0
        %542 = vst [vmem:[#allocation2 + $0x30] sm:$0xff] 0.0
        %543 = vst [vmem:[#allocation2 + $0x38] sm:$0xff] 0.0
        %544 = vst [vmem:[#allocation2 + $0x40] sm:$0xff] 0.0
        %545 = vst [vmem:[#allocation2 + $0x48] sm:$0xff] 0.0
        %546 = vst [vmem:[#allocation2 + $0x50] sm:$0xff] 0.0
        %547 = vst [vmem:[#allocation2 + $0x58] sm:$0xff] 0.0
        %548 = vst [vmem:[#allocation2 + $0x60] sm:$0xff] 0.0
        %549 = vst [vmem:[#allocation2 + $0x68] sm:$0xff] 0.0
        %550 = vst [vmem:[#allocation2 + $0x70] sm:$0xff] 0.0
        %s551 = scalar_lea.vmem [#allocation2], 312
        %552 = vst [vmem:[%s551] sm:$0xff] 0.0
        %553 = vst [vmem:[%s551 + $0x8] sm:$0xff] 0.0
        %554 = vst [vmem:[%s551 + $0x10] sm:$0xff] 0.0
        %555 = vst [vmem:[%s551 + $0x18] sm:$0xff] 0.0
        %556 = vst [vmem:[%s551 + $0x20] sm:$0xff] 0.0
        %557 = vst [vmem:[%s551 + $0x28] sm:$0xff] 0.0
        %558 = vst [vmem:[%s551 + $0x30] sm:$0xff] 0.0
        %559 = vst [vmem:[%s551 + $0x38] sm:$0xff] 0.0
        %560 = vst [vmem:[%s551 + $0x40] sm:$0xff] 0.0
        %561 = vst [vmem:[%s551 + $0x48] sm:$0xff] 0.0
        %562 = vst [vmem:[%s551 + $0x50] sm:$0xff] 0.0
        %563 = vst [vmem:[%s551 + $0x58] sm:$0xff] 0.0
        %564 = vst [vmem:[%s551 + $0x60] sm:$0xff] 0.0
        %565 = vst [vmem:[%s551 + $0x68] sm:$0xff] 0.0
        %566 = vst [vmem:[%s551 + $0x70] sm:$0xff] 0.0
        %s567 = scalar_lea.vmem [#allocation2], 120
        %568 = vst [vmem:[%s567] sm:$0xff] 0.0
        %569 = vst [vmem:[%s567 + $0x18] sm:$0xff] 0.0
        %570 = vst [vmem:[%s567 + $0x30] sm:$0xff] 0.0
        %571 = vst [vmem:[%s567 + $0x48] sm:$0xff] 0.0
        %572 = vst [vmem:[%s567 + $0x60] sm:$0xff] 0.0
        %573 = vst [vmem:[%s567 + $0x78] sm:$0xff] 0.0
        %574 = vst [vmem:[%s567 + $0x90] sm:$0xff] 0.0
        %575 = vst [vmem:[%s567 + $0xa8] sm:$0xff] 0.0
        %576 = vst [vmem:[%s567 + $0x10] sm:$0xff] 0.0
        %577 = vst [vmem:[%s567 + $0x28] sm:$0xff] 0.0
        %578 = vst [vmem:[%s567 + $0x40] sm:$0xff] 0.0
        %579 = vst [vmem:[%s567 + $0x58] sm:$0xff] 0.0
        %580 = vst [vmem:[%s567 + $0x70] sm:$0xff] 0.0
        %581 = vst [vmem:[%s567 + $0x88] sm:$0xff] 0.0
        %582 = vst [vmem:[%s567 + $0xa0] sm:$0xff] 0.0
        %583 = vst [vmem:[%s567 + $0xb8] sm:$0xff] 0.0
        %v584 = vld [vmem:[%s534] sm:$0xf]
        %v585 = vld [vmem:[%s534 + $0x4] sm:$0xf]
        %v586 = vld [vmem:[%s534 + $0x8] sm:$0xf]
        %v587 = vld [vmem:[%s534 + $0xc] sm:$0xf]
        %v588 = vld [vmem:[%s534 + $0x10] sm:$0xf]
        %v589 = vld [vmem:[%s534 + $0x14] sm:$0xf]
        %v590 = vld [vmem:[%s534 + $0x18] sm:$0xf]
        %v591 = vld [vmem:[%s534 + $0x1c] sm:$0xf]
        %v592 = vld [vmem:[#allocation3] sm:$0xf]
        %v593 = vld [vmem:[#allocation3 + $0x4] sm:$0xf]
        %v594 = vld [vmem:[#allocation3 + $0x8] sm:$0xf]
        %v595 = vld [vmem:[#allocation3 + $0xc] sm:$0xf]
        %v596 = vld [vmem:[#allocation3 + $0x10] sm:$0xf]
        %v597 = vld [vmem:[#allocation3 + $0x14] sm:$0xf]
        %v598 = vld [vmem:[#allocation3 + $0x18] sm:$0xf]
        %v599 = vld [vmem:[#allocation3 + $0x1c] sm:$0xf]
        %v600 = vld [vmem:[#allocation6] sm:$0x1]
        %v602 = vlaneseq
        %v603 = vshrl.u32 %v602, 7
        %v604 = vsub.s32 0, %v603
        %v605 = vrot.slane %v600, %v604
        %v615 = vunpack.c.l.b16 %v584
        %v616 = vunpack.c.l.b16 %v585
        %v617 = vunpack.c.l.b16 %v586
        %v618 = vunpack.c.l.b16 %v587
        %v619 = vunpack.c.l.b16 %v588
        %v620 = vunpack.c.l.b16 %v589
        %v621 = vunpack.c.l.b16 %v590
        %v622 = vunpack.c.l.b16 %v591
        %v623 = vpack.c.b16 %v616, %v615
        %v624 = vpack.c.b16 %v618, %v617
        %v625 = vpack.c.b16 %v620, %v619
        %v626 = vpack.c.b16 %v622, %v621
        %v635 = vunpack.c.l.b16 %v592
        %v636 = vunpack.c.l.b16 %v593
        %v637 = vunpack.c.l.b16 %v594
        %v638 = vunpack.c.l.b16 %v595
        %v639 = vunpack.c.l.b16 %v596
        %v640 = vunpack.c.l.b16 %v597
        %v641 = vunpack.c.l.b16 %v598
        %v642 = vunpack.c.l.b16 %v599
        %v643 = vpack.c.b16 %v636, %v635
        %v644 = vpack.c.b16 %v638, %v637
        %v645 = vpack.c.b16 %v640, %v639
        %v646 = vpack.c.b16 %v642, %v641
        %vm651 = vcmask 523264
        %v653 = vsel %vm651, %v623, 0
        %v656 = vsel %vm651, %v624, 0
        %v659 = vsel %vm651, %v625, 0
        %v662 = vsel %vm651, %v626, 0
        %664 = vmatprep.subr.bf16.mxu0 0
        %665 = vmatpush1.bf16.msra.mxu0 0
        %666 = vmatprep.subr.bf16.mxu0 0
        %667 = vmatpush1.bf16.msra.mxu0 0
        %668 = vmatprep.subr.bf16.mxu0 0
        %669 = vmatpush1.bf16.msra.mxu0 0
        %670 = vmatprep.subr.bf16.mxu0 0
        %671 = vmatpush1.bf16.msra.mxu0 0
        %672 = vmatprep.subr.bf16.mxu0 0
        %673 = vmatpush1.bf16.msra.mxu0 %v646
        %674 = vmatprep.subr.bf16.mxu0 0
        %675 = vmatpush1.bf16.msra.mxu0 %v645
        %676 = vmatprep.subr.bf16.mxu0 0
        %677 = vmatpush1.bf16.msra.mxu0 %v644
        %678 = vmatprep.subr.bf16.mxu0 0
        %679 = vmatpush1.bf16.msra.mxu0 %v643
        %680 = vmatprep.subr.bf16.mxu0 0
        %681 = vmatpush2.bf16.msra.mxu0 0
        %682 = vmatprep.subr.bf16.mxu0 0
        %683 = vmatpush2.bf16.msra.mxu0 0
        %684 = vmatprep.subr.bf16.mxu0 0
        %685 = vmatpush2.bf16.msra.mxu0 0
        %686 = vmatprep.subr.bf16.mxu0 0
        %687 = vmatpush2.bf16.msra.mxu0 0
        %688 = vmatprep.subr.bf16.mxu0 0
        %689 = vmatpush2.bf16.msra.mxu0 0
        %690 = vmatprep.subr.bf16.mxu0 0
        %691 = vmatpush2.bf16.msra.mxu0 0
        %692 = vmatprep.subr.bf16.mxu0 0
        %693 = vmatpush2.bf16.msra.mxu0 0
        %694 = vmatprep.subr.bf16.mxu0 0
        %695 = vmatpush2.bf16.msra.mxu0 0
        %696 = vmatprep.mubr.bf16.mxu0 0
        %697 = vmatmul.mubr.bf16.gmra.mxu0 %v653
        %v698 = vpop.f32.mrf.mxu0
        %v699 = vadd.f32 %v605, %v698
        %v700 = vpop.f32.mrf.mxu0
        %v701 = vpop.f32.mrf.mxu0
        %v702 = vadd.f32 %v605, %v701
        %v703 = vpop.f32.mrf.mxu0
        %704 = vmatprep.mubr.bf16.mxu0 0
        %705 = vmatmul.mubr.bf16.gmra.mxu0 %v656
        %v706 = vpop.f32.mrf.mxu0
        %v707 = vadd.f32 %v605, %v706
        %v708 = vpop.f32.mrf.mxu0
        %v709 = vpop.f32.mrf.mxu0
        %v710 = vadd.f32 %v605, %v709
        %v711 = vpop.f32.mrf.mxu0
        %712 = vmatprep.mubr.bf16.mxu0 0
        %713 = vmatmul.mubr.bf16.gmra.mxu0 %v659
        %v714 = vpop.f32.mrf.mxu0
        %v715 = vadd.f32 %v605, %v714
        %v716 = vpop.f32.mrf.mxu0
        %v717 = vpop.f32.mrf.mxu0
        %v718 = vadd.f32 %v605, %v717
        %v719 = vpop.f32.mrf.mxu0
        %720 = vmatprep.mubr.bf16.mxu0 0
        %721 = vmatmul.mubr.bf16.gmra.mxu0 %v662
        %v722 = vpop.f32.mrf.mxu0
        %v723 = vadd.f32 %v605, %v722
        %v724 = vpop.f32.mrf.mxu0
        %v725 = vpop.f32.mrf.mxu0
        %v726 = vadd.f32 %v605, %v725
        %v727 = vpop.f32.mrf.mxu0
        %728 = vdwg.mxu0
        %v729 = vld [vmem:[%s3] sm:$0xff]
        %v730 = vld [vmem:[%s3 + $0x8] sm:$0xff]
        %v731 = vld [vmem:[%s3 + $0x10] sm:$0xff]
        %v732 = vld [vmem:[%s3 + $0x18] sm:$0x7f]
        %733 = vst [vmem:[%s567 + $0x8] sm:$0xff] %v699
        %734 = vst [vmem:[%s567 + $0x20] sm:$0xff] %v702
        %735 = vst [vmem:[%s567 + $0x38] sm:$0xff] %v707
        %736 = vst [vmem:[%s567 + $0x50] sm:$0xff] %v710
        %737 = vst [vmem:[%s567 + $0x68] sm:$0xff] %v715
        %738 = vst [vmem:[%s567 + $0x80] sm:$0xff] %v718
        %739 = vst [vmem:[%s567 + $0x98] sm:$0xff] %v723
        %740 = vst [vmem:[%s567 + $0xb0] sm:$0xff] %v726
        %v741 = vlaneseq
        %v742 = vshrl.u32 %v741, 7
        %v743 = vsub.s32 4, %v742
        %v744 = vrot.slane %v729, %v743
        %746 = vrot.lane.b32.xlu0 %v744, 20
        %v747 = vpop.permute.xlu0 %746
        %v749 = vmul.f32 %v699, %v747
        %v750 = vmul.f32 %v702, %v747
        %v751 = vmul.f32 %v707, %v747
        %v752 = vmul.f32 %v710, %v747
        %v753 = vmul.f32 %v715, %v747
        %v754 = vmul.f32 %v718, %v747
        %v755 = vmul.f32 %v723, %v747
        %v756 = vmul.f32 %v726, %v747
        %s757 = scalar_lea.vmem [#allocation2], 96
        %v758 = vld [vmem:[%s757 + $0x7] sm:$0xff]
        %v759 = vld [vmem:[%s757 + $0x1f] sm:$0xff]
        %v760 = vld [vmem:[%s757 + $0x37] sm:$0xff]
        %v761 = vld [vmem:[%s757 + $0x4f] sm:$0xff]
        %v762 = vld [vmem:[%s757 + $0x67] sm:$0xff]
        %v763 = vld [vmem:[%s757 + $0x7f] sm:$0xff]
        %v764 = vld [vmem:[%s757 + $0x97] sm:$0xff]
        %v765 = vld [vmem:[%s757 + $0xaf] sm:$0xff]
        %v766 = vlaneseq
        %v767 = vshrl.u32 %v766, 7
        %v768 = vsub.s32 0, %v767
        %v769 = vrot.slane %v729, %v768
        %771 = vrot.lane.b32.xlu0 %v769, 20
        %v772 = vpop.permute.xlu0 %771
        %v774 = vmul.f32 %v758, %v772
        %v775 = vmul.f32 %v759, %v772
        %v776 = vmul.f32 %v760, %v772
        %v777 = vmul.f32 %v761, %v772
        %v778 = vmul.f32 %v762, %v772
        %v779 = vmul.f32 %v763, %v772
        %v780 = vmul.f32 %v764, %v772
        %v781 = vmul.f32 %v765, %v772
        %v782 = vadd.f32 %v749, %v774
        %v783 = vadd.f32 %v750, %v775
        %v784 = vadd.f32 %v751, %v776
        %v785 = vadd.f32 %v752, %v777
        %v786 = vadd.f32 %v753, %v778
        %v787 = vadd.f32 %v754, %v779
        %v788 = vadd.f32 %v755, %v780
        %v789 = vadd.f32 %v756, %v781
        %v790 = vld [vmem:[%s757 + $0x8] sm:$0xff]
        %v791 = vld [vmem:[%s757 + $0x20] sm:$0xff]
        %v792 = vld [vmem:[%s757 + $0x38] sm:$0xff]
        %v793 = vld [vmem:[%s757 + $0x50] sm:$0xff]
        %v794 = vld [vmem:[%s757 + $0x68] sm:$0xff]
        %v795 = vld [vmem:[%s757 + $0x80] sm:$0xff]
        %v796 = vld [vmem:[%s757 + $0x98] sm:$0xff]
        %v797 = vld [vmem:[%s757 + $0xb0] sm:$0xff]
        %v798 = vlaneseq
        %v799 = vshrl.u32 %v798, 7
        %v800 = vsub.s32 1, %v799
        %v801 = vrot.slane %v729, %v800
        %803 = vrot.lane.b32.xlu0 %v801, 20
        %v804 = vpop.permute.xlu0 %803
        %v806 = vmul.f32 %v790, %v804
        %v807 = vmul.f32 %v791, %v804
        %v808 = vmul.f32 %v792, %v804
        %v809 = vmul.f32 %v793, %v804
        %v810 = vmul.f32 %v794, %v804
        %v811 = vmul.f32 %v795, %v804
        %v812 = vmul.f32 %v796, %v804
        %v813 = vmul.f32 %v797, %v804
        %v814 = vadd.f32 %v782, %v806
        %v815 = vadd.f32 %v783, %v807
        %v816 = vadd.f32 %v784, %v808
        %v817 = vadd.f32 %v785, %v809
        %v818 = vadd.f32 %v786, %v810
        %v819 = vadd.f32 %v787, %v811
        %v820 = vadd.f32 %v788, %v812
        %v821 = vadd.f32 %v789, %v813
        %v822 = vld [vmem:[%s757 + $0x9] sm:$0xff]
        %v823 = vld [vmem:[%s757 + $0x21] sm:$0xff]
        %v824 = vld [vmem:[%s757 + $0x39] sm:$0xff]
        %v825 = vld [vmem:[%s757 + $0x51] sm:$0xff]
        %v826 = vld [vmem:[%s757 + $0x69] sm:$0xff]
        %v827 = vld [vmem:[%s757 + $0x81] sm:$0xff]
        %v828 = vld [vmem:[%s757 + $0x99] sm:$0xff]
        %v829 = vld [vmem:[%s757 + $0xb1] sm:$0xff]
        %v830 = vlaneseq
        %v831 = vshrl.u32 %v830, 7
        %v832 = vsub.s32 2, %v831
        %v833 = vrot.slane %v729, %v832
        %835 = vrot.lane.b32.xlu0 %v833, 20
        %v836 = vpop.permute.xlu0 %835
        %v838 = vmul.f32 %v822, %v836
        %v839 = vmul.f32 %v823, %v836
        %v840 = vmul.f32 %v824, %v836
        %v841 = vmul.f32 %v825, %v836
        %v842 = vmul.f32 %v826, %v836
        %v843 = vmul.f32 %v827, %v836
        %v844 = vmul.f32 %v828, %v836
        %v845 = vmul.f32 %v829, %v836
        %v846 = vadd.f32 %v814, %v838
        %v847 = vadd.f32 %v815, %v839
        %v848 = vadd.f32 %v816, %v840
        %v849 = vadd.f32 %v817, %v841
        %v850 = vadd.f32 %v818, %v842
        %v851 = vadd.f32 %v819, %v843
        %v852 = vadd.f32 %v820, %v844
        %v853 = vadd.f32 %v821, %v845
        %v854 = vld [vmem:[%s567 + $0x7] sm:$0xff]
        %v855 = vld [vmem:[%s567 + $0x1f] sm:$0xff]
        %v856 = vld [vmem:[%s567 + $0x37] sm:$0xff]
        %v857 = vld [vmem:[%s567 + $0x4f] sm:$0xff]
        %v858 = vld [vmem:[%s567 + $0x67] sm:$0xff]
        %v859 = vld [vmem:[%s567 + $0x7f] sm:$0xff]
        %v860 = vld [vmem:[%s567 + $0x97] sm:$0xff]
        %v861 = vld [vmem:[%s567 + $0xaf] sm:$0xff]
        %v862 = vlaneseq
        %v863 = vshrl.u32 %v862, 7
        %v864 = vsub.s32 3, %v863
        %v865 = vrot.slane %v729, %v864
        %867 = vrot.lane.b32.xlu0 %v865, 20
        %v868 = vpop.permute.xlu0 %867
        %v870 = vmul.f32 %v854, %v868
        %v871 = vmul.f32 %v855, %v868
        %v872 = vmul.f32 %v856, %v868
        %v873 = vmul.f32 %v857, %v868
        %v874 = vmul.f32 %v858, %v868
        %v875 = vmul.f32 %v859, %v868
        %v876 = vmul.f32 %v860, %v868
        %v877 = vmul.f32 %v861, %v868
        %v878 = vadd.f32 %v846, %v870
        %v879 = vadd.f32 %v847, %v871
        %v880 = vadd.f32 %v848, %v872
        %v881 = vadd.f32 %v849, %v873
        %v882 = vadd.f32 %v850, %v874
        %v883 = vadd.f32 %v851, %v875
        %v884 = vadd.f32 %v852, %v876
        %v885 = vadd.f32 %v853, %v877
        %v886 = vld [vmem:[%s567 + $0x9] sm:$0xff]
        %v887 = vld [vmem:[%s567 + $0x21] sm:$0xff]
        %v888 = vld [vmem:[%s567 + $0x39] sm:$0xff]
        %v889 = vld [vmem:[%s567 + $0x51] sm:$0xff]
        %v890 = vld [vmem:[%s567 + $0x69] sm:$0xff]
        %v891 = vld [vmem:[%s567 + $0x81] sm:$0xff]
        %v892 = vld [vmem:[%s567 + $0x99] sm:$0xff]
        %v893 = vld [vmem:[%s567 + $0xb1] sm:$0xff]
        %v894 = vlaneseq
        %v895 = vshrl.u32 %v894, 7
        %v896 = vsub.s32 5, %v895
        %v897 = vrot.slane %v729, %v896
        %899 = vrot.lane.b32.xlu0 %v897, 20
        %v900 = vpop.permute.xlu0 %899
        %v902 = vmul.f32 %v886, %v900
        %v903 = vmul.f32 %v887, %v900
        %v904 = vmul.f32 %v888, %v900
        %v905 = vmul.f32 %v889, %v900
        %v906 = vmul.f32 %v890, %v900
        %v907 = vmul.f32 %v891, %v900
        %v908 = vmul.f32 %v892, %v900
        %v909 = vmul.f32 %v893, %v900
        %v910 = vadd.f32 %v878, %v902
        %v911 = vadd.f32 %v879, %v903
        %v912 = vadd.f32 %v880, %v904
        %v913 = vadd.f32 %v881, %v905
        %v914 = vadd.f32 %v882, %v906
        %v915 = vadd.f32 %v883, %v907
        %v916 = vadd.f32 %v884, %v908
        %v917 = vadd.f32 %v885, %v909
        %s918 = scalar_lea.vmem [#allocation2], 144
        %v919 = vld [vmem:[%s918 + $0x7] sm:$0xff]
        %v920 = vld [vmem:[%s918 + $0x1f] sm:$0xff]
        %v921 = vld [vmem:[%s918 + $0x37] sm:$0xff]
        %v922 = vld [vmem:[%s918 + $0x4f] sm:$0xff]
        %v923 = vld [vmem:[%s918 + $0x67] sm:$0xff]
        %v924 = vld [vmem:[%s918 + $0x7f] sm:$0xff]
        %v925 = vld [vmem:[%s918 + $0x97] sm:$0xff]
        %v926 = vld [vmem:[%s918 + $0xaf] sm:$0xff]
        %v927 = vlaneseq
        %v928 = vshrl.u32 %v927, 7
        %v929 = vsub.s32 6, %v928
        %v930 = vrot.slane %v729, %v929
        %932 = vrot.lane.b32.xlu0 %v930, 20
        %v933 = vpop.permute.xlu0 %932
        %v935 = vmul.f32 %v919, %v933
        %v936 = vmul.f32 %v920, %v933
        %v937 = vmul.f32 %v921, %v933
        %v938 = vmul.f32 %v922, %v933
        %v939 = vmul.f32 %v923, %v933
        %v940 = vmul.f32 %v924, %v933
        %v941 = vmul.f32 %v925, %v933
        %v942 = vmul.f32 %v926, %v933
        %v943 = vadd.f32 %v910, %v935
        %v944 = vadd.f32 %v911, %v936
        %v945 = vadd.f32 %v912, %v937
        %v946 = vadd.f32 %v913, %v938
        %v947 = vadd.f32 %v914, %v939
        %v948 = vadd.f32 %v915, %v940
        %v949 = vadd.f32 %v916, %v941
        %v950 = vadd.f32 %v917, %v942
        %v951 = vld [vmem:[%s918 + $0x8] sm:$0xff]
        %v952 = vld [vmem:[%s918 + $0x20] sm:$0xff]
        %v953 = vld [vmem:[%s918 + $0x38] sm:$0xff]
        %v954 = vld [vmem:[%s918 + $0x50] sm:$0xff]
        %v955 = vld [vmem:[%s918 + $0x68] sm:$0xff]
        %v956 = vld [vmem:[%s918 + $0x80] sm:$0xff]
        %v957 = vld [vmem:[%s918 + $0x98] sm:$0xff]
        %v958 = vld [vmem:[%s918 + $0xb0] sm:$0xff]
        %v959 = vlaneseq
        %v960 = vshrl.u32 %v959, 7
        %v961 = vsub.s32 7, %v960
        %v962 = vrot.slane %v729, %v961
        %964 = vrot.lane.b32.xlu0 %v962, 20
        %v965 = vpop.permute.xlu0 %964
        %v967 = vmul.f32 %v951, %v965
        %v968 = vmul.f32 %v952, %v965
        %v969 = vmul.f32 %v953, %v965
        %v970 = vmul.f32 %v954, %v965
        %v971 = vmul.f32 %v955, %v965
        %v972 = vmul.f32 %v956, %v965
        %v973 = vmul.f32 %v957, %v965
        %v974 = vmul.f32 %v958, %v965
        %v975 = vadd.f32 %v943, %v967
        %v976 = vadd.f32 %v944, %v968
        %v977 = vadd.f32 %v945, %v969
        %v978 = vadd.f32 %v946, %v970
        %v979 = vadd.f32 %v947, %v971
        %v980 = vadd.f32 %v948, %v972
        %v981 = vadd.f32 %v949, %v973
        %v982 = vadd.f32 %v950, %v974
        %v983 = vld [vmem:[%s918 + $0x9] sm:$0xff]
        %v984 = vld [vmem:[%s918 + $0x21] sm:$0xff]
        %v985 = vld [vmem:[%s918 + $0x39] sm:$0xff]
        %v986 = vld [vmem:[%s918 + $0x51] sm:$0xff]
        %v987 = vld [vmem:[%s918 + $0x69] sm:$0xff]
        %v988 = vld [vmem:[%s918 + $0x81] sm:$0xff]
        %v989 = vld [vmem:[%s918 + $0x99] sm:$0xff]
        %v990 = vld [vmem:[%s918 + $0xb1] sm:$0xff]
        %v991 = vlaneseq
        %v992 = vshrl.u32 %v991, 7
        %v993 = vsub.s32 0, %v992
        %v994 = vrot.slane %v730, %v993
        %996 = vrot.lane.b32.xlu0 %v994, 20
        %v997 = vpop.permute.xlu0 %996
        %v999 = vmul.f32 %v983, %v997
        %v1000 = vmul.f32 %v984, %v997
        %v1001 = vmul.f32 %v985, %v997
        %v1002 = vmul.f32 %v986, %v997
        %v1003 = vmul.f32 %v987, %v997
        %v1004 = vmul.f32 %v988, %v997
        %v1005 = vmul.f32 %v989, %v997
        %v1006 = vmul.f32 %v990, %v997
        %v1007 = vadd.f32 %v975, %v999
        %v1008 = vadd.f32 %v976, %v1000
        %v1009 = vadd.f32 %v977, %v1001
        %v1010 = vadd.f32 %v978, %v1002
        %v1011 = vadd.f32 %v979, %v1003
        %v1012 = vadd.f32 %v980, %v1004
        %v1013 = vadd.f32 %v981, %v1005
        %v1014 = vadd.f32 %v982, %v1006
        %v1015 = vlaneseq
        %v1016 = vshrl.u32 %v1015, 7
        %v1017 = vsub.s32 6, %v1016
        %v1018 = vrot.slane %v730, %v1017
        %1020 = vrot.lane.b32.xlu0 %v1018, 24
        %v1021 = vpop.permute.xlu0 %1020
        %v1023 = vmul.f32 %v699, %v1021
        %v1024 = vmul.f32 %v702, %v1021
        %v1025 = vmul.f32 %v707, %v1021
        %v1026 = vmul.f32 %v710, %v1021
        %v1027 = vmul.f32 %v715, %v1021
        %v1028 = vmul.f32 %v718, %v1021
        %v1029 = vmul.f32 %v723, %v1021
        %v1030 = vmul.f32 %v726, %v1021
        %v1031 = vld [vmem:[%s567 + $0x3] sm:$0xff]
        %v1032 = vld [vmem:[%s567 + $0x1b] sm:$0xff]
        %v1033 = vld [vmem:[%s567 + $0x33] sm:$0xff]
        %v1034 = vld [vmem:[%s567 + $0x4b] sm:$0xff]
        %v1035 = vld [vmem:[%s567 + $0x63] sm:$0xff]
        %v1036 = vld [vmem:[%s567 + $0x7b] sm:$0xff]
        %v1037 = vld [vmem:[%s567 + $0x93] sm:$0xff]
        %v1038 = vld [vmem:[%s567 + $0xab] sm:$0xff]
        %v1039 = vlaneseq
        %v1040 = vshrl.u32 %v1039, 7
        %v1041 = vsub.s32 1, %v1040
        %v1042 = vrot.slane %v730, %v1041
        %1044 = vrot.lane.b32.xlu0 %v1042, 24
        %v1045 = vpop.permute.xlu0 %1044
        %v1047 = vmul.f32 %v1031, %v1045
        %v1048 = vmul.f32 %v1032, %v1045
        %v1049 = vmul.f32 %v1033, %v1045
        %v1050 = vmul.f32 %v1034, %v1045
        %v1051 = vmul.f32 %v1035, %v1045
        %v1052 = vmul.f32 %v1036, %v1045
        %v1053 = vmul.f32 %v1037, %v1045
        %v1054 = vmul.f32 %v1038, %v1045
        %v1055 = vadd.f32 %v1023, %v1047
        %v1056 = vadd.f32 %v1024, %v1048
        %v1057 = vadd.f32 %v1025, %v1049
        %v1058 = vadd.f32 %v1026, %v1050
        %v1059 = vadd.f32 %v1027, %v1051
        %v1060 = vadd.f32 %v1028, %v1052
        %v1061 = vadd.f32 %v1029, %v1053
        %v1062 = vadd.f32 %v1030, %v1054
        %v1063 = vld [vmem:[%s567 + $0x4] sm:$0xff]
        %v1064 = vld [vmem:[%s567 + $0x1c] sm:$0xff]
        %v1065 = vld [vmem:[%s567 + $0x34] sm:$0xff]
        %v1066 = vld [vmem:[%s567 + $0x4c] sm:$0xff]
        %v1067 = vld [vmem:[%s567 + $0x64] sm:$0xff]
        %v1068 = vld [vmem:[%s567 + $0x7c] sm:$0xff]
        %v1069 = vld [vmem:[%s567 + $0x94] sm:$0xff]
        %v1070 = vld [vmem:[%s567 + $0xac] sm:$0xff]
        %v1071 = vlaneseq
        %v1072 = vshrl.u32 %v1071, 7
        %v1073 = vsub.s32 2, %v1072
        %v1074 = vrot.slane %v730, %v1073
        %1076 = vrot.lane.b32.xlu0 %v1074, 24
        %v1077 = vpop.permute.xlu0 %1076
        %v1079 = vmul.f32 %v1063, %v1077
        %v1080 = vmul.f32 %v1064, %v1077
        %v1081 = vmul.f32 %v1065, %v1077
        %v1082 = vmul.f32 %v1066, %v1077
        %v1083 = vmul.f32 %v1067, %v1077
        %v1084 = vmul.f32 %v1068, %v1077
        %v1085 = vmul.f32 %v1069, %v1077
        %v1086 = vmul.f32 %v1070, %v1077
        %v1087 = vadd.f32 %v1055, %v1079
        %v1088 = vadd.f32 %v1056, %v1080
        %v1089 = vadd.f32 %v1057, %v1081
        %v1090 = vadd.f32 %v1058, %v1082
        %v1091 = vadd.f32 %v1059, %v1083
        %v1092 = vadd.f32 %v1060, %v1084
        %v1093 = vadd.f32 %v1061, %v1085
        %v1094 = vadd.f32 %v1062, %v1086
        %v1095 = vld [vmem:[%s567 + $0x5] sm:$0xff]
        %v1096 = vld [vmem:[%s567 + $0x1d] sm:$0xff]
        %v1097 = vld [vmem:[%s567 + $0x35] sm:$0xff]
        %v1098 = vld [vmem:[%s567 + $0x4d] sm:$0xff]
        %v1099 = vld [vmem:[%s567 + $0x65] sm:$0xff]
        %v1100 = vld [vmem:[%s567 + $0x7d] sm:$0xff]
        %v1101 = vld [vmem:[%s567 + $0x95] sm:$0xff]
        %v1102 = vld [vmem:[%s567 + $0xad] sm:$0xff]
        %v1103 = vlaneseq
        %v1104 = vshrl.u32 %v1103, 7
        %v1105 = vsub.s32 3, %v1104
        %v1106 = vrot.slane %v730, %v1105
        %1108 = vrot.lane.b32.xlu0 %v1106, 24
        %v1109 = vpop.permute.xlu0 %1108
        %v1111 = vmul.f32 %v1095, %v1109
        %v1112 = vmul.f32 %v1096, %v1109
        %v1113 = vmul.f32 %v1097, %v1109
        %v1114 = vmul.f32 %v1098, %v1109
        %v1115 = vmul.f32 %v1099, %v1109
        %v1116 = vmul.f32 %v1100, %v1109
        %v1117 = vmul.f32 %v1101, %v1109
        %v1118 = vmul.f32 %v1102, %v1109
        %v1119 = vadd.f32 %v1087, %v1111
        %v1120 = vadd.f32 %v1088, %v1112
        %v1121 = vadd.f32 %v1089, %v1113
        %v1122 = vadd.f32 %v1090, %v1114
        %v1123 = vadd.f32 %v1091, %v1115
        %v1124 = vadd.f32 %v1092, %v1116
        %v1125 = vadd.f32 %v1093, %v1117
        %v1126 = vadd.f32 %v1094, %v1118
        %v1127 = vld [vmem:[%s567 + $0x6] sm:$0xff]
        %v1128 = vld [vmem:[%s567 + $0x1e] sm:$0xff]
        %v1129 = vld [vmem:[%s567 + $0x36] sm:$0xff]
        %v1130 = vld [vmem:[%s567 + $0x4e] sm:$0xff]
        %v1131 = vld [vmem:[%s567 + $0x66] sm:$0xff]
        %v1132 = vld [vmem:[%s567 + $0x7e] sm:$0xff]
        %v1133 = vld [vmem:[%s567 + $0x96] sm:$0xff]
        %v1134 = vld [vmem:[%s567 + $0xae] sm:$0xff]
        %v1135 = vlaneseq
        %v1136 = vshrl.u32 %v1135, 7
        %v1137 = vsub.s32 4, %v1136
        %v1138 = vrot.slane %v730, %v1137
        %1140 = vrot.lane.b32.xlu0 %v1138, 24
        %v1141 = vpop.permute.xlu0 %1140
        %v1143 = vmul.f32 %v1127, %v1141
        %v1144 = vmul.f32 %v1128, %v1141
        %v1145 = vmul.f32 %v1129, %v1141
        %v1146 = vmul.f32 %v1130, %v1141
        %v1147 = vmul.f32 %v1131, %v1141
        %v1148 = vmul.f32 %v1132, %v1141
        %v1149 = vmul.f32 %v1133, %v1141
        %v1150 = vmul.f32 %v1134, %v1141
        %v1151 = vadd.f32 %v1119, %v1143
        %v1152 = vadd.f32 %v1120, %v1144
        %v1153 = vadd.f32 %v1121, %v1145
        %v1154 = vadd.f32 %v1122, %v1146
        %v1155 = vadd.f32 %v1123, %v1147
        %v1156 = vadd.f32 %v1124, %v1148
        %v1157 = vadd.f32 %v1125, %v1149
        %v1158 = vadd.f32 %v1126, %v1150
        %v1159 = vlaneseq
        %v1160 = vshrl.u32 %v1159, 7
        %v1161 = vsub.s32 5, %v1160
        %v1162 = vrot.slane %v730, %v1161
        %1164 = vrot.lane.b32.xlu0 %v1162, 24
        %v1165 = vpop.permute.xlu0 %1164
        %v1167 = vmul.f32 %v854, %v1165
        %v1168 = vmul.f32 %v855, %v1165
        %v1169 = vmul.f32 %v856, %v1165
        %v1170 = vmul.f32 %v857, %v1165
        %v1171 = vmul.f32 %v858, %v1165
        %v1172 = vmul.f32 %v859, %v1165
        %v1173 = vmul.f32 %v860, %v1165
        %v1174 = vmul.f32 %v861, %v1165
        %v1175 = vadd.f32 %v1151, %v1167
        %v1176 = vadd.f32 %v1152, %v1168
        %v1177 = vadd.f32 %v1153, %v1169
        %v1178 = vadd.f32 %v1154, %v1170
        %v1179 = vadd.f32 %v1155, %v1171
        %v1180 = vadd.f32 %v1156, %v1172
        %v1181 = vadd.f32 %v1157, %v1173
        %v1182 = vadd.f32 %v1158, %v1174
        %v1183 = vlaneseq
        %v1184 = vshrl.u32 %v1183, 7
        %v1185 = vsub.s32 7, %v1184
        %v1186 = vrot.slane %v730, %v1185
        %1188 = vrot.lane.b32.xlu0 %v1186, 24
        %v1189 = vpop.permute.xlu0 %1188
        %v1191 = vmul.f32 %v886, %v1189
        %v1192 = vmul.f32 %v887, %v1189
        %v1193 = vmul.f32 %v888, %v1189
        %v1194 = vmul.f32 %v889, %v1189
        %v1195 = vmul.f32 %v890, %v1189
        %v1196 = vmul.f32 %v891, %v1189
        %v1197 = vmul.f32 %v892, %v1189
        %v1198 = vmul.f32 %v893, %v1189
        %v1199 = vadd.f32 %v1175, %v1191
        %v1200 = vadd.f32 %v1176, %v1192
        %v1201 = vadd.f32 %v1177, %v1193
        %v1202 = vadd.f32 %v1178, %v1194
        %v1203 = vadd.f32 %v1179, %v1195
        %v1204 = vadd.f32 %v1180, %v1196
        %v1205 = vadd.f32 %v1181, %v1197
        %v1206 = vadd.f32 %v1182, %v1198
        %v1207 = vld [vmem:[%s567 + $0xa] sm:$0xff]
        %v1208 = vld [vmem:[%s567 + $0x22] sm:$0xff]
        %v1209 = vld [vmem:[%s567 + $0x3a] sm:$0xff]
        %v1210 = vld [vmem:[%s567 + $0x52] sm:$0xff]
        %v1211 = vld [vmem:[%s567 + $0x6a] sm:$0xff]
        %v1212 = vld [vmem:[%s567 + $0x82] sm:$0xff]
        %v1213 = vld [vmem:[%s567 + $0x9a] sm:$0xff]
        %v1214 = vld [vmem:[%s567 + $0xb2] sm:$0xff]
        %v1215 = vlaneseq
        %v1216 = vshrl.u32 %v1215, 7
        %v1217 = vsub.s32 0, %v1216
        %v1218 = vrot.slane %v731, %v1217
        %1220 = vrot.lane.b32.xlu0 %v1218, 24
        %v1221 = vpop.permute.xlu0 %1220
        %v1223 = vmul.f32 %v1207, %v1221
        %v1224 = vmul.f32 %v1208, %v1221
        %v1225 = vmul.f32 %v1209, %v1221
        %v1226 = vmul.f32 %v1210, %v1221
        %v1227 = vmul.f32 %v1211, %v1221
        %v1228 = vmul.f32 %v1212, %v1221
        %v1229 = vmul.f32 %v1213, %v1221
        %v1230 = vmul.f32 %v1214, %v1221
        %v1231 = vadd.f32 %v1199, %v1223
        %v1232 = vadd.f32 %v1200, %v1224
        %v1233 = vadd.f32 %v1201, %v1225
        %v1234 = vadd.f32 %v1202, %v1226
        %v1235 = vadd.f32 %v1203, %v1227
        %v1236 = vadd.f32 %v1204, %v1228
        %v1237 = vadd.f32 %v1205, %v1229
        %v1238 = vadd.f32 %v1206, %v1230
        %v1239 = vld [vmem:[%s567 + $0xb] sm:$0xff]
        %v1240 = vld [vmem:[%s567 + $0x23] sm:$0xff]
        %v1241 = vld [vmem:[%s567 + $0x3b] sm:$0xff]
        %v1242 = vld [vmem:[%s567 + $0x53] sm:$0xff]
        %v1243 = vld [vmem:[%s567 + $0x6b] sm:$0xff]
        %v1244 = vld [vmem:[%s567 + $0x83] sm:$0xff]
        %v1245 = vld [vmem:[%s567 + $0x9b] sm:$0xff]
        %v1246 = vld [vmem:[%s567 + $0xb3] sm:$0xff]
        %v1247 = vlaneseq
        %v1248 = vshrl.u32 %v1247, 7
        %v1249 = vsub.s32 1, %v1248
        %v1250 = vrot.slane %v731, %v1249
        %1252 = vrot.lane.b32.xlu0 %v1250, 24
        %v1253 = vpop.permute.xlu0 %1252
        %v1255 = vmul.f32 %v1239, %v1253
        %v1256 = vmul.f32 %v1240, %v1253
        %v1257 = vmul.f32 %v1241, %v1253
        %v1258 = vmul.f32 %v1242, %v1253
        %v1259 = vmul.f32 %v1243, %v1253
        %v1260 = vmul.f32 %v1244, %v1253
        %v1261 = vmul.f32 %v1245, %v1253
        %v1262 = vmul.f32 %v1246, %v1253
        %v1263 = vadd.f32 %v1231, %v1255
        %v1264 = vadd.f32 %v1232, %v1256
        %v1265 = vadd.f32 %v1233, %v1257
        %v1266 = vadd.f32 %v1234, %v1258
        %v1267 = vadd.f32 %v1235, %v1259
        %v1268 = vadd.f32 %v1236, %v1260
        %v1269 = vadd.f32 %v1237, %v1261
        %v1270 = vadd.f32 %v1238, %v1262
        %v1271 = vld [vmem:[%s567 + $0xc] sm:$0xff]
        %v1272 = vld [vmem:[%s567 + $0x24] sm:$0xff]
        %v1273 = vld [vmem:[%s567 + $0x3c] sm:$0xff]
        %v1274 = vld [vmem:[%s567 + $0x54] sm:$0xff]
        %v1275 = vld [vmem:[%s567 + $0x6c] sm:$0xff]
        %v1276 = vld [vmem:[%s567 + $0x84] sm:$0xff]
        %v1277 = vld [vmem:[%s567 + $0x9c] sm:$0xff]
        %v1278 = vld [vmem:[%s567 + $0xb4] sm:$0xff]
        %v1279 = vlaneseq
        %v1280 = vshrl.u32 %v1279, 7
        %v1281 = vsub.s32 2, %v1280
        %v1282 = vrot.slane %v731, %v1281
        %1284 = vrot.lane.b32.xlu0 %v1282, 24
        %v1285 = vpop.permute.xlu0 %1284
        %v1287 = vmul.f32 %v1271, %v1285
        %v1288 = vmul.f32 %v1272, %v1285
        %v1289 = vmul.f32 %v1273, %v1285
        %v1290 = vmul.f32 %v1274, %v1285
        %v1291 = vmul.f32 %v1275, %v1285
        %v1292 = vmul.f32 %v1276, %v1285
        %v1293 = vmul.f32 %v1277, %v1285
        %v1294 = vmul.f32 %v1278, %v1285
        %v1295 = vadd.f32 %v1263, %v1287
        %v1296 = vadd.f32 %v1264, %v1288
        %v1297 = vadd.f32 %v1265, %v1289
        %v1298 = vadd.f32 %v1266, %v1290
        %v1299 = vadd.f32 %v1267, %v1291
        %v1300 = vadd.f32 %v1268, %v1292
        %v1301 = vadd.f32 %v1269, %v1293
        %v1302 = vadd.f32 %v1270, %v1294
        %v1303 = vld [vmem:[%s567 + $0xd] sm:$0xff]
        %v1304 = vld [vmem:[%s567 + $0x25] sm:$0xff]
        %v1305 = vld [vmem:[%s567 + $0x3d] sm:$0xff]
        %v1306 = vld [vmem:[%s567 + $0x55] sm:$0xff]
        %v1307 = vld [vmem:[%s567 + $0x6d] sm:$0xff]
        %v1308 = vld [vmem:[%s567 + $0x85] sm:$0xff]
        %v1309 = vld [vmem:[%s567 + $0x9d] sm:$0xff]
        %v1310 = vld [vmem:[%s567 + $0xb5] sm:$0xff]
        %v1311 = vlaneseq
        %v1312 = vshrl.u32 %v1311, 7
        %v1313 = vsub.s32 3, %v1312
        %v1314 = vrot.slane %v731, %v1313
        %1316 = vrot.lane.b32.xlu0 %v1314, 24
        %v1317 = vpop.permute.xlu0 %1316
        %v1319 = vmul.f32 %v1303, %v1317
        %v1320 = vmul.f32 %v1304, %v1317
        %v1321 = vmul.f32 %v1305, %v1317
        %v1322 = vmul.f32 %v1306, %v1317
        %v1323 = vmul.f32 %v1307, %v1317
        %v1324 = vmul.f32 %v1308, %v1317
        %v1325 = vmul.f32 %v1309, %v1317
        %v1326 = vmul.f32 %v1310, %v1317
        %v1327 = vadd.f32 %v1295, %v1319
        %v1328 = vadd.f32 %v1296, %v1320
        %v1329 = vadd.f32 %v1297, %v1321
        %v1330 = vadd.f32 %v1298, %v1322
        %v1331 = vadd.f32 %v1299, %v1323
        %v1332 = vadd.f32 %v1300, %v1324
        %v1333 = vadd.f32 %v1301, %v1325
        %v1334 = vadd.f32 %v1302, %v1326
        %v1335 = vlaneseq
        %v1336 = vshrl.u32 %v1335, 7
        %v1337 = vsub.s32 1, %v1336
        %v1338 = vrot.slane %v732, %v1337
        %1340 = vrot.lane.b32.xlu0 %v1338, 28
        %v1341 = vpop.permute.xlu0 %1340
        %v1343 = vmul.f32 %v699, %v1341
        %v1344 = vmul.f32 %v702, %v1341
        %v1345 = vmul.f32 %v707, %v1341
        %v1346 = vmul.f32 %v710, %v1341
        %v1347 = vmul.f32 %v715, %v1341
        %v1348 = vmul.f32 %v718, %v1341
        %v1349 = vmul.f32 %v723, %v1341
        %v1350 = vmul.f32 %v726, %v1341
        %v1351 = vld [vmem:[#allocation2 + $0x8] sm:$0xff]
        %v1352 = vld [vmem:[#allocation2 + $0x20] sm:$0xff]
        %v1353 = vld [vmem:[#allocation2 + $0x38] sm:$0xff]
        %v1354 = vld [vmem:[#allocation2 + $0x50] sm:$0xff]
        %v1355 = vld [vmem:[#allocation2 + $0x68] sm:$0xff]
        %v1356 = vld [vmem:[#allocation2 + $0x80] sm:$0xff]
        %v1357 = vld [vmem:[#allocation2 + $0x98] sm:$0xff]
        %v1358 = vld [vmem:[#allocation2 + $0xb0] sm:$0xff]
        %v1359 = vlaneseq
        %v1360 = vshrl.u32 %v1359, 7
        %v1361 = vsub.s32 4, %v1360
        %v1362 = vrot.slane %v731, %v1361
        %1364 = vrot.lane.b32.xlu0 %v1362, 28
        %v1365 = vpop.permute.xlu0 %1364
        %v1367 = vmul.f32 %v1351, %v1365
        %v1368 = vmul.f32 %v1352, %v1365
        %v1369 = vmul.f32 %v1353, %v1365
        %v1370 = vmul.f32 %v1354, %v1365
        %v1371 = vmul.f32 %v1355, %v1365
        %v1372 = vmul.f32 %v1356, %v1365
        %v1373 = vmul.f32 %v1357, %v1365
        %v1374 = vmul.f32 %v1358, %v1365
        %v1375 = vadd.f32 %v1343, %v1367
        %v1376 = vadd.f32 %v1344, %v1368
        %v1377 = vadd.f32 %v1345, %v1369
        %v1378 = vadd.f32 %v1346, %v1370
        %v1379 = vadd.f32 %v1347, %v1371
        %v1380 = vadd.f32 %v1348, %v1372
        %v1381 = vadd.f32 %v1349, %v1373
        %v1382 = vadd.f32 %v1350, %v1374
        %s1383 = scalar_lea.vmem [#allocation2], 24
        %v1384 = vld [vmem:[%s1383 + $0x8] sm:$0xff]
        %v1385 = vld [vmem:[%s1383 + $0x20] sm:$0xff]
        %v1386 = vld [vmem:[%s1383 + $0x38] sm:$0xff]
        %v1387 = vld [vmem:[%s1383 + $0x50] sm:$0xff]
        %v1388 = vld [vmem:[%s1383 + $0x68] sm:$0xff]
        %v1389 = vld [vmem:[%s1383 + $0x80] sm:$0xff]
        %v1390 = vld [vmem:[%s1383 + $0x98] sm:$0xff]
        %v1391 = vld [vmem:[%s1383 + $0xb0] sm:$0xff]
        %v1392 = vlaneseq
        %v1393 = vshrl.u32 %v1392, 7
        %v1394 = vsub.s32 5, %v1393
        %v1395 = vrot.slane %v731, %v1394
        %1397 = vrot.lane.b32.xlu0 %v1395, 28
        %v1398 = vpop.permute.xlu0 %1397
        %v1400 = vmul.f32 %v1384, %v1398
        %v1401 = vmul.f32 %v1385, %v1398
        %v1402 = vmul.f32 %v1386, %v1398
        %v1403 = vmul.f32 %v1387, %v1398
        %v1404 = vmul.f32 %v1388, %v1398
        %v1405 = vmul.f32 %v1389, %v1398
        %v1406 = vmul.f32 %v1390, %v1398
        %v1407 = vmul.f32 %v1391, %v1398
        %v1408 = vadd.f32 %v1375, %v1400
        %v1409 = vadd.f32 %v1376, %v1401
        %v1410 = vadd.f32 %v1377, %v1402
        %v1411 = vadd.f32 %v1378, %v1403
        %v1412 = vadd.f32 %v1379, %v1404
        %v1413 = vadd.f32 %v1380, %v1405
        %v1414 = vadd.f32 %v1381, %v1406
        %v1415 = vadd.f32 %v1382, %v1407
        %s1416 = scalar_lea.vmem [#allocation2], 48
        %v1417 = vld [vmem:[%s1416 + $0x8] sm:$0xff]
        %v1418 = vld [vmem:[%s1416 + $0x20] sm:$0xff]
        %v1419 = vld [vmem:[%s1416 + $0x38] sm:$0xff]
        %v1420 = vld [vmem:[%s1416 + $0x50] sm:$0xff]
        %v1421 = vld [vmem:[%s1416 + $0x68] sm:$0xff]
        %v1422 = vld [vmem:[%s1416 + $0x80] sm:$0xff]
        %v1423 = vld [vmem:[%s1416 + $0x98] sm:$0xff]
        %v1424 = vld [vmem:[%s1416 + $0xb0] sm:$0xff]
        %v1425 = vlaneseq
        %v1426 = vshrl.u32 %v1425, 7
        %v1427 = vsub.s32 6, %v1426
        %v1428 = vrot.slane %v731, %v1427
        %1430 = vrot.lane.b32.xlu0 %v1428, 28
        %v1431 = vpop.permute.xlu0 %1430
        %v1433 = vmul.f32 %v1417, %v1431
        %v1434 = vmul.f32 %v1418, %v1431
        %v1435 = vmul.f32 %v1419, %v1431
        %v1436 = vmul.f32 %v1420, %v1431
        %v1437 = vmul.f32 %v1421, %v1431
        %v1438 = vmul.f32 %v1422, %v1431
        %v1439 = vmul.f32 %v1423, %v1431
        %v1440 = vmul.f32 %v1424, %v1431
        %v1441 = vadd.f32 %v1408, %v1433
        %v1442 = vadd.f32 %v1409, %v1434
        %v1443 = vadd.f32 %v1410, %v1435
        %v1444 = vadd.f32 %v1411, %v1436
        %v1445 = vadd.f32 %v1412, %v1437
        %v1446 = vadd.f32 %v1413, %v1438
        %v1447 = vadd.f32 %v1414, %v1439
        %v1448 = vadd.f32 %v1415, %v1440
        %s1449 = scalar_lea.vmem [#allocation2], 72
        %v1450 = vld [vmem:[%s1449 + $0x8] sm:$0xff]
        %v1451 = vld [vmem:[%s1449 + $0x20] sm:$0xff]
        %v1452 = vld [vmem:[%s1449 + $0x38] sm:$0xff]
        %v1453 = vld [vmem:[%s1449 + $0x50] sm:$0xff]
        %v1454 = vld [vmem:[%s1449 + $0x68] sm:$0xff]
        %v1455 = vld [vmem:[%s1449 + $0x80] sm:$0xff]
        %v1456 = vld [vmem:[%s1449 + $0x98] sm:$0xff]
        %v1457 = vld [vmem:[%s1449 + $0xb0] sm:$0xff]
        %v1458 = vlaneseq
        %v1459 = vshrl.u32 %v1458, 7
        %v1460 = vsub.s32 7, %v1459
        %v1461 = vrot.slane %v731, %v1460
        %1463 = vrot.lane.b32.xlu0 %v1461, 28
        %v1464 = vpop.permute.xlu0 %1463
        %v1466 = vmul.f32 %v1450, %v1464
        %v1467 = vmul.f32 %v1451, %v1464
        %v1468 = vmul.f32 %v1452, %v1464
        %v1469 = vmul.f32 %v1453, %v1464
        %v1470 = vmul.f32 %v1454, %v1464
        %v1471 = vmul.f32 %v1455, %v1464
        %v1472 = vmul.f32 %v1456, %v1464
        %v1473 = vmul.f32 %v1457, %v1464
        %v1474 = vadd.f32 %v1441, %v1466
        %v1475 = vadd.f32 %v1442, %v1467
        %v1476 = vadd.f32 %v1443, %v1468
        %v1477 = vadd.f32 %v1444, %v1469
        %v1478 = vadd.f32 %v1445, %v1470
        %v1479 = vadd.f32 %v1446, %v1471
        %v1480 = vadd.f32 %v1447, %v1472
        %v1481 = vadd.f32 %v1448, %v1473
        %v1482 = vlaneseq
        %v1483 = vshrl.u32 %v1482, 7
        %v1484 = vsub.s32 0, %v1483
        %v1485 = vrot.slane %v732, %v1484
        %1487 = vrot.lane.b32.xlu0 %v1485, 28
        %v1488 = vpop.permute.xlu0 %1487
        %v1490 = vmul.f32 %v790, %v1488
        %v1491 = vmul.f32 %v791, %v1488
        %v1492 = vmul.f32 %v792, %v1488
        %v1493 = vmul.f32 %v793, %v1488
        %v1494 = vmul.f32 %v794, %v1488
        %v1495 = vmul.f32 %v795, %v1488
        %v1496 = vmul.f32 %v796, %v1488
        %v1497 = vmul.f32 %v797, %v1488
        %v1498 = vadd.f32 %v1474, %v1490
        %v1499 = vadd.f32 %v1475, %v1491
        %v1500 = vadd.f32 %v1476, %v1492
        %v1501 = vadd.f32 %v1477, %v1493
        %v1502 = vadd.f32 %v1478, %v1494
        %v1503 = vadd.f32 %v1479, %v1495
        %v1504 = vadd.f32 %v1480, %v1496
        %v1505 = vadd.f32 %v1481, %v1497
        %v1506 = vlaneseq
        %v1507 = vshrl.u32 %v1506, 7
        %v1508 = vsub.s32 2, %v1507
        %v1509 = vrot.slane %v732, %v1508
        %1511 = vrot.lane.b32.xlu0 %v1509, 28
        %v1512 = vpop.permute.xlu0 %1511
        %v1514 = vmul.f32 %v951, %v1512
        %v1515 = vmul.f32 %v952, %v1512
        %v1516 = vmul.f32 %v953, %v1512
        %v1517 = vmul.f32 %v954, %v1512
        %v1518 = vmul.f32 %v955, %v1512
        %v1519 = vmul.f32 %v956, %v1512
        %v1520 = vmul.f32 %v957, %v1512
        %v1521 = vmul.f32 %v958, %v1512
        %v1522 = vadd.f32 %v1498, %v1514
        %v1523 = vadd.f32 %v1499, %v1515
        %v1524 = vadd.f32 %v1500, %v1516
        %v1525 = vadd.f32 %v1501, %v1517
        %v1526 = vadd.f32 %v1502, %v1518
        %v1527 = vadd.f32 %v1503, %v1519
        %v1528 = vadd.f32 %v1504, %v1520
        %v1529 = vadd.f32 %v1505, %v1521
        %s1530 = scalar_lea.vmem [#allocation2], 168
        %v1531 = vld [vmem:[%s1530 + $0x8] sm:$0xff]
        %v1532 = vld [vmem:[%s1530 + $0x20] sm:$0xff]
        %v1533 = vld [vmem:[%s1530 + $0x38] sm:$0xff]
        %v1534 = vld [vmem:[%s1530 + $0x50] sm:$0xff]
        %v1535 = vld [vmem:[%s1530 + $0x68] sm:$0xff]
        %v1536 = vld [vmem:[%s1530 + $0x80] sm:$0xff]
        %v1537 = vld [vmem:[%s1530 + $0x98] sm:$0xff]
        %v1538 = vld [vmem:[%s1530 + $0xb0] sm:$0xff]
        %v1539 = vlaneseq
        %v1540 = vshrl.u32 %v1539, 7
        %v1541 = vsub.s32 3, %v1540
        %v1542 = vrot.slane %v732, %v1541
        %1544 = vrot.lane.b32.xlu0 %v1542, 28
        %v1545 = vpop.permute.xlu0 %1544
        %v1547 = vmul.f32 %v1531, %v1545
        %v1548 = vmul.f32 %v1532, %v1545
        %v1549 = vmul.f32 %v1533, %v1545
        %v1550 = vmul.f32 %v1534, %v1545
        %v1551 = vmul.f32 %v1535, %v1545
        %v1552 = vmul.f32 %v1536, %v1545
        %v1553 = vmul.f32 %v1537, %v1545
        %v1554 = vmul.f32 %v1538, %v1545
        %v1555 = vadd.f32 %v1522, %v1547
        %v1556 = vadd.f32 %v1523, %v1548
        %v1557 = vadd.f32 %v1524, %v1549
        %v1558 = vadd.f32 %v1525, %v1550
        %v1559 = vadd.f32 %v1526, %v1551
        %v1560 = vadd.f32 %v1527, %v1552
        %v1561 = vadd.f32 %v1528, %v1553
        %v1562 = vadd.f32 %v1529, %v1554
        %s1563 = scalar_lea.vmem [#allocation2], 192
        %v1564 = vld [vmem:[%s1563 + $0x8] sm:$0xff]
        %v1565 = vld [vmem:[%s1563 + $0x20] sm:$0xff]
        %v1566 = vld [vmem:[%s1563 + $0x38] sm:$0xff]
        %v1567 = vld [vmem:[%s1563 + $0x50] sm:$0xff]
        %v1568 = vld [vmem:[%s1563 + $0x68] sm:$0xff]
        %v1569 = vld [vmem:[%s1563 + $0x80] sm:$0xff]
        %v1570 = vld [vmem:[%s1563 + $0x98] sm:$0xff]
        %v1571 = vld [vmem:[%s1563 + $0xb0] sm:$0xff]
        %v1572 = vlaneseq
        %v1573 = vshrl.u32 %v1572, 7
        %v1574 = vsub.s32 4, %v1573
        %v1575 = vrot.slane %v732, %v1574
        %1577 = vrot.lane.b32.xlu0 %v1575, 28
        %v1578 = vpop.permute.xlu0 %1577
        %v1580 = vmul.f32 %v1564, %v1578
        %v1581 = vmul.f32 %v1565, %v1578
        %v1582 = vmul.f32 %v1566, %v1578
        %v1583 = vmul.f32 %v1567, %v1578
        %v1584 = vmul.f32 %v1568, %v1578
        %v1585 = vmul.f32 %v1569, %v1578
        %v1586 = vmul.f32 %v1570, %v1578
        %v1587 = vmul.f32 %v1571, %v1578
        %v1588 = vadd.f32 %v1555, %v1580
        %v1589 = vadd.f32 %v1556, %v1581
        %v1590 = vadd.f32 %v1557, %v1582
        %v1591 = vadd.f32 %v1558, %v1583
        %v1592 = vadd.f32 %v1559, %v1584
        %v1593 = vadd.f32 %v1560, %v1585
        %v1594 = vadd.f32 %v1561, %v1586
        %v1595 = vadd.f32 %v1562, %v1587
        %s1596 = scalar_lea.vmem [#allocation2], 216
        %v1597 = vld [vmem:[%s1596 + $0x8] sm:$0xff]
        %v1598 = vld [vmem:[%s1596 + $0x20] sm:$0xff]
        %v1599 = vld [vmem:[%s1596 + $0x38] sm:$0xff]
        %v1600 = vld [vmem:[%s1596 + $0x50] sm:$0xff]
        %v1601 = vld [vmem:[%s1596 + $0x68] sm:$0xff]
        %v1602 = vld [vmem:[%s1596 + $0x80] sm:$0xff]
        %v1603 = vld [vmem:[%s1596 + $0x98] sm:$0xff]
        %v1604 = vld [vmem:[%s1596 + $0xb0] sm:$0xff]
        %v1605 = vlaneseq
        %v1606 = vshrl.u32 %v1605, 7
        %v1607 = vsub.s32 5, %v1606
        %v1608 = vrot.slane %v732, %v1607
        %1610 = vrot.lane.b32.xlu0 %v1608, 28
        %v1611 = vpop.permute.xlu0 %1610
        %v1613 = vmul.f32 %v1597, %v1611
        %v1614 = vmul.f32 %v1598, %v1611
        %v1615 = vmul.f32 %v1599, %v1611
        %v1616 = vmul.f32 %v1600, %v1611
        %v1617 = vmul.f32 %v1601, %v1611
        %v1618 = vmul.f32 %v1602, %v1611
        %v1619 = vmul.f32 %v1603, %v1611
        %v1620 = vmul.f32 %v1604, %v1611
        %v1621 = vadd.f32 %v1588, %v1613
        %v1622 = vadd.f32 %v1589, %v1614
        %v1623 = vadd.f32 %v1590, %v1615
        %v1624 = vadd.f32 %v1591, %v1616
        %v1625 = vadd.f32 %v1592, %v1617
        %v1626 = vadd.f32 %v1593, %v1618
        %v1627 = vadd.f32 %v1594, %v1619
        %v1628 = vadd.f32 %v1595, %v1620
        %s1629 = scalar_lea.vmem [#allocation2], 240
        %v1630 = vld [vmem:[%s1629 + $0x8] sm:$0xff]
        %v1631 = vld [vmem:[%s1629 + $0x20] sm:$0xff]
        %v1632 = vld [vmem:[%s1629 + $0x38] sm:$0xff]
        %v1633 = vld [vmem:[%s1629 + $0x50] sm:$0xff]
        %v1634 = vld [vmem:[%s1629 + $0x68] sm:$0xff]
        %v1635 = vld [vmem:[%s1629 + $0x80] sm:$0xff]
        %v1636 = vld [vmem:[%s1629 + $0x98] sm:$0xff]
        %v1637 = vld [vmem:[%s1629 + $0xb0] sm:$0xff]
        %v1638 = vlaneseq
        %v1639 = vshrl.u32 %v1638, 7
        %v1640 = vsub.s32 6, %v1639
        %v1641 = vrot.slane %v732, %v1640
        %1643 = vrot.lane.b32.xlu0 %v1641, 28
        %v1644 = vpop.permute.xlu0 %1643
        %v1646 = vmul.f32 %v1630, %v1644
        %v1647 = vmul.f32 %v1631, %v1644
        %v1648 = vmul.f32 %v1632, %v1644
        %v1649 = vmul.f32 %v1633, %v1644
        %v1650 = vmul.f32 %v1634, %v1644
        %v1651 = vmul.f32 %v1635, %v1644
        %v1652 = vmul.f32 %v1636, %v1644
        %v1653 = vmul.f32 %v1637, %v1644
        %v1654 = vadd.f32 %v1621, %v1646
        %v1655 = vadd.f32 %v1622, %v1647
        %v1656 = vadd.f32 %v1623, %v1648
        %v1657 = vadd.f32 %v1624, %v1649
        %v1658 = vadd.f32 %v1625, %v1650
        %v1659 = vadd.f32 %v1626, %v1651
        %v1660 = vadd.f32 %v1627, %v1652
        %v1661 = vadd.f32 %v1628, %v1653
        %vm1662 = vcmask 162816
        %v1663 = vsel %vm1662, %v699, %v1007
        %v1664 = vsel %vm1662, %v702, %v1008
        %v1665 = vsel %vm1662, %v707, %v1009
        %v1666 = vsel %vm1662, %v710, %v1010
        %v1667 = vsel %vm1662, %v715, %v1011
        %v1668 = vsel %vm1662, %v718, %v1012
        %v1669 = vsel %vm1662, %v723, %v1013
        %v1670 = vsel %vm1662, %v726, %v1014
        %vm1671 = vcmask 195584
        %v1672 = vsel %vm1671, %v1663, %v1327
        %v1673 = vsel %vm1671, %v1664, %v1328
        %v1674 = vsel %vm1671, %v1665, %v1329
        %v1675 = vsel %vm1671, %v1666, %v1330
        %v1676 = vsel %vm1671, %v1667, %v1331
        %v1677 = vsel %vm1671, %v1668, %v1332
        %v1678 = vsel %vm1671, %v1669, %v1333
        %v1679 = vsel %vm1671, %v1670, %v1334
        %vm1680 = vcmask 228352
        %v1681 = vsel %vm1680, %v1672, %v1654
        %v1682 = vsel %vm1680, %v1673, %v1655
        %v1683 = vsel %vm1680, %v1674, %v1656
        %v1684 = vsel %vm1680, %v1675, %v1657
        %v1685 = vsel %vm1680, %v1676, %v1658
        %v1686 = vsel %vm1680, %v1677, %v1659
        %v1687 = vsel %vm1680, %v1678, %v1660
        %v1688 = vsel %vm1680, %v1679, %v1661
        %v1689 = vpack.c.bf16 %v1682, %v1681
        %v1690 = vpack.c.bf16 %v1684, %v1683
        %v1691 = vpack.c.bf16 %v1686, %v1685
        %v1692 = vpack.c.bf16 %v1688, %v1687
        %v1693 = vld [vmem:[#allocation8] sm:$0xf]
        %v1694 = vld [vmem:[#allocation8 + $0x4] sm:$0xf]
        %v1695 = vld [vmem:[#allocation8 + $0x8] sm:$0xf]
        %v1696 = vld [vmem:[#allocation8 + $0xc] sm:$0xf]
        %v1697 = vld [vmem:[#allocation9] sm:$0x1]
        %v1699 = vlaneseq
        %v1700 = vshrl.u32 %v1699, 7
        %v1701 = vsub.s32 0, %v1700
        %v1702 = vrot.slane %v1697, %v1701
        %v1708 = vunpack.c.l.b16 %v1693
        %v1709 = vunpack.c.l.b16 %v1694
        %v1710 = vunpack.c.l.b16 %v1695
        %v1711 = vunpack.c.l.b16 %v1696
        %v1712 = vpack.c.b16 %v1709, %v1708
        %v1713 = vpack.c.b16 %v1711, %v1710
        %vm1716 = vcmask 261120
        %v1718 = vsel %vm1716, %v1689, 0
        %v1721 = vsel %vm1716, %v1690, 0
        %v1724 = vsel %vm1716, %v1691, 0
        %v1727 = vsel %vm1716, %v1692, 0
        %1729 = vmatprep.subr.bf16.mxu0 0
        %1730 = vmatpush1.bf16.msra.mxu0 0
        %1731 = vmatprep.subr.bf16.mxu0 0
        %1732 = vmatpush1.bf16.msra.mxu0 0
        %1733 = vmatprep.subr.bf16.mxu0 0
        %1734 = vmatpush1.bf16.msra.mxu0 0
        %1735 = vmatprep.subr.bf16.mxu0 0
        %1736 = vmatpush1.bf16.msra.mxu0 0
        %1737 = vmatprep.subr.bf16.mxu0 0
        %1738 = vmatpush1.bf16.msra.mxu0 0
        %1739 = vmatprep.subr.bf16.mxu0 0
        %1740 = vmatpush1.bf16.msra.mxu0 0
        %1741 = vmatprep.subr.bf16.mxu0 0
        %1742 = vmatpush1.bf16.msra.mxu0 %v1713
        %1743 = vmatprep.subr.bf16.mxu0 0
        %1744 = vmatpush1.bf16.msra.mxu0 %v1712
        %1745 = vmatprep.subr.bf16.mxu0 0
        %1746 = vmatpush2.bf16.msra.mxu0 0
        %1747 = vmatprep.subr.bf16.mxu0 0
        %1748 = vmatpush2.bf16.msra.mxu0 0
        %1749 = vmatprep.subr.bf16.mxu0 0
        %1750 = vmatpush2.bf16.msra.mxu0 0
        %1751 = vmatprep.subr.bf16.mxu0 0
        %1752 = vmatpush2.bf16.msra.mxu0 0
        %1753 = vmatprep.subr.bf16.mxu0 0
        %1754 = vmatpush2.bf16.msra.mxu0 0
        %1755 = vmatprep.subr.bf16.mxu0 0
        %1756 = vmatpush2.bf16.msra.mxu0 0
        %1757 = vmatprep.subr.bf16.mxu0 0
        %1758 = vmatpush2.bf16.msra.mxu0 0
        %1759 = vmatprep.subr.bf16.mxu0 0
        %1760 = vmatpush2.bf16.msra.mxu0 0
        %1761 = vmatprep.mubr.bf16.mxu0 0
        %1762 = vmatmul.mubr.bf16.gmra.mxu0 %v1718
        %v1763 = vpop.f32.mrf.mxu0
        %v1764 = vadd.f32 %v1702, %v1763
        %v1765 = vpop.f32.mrf.mxu0
        %v1766 = vpop.f32.mrf.mxu0
        %v1767 = vadd.f32 %v1702, %v1766
        %v1768 = vpop.f32.mrf.mxu0
        %1769 = vmatprep.mubr.bf16.mxu0 0
        %1770 = vmatmul.mubr.bf16.gmra.mxu0 %v1721
        %v1771 = vpop.f32.mrf.mxu0
        %v1772 = vadd.f32 %v1702, %v1771
        %v1773 = vpop.f32.mrf.mxu0
        %v1774 = vpop.f32.mrf.mxu0
        %v1775 = vadd.f32 %v1702, %v1774
        %v1776 = vpop.f32.mrf.mxu0
        %1777 = vmatprep.mubr.bf16.mxu0 0
        %1778 = vmatmul.mubr.bf16.gmra.mxu0 %v1724
        %v1779 = vpop.f32.mrf.mxu0
        %v1780 = vadd.f32 %v1702, %v1779
        %v1781 = vpop.f32.mrf.mxu0
        %v1782 = vpop.f32.mrf.mxu0
        %v1783 = vadd.f32 %v1702, %v1782
        %v1784 = vpop.f32.mrf.mxu0
        %1785 = vmatprep.mubr.bf16.mxu0 0
        %1786 = vmatmul.mubr.bf16.gmra.mxu0 %v1727
        %v1787 = vpop.f32.mrf.mxu0
        %v1788 = vadd.f32 %v1702, %v1787
        %v1789 = vpop.f32.mrf.mxu0
        %v1790 = vpop.f32.mrf.mxu0
        %v1791 = vadd.f32 %v1702, %v1790
        %v1792 = vpop.f32.mrf.mxu0
        %1793 = vdwg.mxu0
        %v1794 = vmul.f32 %v1764, %v1764
        %v1795 = vmul.f32 %v1767, %v1767
        %v1796 = vmul.f32 %v1772, %v1772
        %v1797 = vmul.f32 %v1775, %v1775
        %v1798 = vmul.f32 %v1780, %v1780
        %v1799 = vmul.f32 %v1783, %v1783
        %v1800 = vmul.f32 %v1788, %v1788
        %v1801 = vmul.f32 %v1791, %v1791
        %v1802 = vmul.f32 %v1764, %v1794
        %v1803 = vmul.f32 %v1767, %v1795
        %v1804 = vmul.f32 %v1772, %v1796
        %v1805 = vmul.f32 %v1775, %v1797
        %v1806 = vmul.f32 %v1780, %v1798
        %v1807 = vmul.f32 %v1783, %v1799
        %v1808 = vmul.f32 %v1788, %v1800
        %v1809 = vmul.f32 %v1791, %v1801
        %v1810 = vmul.f32 %v1802, 0.044715
        %v1811 = vmul.f32 %v1803, 0.044715
        %v1812 = vmul.f32 %v1804, 0.044715
        %v1813 = vmul.f32 %v1805, 0.044715
        %v1814 = vmul.f32 %v1806, 0.044715
        %v1815 = vmul.f32 %v1807, 0.044715
        %v1816 = vmul.f32 %v1808, 0.044715
        %v1817 = vmul.f32 %v1809, 0.044715
        %v1818 = vadd.f32 %v1764, %v1810
        %v1819 = vadd.f32 %v1767, %v1811
        %v1820 = vadd.f32 %v1772, %v1812
        %v1821 = vadd.f32 %v1775, %v1813
        %v1822 = vadd.f32 %v1780, %v1814
        %v1823 = vadd.f32 %v1783, %v1815
        %v1824 = vadd.f32 %v1788, %v1816
        %v1825 = vadd.f32 %v1791, %v1817
        %v1826 = vmul.f32 %v1818, 0.7978846
        %v1827 = vmul.f32 %v1819, 0.7978846
        %v1828 = vmul.f32 %v1820, 0.7978846
        %v1829 = vmul.f32 %v1821, 0.7978846
        %v1830 = vmul.f32 %v1822, 0.7978846
        %v1831 = vmul.f32 %v1823, 0.7978846
        %v1832 = vmul.f32 %v1824, 0.7978846
        %v1833 = vmul.f32 %v1825, 0.7978846
        %v1834 = vtanh.pop %v1826
        %v1835 = vtanh.pop %v1827
        %v1836 = vtanh.pop %v1828
        %v1837 = vtanh.pop %v1829
        %v1838 = vtanh.pop %v1830
        %v1839 = vtanh.pop %v1831
        %v1840 = vtanh.pop %v1832
        %v1841 = vtanh.pop %v1833
        %v1842 = vadd.f32 %v1834, 1.0
        %v1843 = vadd.f32 %v1835, 1.0
        %v1844 = vadd.f32 %v1836, 1.0
        %v1845 = vadd.f32 %v1837, 1.0
        %v1846 = vadd.f32 %v1838, 1.0
        %v1847 = vadd.f32 %v1839, 1.0
        %v1848 = vadd.f32 %v1840, 1.0
        %v1849 = vadd.f32 %v1841, 1.0
        %v1850 = vmul.f32 %v1842, 0.5
        %v1851 = vmul.f32 %v1843, 0.5
        %v1852 = vmul.f32 %v1844, 0.5
        %v1853 = vmul.f32 %v1845, 0.5
        %v1854 = vmul.f32 %v1846, 0.5
        %v1855 = vmul.f32 %v1847, 0.5
        %v1856 = vmul.f32 %v1848, 0.5
        %v1857 = vmul.f32 %v1849, 0.5
        %v1858 = vmul.f32 %v1764, %v1850
        %v1859 = vmul.f32 %v1767, %v1851
        %v1860 = vmul.f32 %v1772, %v1852
        %v1861 = vmul.f32 %v1775, %v1853
        %v1862 = vmul.f32 %v1780, %v1854
        %v1863 = vmul.f32 %v1783, %v1855
        %v1864 = vmul.f32 %v1788, %v1856
        %v1865 = vmul.f32 %v1791, %v1857
        %v1866 = vpack.c.bf16 %v1859, %v1858
        %v1867 = vpack.c.bf16 %v1861, %v1860
        %v1868 = vpack.c.bf16 %v1863, %v1862
        %v1869 = vpack.c.bf16 %v1865, %v1864
        %v1870 = vld [vmem:[#allocation11] sm:$0xf]
        %v1871 = vld [vmem:[#allocation11 + $0x4] sm:$0xf]
        %v1872 = vld [vmem:[#allocation11 + $0x8] sm:$0xf]
        %v1873 = vld [vmem:[#allocation11 + $0xc] sm:$0xf]
        %v1874 = vld [vmem:[#allocation11 + $0x10] sm:$0xf]
        %v1875 = vld [vmem:[#allocation11 + $0x14] sm:$0xf]
        %v1876 = vld [vmem:[#allocation11 + $0x18] sm:$0xf]
        %v1877 = vld [vmem:[#allocation11 + $0x1c] sm:$0xf]
        %v1878 = vld [vmem:[#allocation11 + $0x20] sm:$0xf]
        %v1879 = vld [vmem:[#allocation11 + $0x24] sm:$0xf]
        %v1880 = vld [vmem:[#allocation11 + $0x28] sm:$0xf]
        %v1881 = vld [vmem:[#allocation11 + $0x2c] sm:$0xf]
        %v1882 = vld [vmem:[#allocation11 + $0x30] sm:$0xf]
        %v1883 = vld [vmem:[#allocation11 + $0x34] sm:$0xf]
        %v1884 = vld [vmem:[#allocation11 + $0x38] sm:$0xf]
        %v1885 = vld [vmem:[#allocation11 + $0x3c] sm:$0xf]
        %v1886 = vld [vmem:[#allocation12] sm:$0x1]
        %v1888 = vlaneseq
        %v1889 = vshrl.u32 %v1888, 7
        %v1890 = vsub.s32 0, %v1889
        %v1891 = vrot.slane %v1886, %v1890
        %v1909 = vunpack.c.l.b16 %v1870
        %v1910 = vunpack.c.l.b16 %v1871
        %v1911 = vunpack.c.l.b16 %v1872
        %v1912 = vunpack.c.l.b16 %v1873
        %v1913 = vunpack.c.l.b16 %v1874
        %v1914 = vunpack.c.l.b16 %v1875
        %v1915 = vunpack.c.l.b16 %v1876
        %v1916 = vunpack.c.l.b16 %v1877
        %v1917 = vunpack.c.l.b16 %v1878
        %v1918 = vunpack.c.l.b16 %v1879
        %v1919 = vunpack.c.l.b16 %v1880
        %v1920 = vunpack.c.l.b16 %v1881
        %v1921 = vunpack.c.l.b16 %v1882
        %v1922 = vunpack.c.l.b16 %v1883
        %v1923 = vunpack.c.l.b16 %v1884
        %v1924 = vunpack.c.l.b16 %v1885
        %v1925 = vpack.c.b16 %v1910, %v1909
        %v1926 = vpack.c.b16 %v1912, %v1911
        %v1927 = vpack.c.b16 %v1914, %v1913
        %v1928 = vpack.c.b16 %v1916, %v1915
        %v1929 = vpack.c.b16 %v1918, %v1917
        %v1930 = vpack.c.b16 %v1920, %v1919
        %v1931 = vpack.c.b16 %v1922, %v1921
        %v1932 = vpack.c.b16 %v1924, %v1923
        %1941 = vmatprep.subr.bf16.mxu0 0
        %1942 = vmatpush1.bf16.msra.mxu0 %v1932
        %1943 = vmatprep.subr.bf16.mxu0 0
        %1944 = vmatpush1.bf16.msra.mxu0 %v1931
        %1945 = vmatprep.subr.bf16.mxu0 0
        %1946 = vmatpush1.bf16.msra.mxu0 %v1930
        %1947 = vmatprep.subr.bf16.mxu0 0
        %1948 = vmatpush1.bf16.msra.mxu0 %v1929
        %1949 = vmatprep.subr.bf16.mxu0 0
        %1950 = vmatpush1.bf16.msra.mxu0 %v1928
        %1951 = vmatprep.subr.bf16.mxu0 0
        %1952 = vmatpush1.bf16.msra.mxu0 %v1927
        %1953 = vmatprep.subr.bf16.mxu0 0
        %1954 = vmatpush1.bf16.msra.mxu0 %v1926
        %1955 = vmatprep.subr.bf16.mxu0 0
        %1956 = vmatpush1.bf16.msra.mxu0 %v1925
        %1957 = vmatprep.subr.bf16.mxu0 0
        %1958 = vmatpush2.bf16.msra.mxu0 0
        %1959 = vmatprep.subr.bf16.mxu0 0
        %1960 = vmatpush2.bf16.msra.mxu0 0
        %1961 = vmatprep.subr.bf16.mxu0 0
        %1962 = vmatpush2.bf16.msra.mxu0 0
        %1963 = vmatprep.subr.bf16.mxu0 0
        %1964 = vmatpush2.bf16.msra.mxu0 0
        %1965 = vmatprep.subr.bf16.mxu0 0
        %1966 = vmatpush2.bf16.msra.mxu0 0
        %1967 = vmatprep.subr.bf16.mxu0 0
        %1968 = vmatpush2.bf16.msra.mxu0 0
        %1969 = vmatprep.subr.bf16.mxu0 0
        %1970 = vmatpush2.bf16.msra.mxu0 0
        %1971 = vmatprep.subr.bf16.mxu0 0
        %1972 = vmatpush2.bf16.msra.mxu0 0
        %1973 = vmatprep.mubr.bf16.mxu0 0
        %1974 = vmatmul.mubr.bf16.gmra.mxu0 %v1866
        %v1975 = vpop.f32.mrf.mxu0
        %v1976 = vadd.f32 %v1891, %v1975
        %v1977 = vpop.f32.mrf.mxu0
        %v1978 = vpop.f32.mrf.mxu0
        %v1979 = vadd.f32 %v1891, %v1978
        %v1980 = vpop.f32.mrf.mxu0
        %1981 = vmatprep.mubr.bf16.mxu0 0
        %1982 = vmatmul.mubr.bf16.gmra.mxu0 %v1867
        %v1983 = vpop.f32.mrf.mxu0
        %v1984 = vadd.f32 %v1891, %v1983
        %v1985 = vpop.f32.mrf.mxu0
        %v1986 = vpop.f32.mrf.mxu0
        %v1987 = vadd.f32 %v1891, %v1986
        %v1988 = vpop.f32.mrf.mxu0
        %1989 = vmatprep.mubr.bf16.mxu0 0
        %1990 = vmatmul.mubr.bf16.gmra.mxu0 %v1868
        %v1991 = vpop.f32.mrf.mxu0
        %v1992 = vadd.f32 %v1891, %v1991
        %v1993 = vpop.f32.mrf.mxu0
        %v1994 = vpop.f32.mrf.mxu0
        %v1995 = vadd.f32 %v1891, %v1994
        %v1996 = vpop.f32.mrf.mxu0
        %1997 = vmatprep.mubr.bf16.mxu0 0
        %1998 = vmatmul.mubr.bf16.gmra.mxu0 %v1869
        %v1999 = vpop.f32.mrf.mxu0
        %v2000 = vadd.f32 %v1891, %v1999
        %v2001 = vpop.f32.mrf.mxu0
        %v2002 = vpop.f32.mrf.mxu0
        %v2003 = vadd.f32 %v1891, %v2002
        %v2004 = vpop.f32.mrf.mxu0
        %2005 = vdwg.mxu0
        %v2006 = vadd.f32 %v699, %v1976
        %v2007 = vadd.f32 %v702, %v1979
        %v2008 = vadd.f32 %v707, %v1984
        %v2009 = vadd.f32 %v710, %v1987
        %v2010 = vadd.f32 %v715, %v1992
        %v2011 = vadd.f32 %v718, %v1995
        %v2012 = vadd.f32 %v723, %v2000
        %v2013 = vadd.f32 %v726, %v2003
        %v2014 = vld [vmem:[%s8] sm:$0xff]
        %v2015 = vld [vmem:[%s8 + $0x8] sm:$0xff]
        %v2016 = vld [vmem:[%s8 + $0x10] sm:$0xff]
        %v2017 = vld [vmem:[%s8 + $0x18] sm:$0x7f]
        %2018 = vst [vmem:[%s567 + $0x8] sm:$0xff] %v2006
        %2019 = vst [vmem:[%s567 + $0x20] sm:$0xff] %v2007
        %2020 = vst [vmem:[%s567 + $0x38] sm:$0xff] %v2008
        %2021 = vst [vmem:[%s567 + $0x50] sm:$0xff] %v2009
        %2022 = vst [vmem:[%s567 + $0x68] sm:$0xff] %v2010
        %2023 = vst [vmem:[%s567 + $0x80] sm:$0xff] %v2011
        %2024 = vst [vmem:[%s567 + $0x98] sm:$0xff] %v2012
        %2025 = vst [vmem:[%s567 + $0xb0] sm:$0xff] %v2013
        %v2026 = vlaneseq
        %v2027 = vshrl.u32 %v2026, 7
        %v2028 = vsub.s32 4, %v2027
        %v2029 = vrot.slane %v2014, %v2028
        %2031 = vrot.lane.b32.xlu0 %v2029, 20
        %v2032 = vpop.permute.xlu0 %2031
        %v2034 = vmul.f32 %v2006, %v2032
        %v2035 = vmul.f32 %v2007, %v2032
        %v2036 = vmul.f32 %v2008, %v2032
        %v2037 = vmul.f32 %v2009, %v2032
        %v2038 = vmul.f32 %v2010, %v2032
        %v2039 = vmul.f32 %v2011, %v2032
        %v2040 = vmul.f32 %v2012, %v2032
        %v2041 = vmul.f32 %v2013, %v2032
        %v2042 = vld [vmem:[%s757 + $0x7] sm:$0xff]
        %v2043 = vld [vmem:[%s757 + $0x1f] sm:$0xff]
        %v2044 = vld [vmem:[%s757 + $0x37] sm:$0xff]
        %v2045 = vld [vmem:[%s757 + $0x4f] sm:$0xff]
        %v2046 = vld [vmem:[%s757 + $0x67] sm:$0xff]
        %v2047 = vld [vmem:[%s757 + $0x7f] sm:$0xff]
        %v2048 = vld [vmem:[%s757 + $0x97] sm:$0xff]
        %v2049 = vld [vmem:[%s757 + $0xaf] sm:$0xff]
        %v2050 = vlaneseq
        %v2051 = vshrl.u32 %v2050, 7
        %v2052 = vsub.s32 0, %v2051
        %v2053 = vrot.slane %v2014, %v2052
        %2055 = vrot.lane.b32.xlu0 %v2053, 20
        %v2056 = vpop.permute.xlu0 %2055
        %v2058 = vmul.f32 %v2042, %v2056
        %v2059 = vmul.f32 %v2043, %v2056
        %v2060 = vmul.f32 %v2044, %v2056
        %v2061 = vmul.f32 %v2045, %v2056
        %v2062 = vmul.f32 %v2046, %v2056
        %v2063 = vmul.f32 %v2047, %v2056
        %v2064 = vmul.f32 %v2048, %v2056
        %v2065 = vmul.f32 %v2049, %v2056
        %v2066 = vadd.f32 %v2034, %v2058
        %v2067 = vadd.f32 %v2035, %v2059
        %v2068 = vadd.f32 %v2036, %v2060
        %v2069 = vadd.f32 %v2037, %v2061
        %v2070 = vadd.f32 %v2038, %v2062
        %v2071 = vadd.f32 %v2039, %v2063
        %v2072 = vadd.f32 %v2040, %v2064
        %v2073 = vadd.f32 %v2041, %v2065
        %v2074 = vld [vmem:[%s757 + $0x8] sm:$0xff]
        %v2075 = vld [vmem:[%s757 + $0x20] sm:$0xff]
        %v2076 = vld [vmem:[%s757 + $0x38] sm:$0xff]
        %v2077 = vld [vmem:[%s757 + $0x50] sm:$0xff]
        %v2078 = vld [vmem:[%s757 + $0x68] sm:$0xff]
        %v2079 = vld [vmem:[%s757 + $0x80] sm:$0xff]
        %v2080 = vld [vmem:[%s757 + $0x98] sm:$0xff]
        %v2081 = vld [vmem:[%s757 + $0xb0] sm:$0xff]
        %v2082 = vlaneseq
        %v2083 = vshrl.u32 %v2082, 7
        %v2084 = vsub.s32 1, %v2083
        %v2085 = vrot.slane %v2014, %v2084
        %2087 = vrot.lane.b32.xlu0 %v2085, 20
        %v2088 = vpop.permute.xlu0 %2087
        %v2090 = vmul.f32 %v2074, %v2088
        %v2091 = vmul.f32 %v2075, %v2088
        %v2092 = vmul.f32 %v2076, %v2088
        %v2093 = vmul.f32 %v2077, %v2088
        %v2094 = vmul.f32 %v2078, %v2088
        %v2095 = vmul.f32 %v2079, %v2088
        %v2096 = vmul.f32 %v2080, %v2088
        %v2097 = vmul.f32 %v2081, %v2088
        %v2098 = vadd.f32 %v2066, %v2090
        %v2099 = vadd.f32 %v2067, %v2091
        %v2100 = vadd.f32 %v2068, %v2092
        %v2101 = vadd.f32 %v2069, %v2093
        %v2102 = vadd.f32 %v2070, %v2094
        %v2103 = vadd.f32 %v2071, %v2095
        %v2104 = vadd.f32 %v2072, %v2096
        %v2105 = vadd.f32 %v2073, %v2097
        %v2106 = vld [vmem:[%s757 + $0x9] sm:$0xff]
        %v2107 = vld [vmem:[%s757 + $0x21] sm:$0xff]
        %v2108 = vld [vmem:[%s757 + $0x39] sm:$0xff]
        %v2109 = vld [vmem:[%s757 + $0x51] sm:$0xff]
        %v2110 = vld [vmem:[%s757 + $0x69] sm:$0xff]
        %v2111 = vld [vmem:[%s757 + $0x81] sm:$0xff]
        %v2112 = vld [vmem:[%s757 + $0x99] sm:$0xff]
        %v2113 = vld [vmem:[%s757 + $0xb1] sm:$0xff]
        %v2114 = vlaneseq
        %v2115 = vshrl.u32 %v2114, 7
        %v2116 = vsub.s32 2, %v2115
        %v2117 = vrot.slane %v2014, %v2116
        %2119 = vrot.lane.b32.xlu0 %v2117, 20
        %v2120 = vpop.permute.xlu0 %2119
        %v2122 = vmul.f32 %v2106, %v2120
        %v2123 = vmul.f32 %v2107, %v2120
        %v2124 = vmul.f32 %v2108, %v2120
        %v2125 = vmul.f32 %v2109, %v2120
        %v2126 = vmul.f32 %v2110, %v2120
        %v2127 = vmul.f32 %v2111, %v2120
        %v2128 = vmul.f32 %v2112, %v2120
        %v2129 = vmul.f32 %v2113, %v2120
        %v2130 = vadd.f32 %v2098, %v2122
        %v2131 = vadd.f32 %v2099, %v2123
        %v2132 = vadd.f32 %v2100, %v2124
        %v2133 = vadd.f32 %v2101, %v2125
        %v2134 = vadd.f32 %v2102, %v2126
        %v2135 = vadd.f32 %v2103, %v2127
        %v2136 = vadd.f32 %v2104, %v2128
        %v2137 = vadd.f32 %v2105, %v2129
        %v2138 = vld [vmem:[%s567 + $0x7] sm:$0xff]
        %v2139 = vld [vmem:[%s567 + $0x1f] sm:$0xff]
        %v2140 = vld [vmem:[%s567 + $0x37] sm:$0xff]
        %v2141 = vld [vmem:[%s567 + $0x4f] sm:$0xff]
        %v2142 = vld [vmem:[%s567 + $0x67] sm:$0xff]
        %v2143 = vld [vmem:[%s567 + $0x7f] sm:$0xff]
        %v2144 = vld [vmem:[%s567 + $0x97] sm:$0xff]
        %v2145 = vld [vmem:[%s567 + $0xaf] sm:$0xff]
        %v2146 = vlaneseq
        %v2147 = vshrl.u32 %v2146, 7
        %v2148 = vsub.s32 3, %v2147
        %v2149 = vrot.slane %v2014, %v2148
        %2151 = vrot.lane.b32.xlu0 %v2149, 20
        %v2152 = vpop.permute.xlu0 %2151
        %v2154 = vmul.f32 %v2138, %v2152
        %v2155 = vmul.f32 %v2139, %v2152
        %v2156 = vmul.f32 %v2140, %v2152
        %v2157 = vmul.f32 %v2141, %v2152
        %v2158 = vmul.f32 %v2142, %v2152
        %v2159 = vmul.f32 %v2143, %v2152
        %v2160 = vmul.f32 %v2144, %v2152
        %v2161 = vmul.f32 %v2145, %v2152
        %v2162 = vadd.f32 %v2130, %v2154
        %v2163 = vadd.f32 %v2131, %v2155
        %v2164 = vadd.f32 %v2132, %v2156
        %v2165 = vadd.f32 %v2133, %v2157
        %v2166 = vadd.f32 %v2134, %v2158
        %v2167 = vadd.f32 %v2135, %v2159
        %v2168 = vadd.f32 %v2136, %v2160
        %v2169 = vadd.f32 %v2137, %v2161
        %v2170 = vld [vmem:[%s567 + $0x9] sm:$0xff]
        %v2171 = vld [vmem:[%s567 + $0x21] sm:$0xff]
        %v2172 = vld [vmem:[%s567 + $0x39] sm:$0xff]
        %v2173 = vld [vmem:[%s567 + $0x51] sm:$0xff]
        %v2174 = vld [vmem:[%s567 + $0x69] sm:$0xff]
        %v2175 = vld [vmem:[%s567 + $0x81] sm:$0xff]
        %v2176 = vld [vmem:[%s567 + $0x99] sm:$0xff]
        %v2177 = vld [vmem:[%s567 + $0xb1] sm:$0xff]
        %v2178 = vlaneseq
        %v2179 = vshrl.u32 %v2178, 7
        %v2180 = vsub.s32 5, %v2179
        %v2181 = vrot.slane %v2014, %v2180
        %2183 = vrot.lane.b32.xlu0 %v2181, 20
        %v2184 = vpop.permute.xlu0 %2183
        %v2186 = vmul.f32 %v2170, %v2184
        %v2187 = vmul.f32 %v2171, %v2184
        %v2188 = vmul.f32 %v2172, %v2184
        %v2189 = vmul.f32 %v2173, %v2184
        %v2190 = vmul.f32 %v2174, %v2184
        %v2191 = vmul.f32 %v2175, %v2184
        %v2192 = vmul.f32 %v2176, %v2184
        %v2193 = vmul.f32 %v2177, %v2184
        %v2194 = vadd.f32 %v2162, %v2186
        %v2195 = vadd.f32 %v2163, %v2187
        %v2196 = vadd.f32 %v2164, %v2188
        %v2197 = vadd.f32 %v2165, %v2189
        %v2198 = vadd.f32 %v2166, %v2190
        %v2199 = vadd.f32 %v2167, %v2191
        %v2200 = vadd.f32 %v2168, %v2192
        %v2201 = vadd.f32 %v2169, %v2193
        %v2202 = vld [vmem:[%s918 + $0x7] sm:$0xff]
        %v2203 = vld [vmem:[%s918 + $0x1f] sm:$0xff]
        %v2204 = vld [vmem:[%s918 + $0x37] sm:$0xff]
        %v2205 = vld [vmem:[%s918 + $0x4f] sm:$0xff]
        %v2206 = vld [vmem:[%s918 + $0x67] sm:$0xff]
        %v2207 = vld [vmem:[%s918 + $0x7f] sm:$0xff]
        %v2208 = vld [vmem:[%s918 + $0x97] sm:$0xff]
        %v2209 = vld [vmem:[%s918 + $0xaf] sm:$0xff]
        %v2210 = vlaneseq
        %v2211 = vshrl.u32 %v2210, 7
        %v2212 = vsub.s32 6, %v2211
        %v2213 = vrot.slane %v2014, %v2212
        %2215 = vrot.lane.b32.xlu0 %v2213, 20
        %v2216 = vpop.permute.xlu0 %2215
        %v2218 = vmul.f32 %v2202, %v2216
        %v2219 = vmul.f32 %v2203, %v2216
        %v2220 = vmul.f32 %v2204, %v2216
        %v2221 = vmul.f32 %v2205, %v2216
        %v2222 = vmul.f32 %v2206, %v2216
        %v2223 = vmul.f32 %v2207, %v2216
        %v2224 = vmul.f32 %v2208, %v2216
        %v2225 = vmul.f32 %v2209, %v2216
        %v2226 = vadd.f32 %v2194, %v2218
        %v2227 = vadd.f32 %v2195, %v2219
        %v2228 = vadd.f32 %v2196, %v2220
        %v2229 = vadd.f32 %v2197, %v2221
        %v2230 = vadd.f32 %v2198, %v2222
        %v2231 = vadd.f32 %v2199, %v2223
        %v2232 = vadd.f32 %v2200, %v2224
        %v2233 = vadd.f32 %v2201, %v2225
        %v2234 = vld [vmem:[%s918 + $0x8] sm:$0xff]
        %v2235 = vld [vmem:[%s918 + $0x20] sm:$0xff]
        %v2236 = vld [vmem:[%s918 + $0x38] sm:$0xff]
        %v2237 = vld [vmem:[%s918 + $0x50] sm:$0xff]
        %v2238 = vld [vmem:[%s918 + $0x68] sm:$0xff]
        %v2239 = vld [vmem:[%s918 + $0x80] sm:$0xff]
        %v2240 = vld [vmem:[%s918 + $0x98] sm:$0xff]
        %v2241 = vld [vmem:[%s918 + $0xb0] sm:$0xff]
        %v2242 = vlaneseq
        %v2243 = vshrl.u32 %v2242, 7
        %v2244 = vsub.s32 7, %v2243
        %v2245 = vrot.slane %v2014, %v2244
        %2247 = vrot.lane.b32.xlu0 %v2245, 20
        %v2248 = vpop.permute.xlu0 %2247
        %v2250 = vmul.f32 %v2234, %v2248
        %v2251 = vmul.f32 %v2235, %v2248
        %v2252 = vmul.f32 %v2236, %v2248
        %v2253 = vmul.f32 %v2237, %v2248
        %v2254 = vmul.f32 %v2238, %v2248
        %v2255 = vmul.f32 %v2239, %v2248
        %v2256 = vmul.f32 %v2240, %v2248
        %v2257 = vmul.f32 %v2241, %v2248
        %v2258 = vadd.f32 %v2226, %v2250
        %v2259 = vadd.f32 %v2227, %v2251
        %v2260 = vadd.f32 %v2228, %v2252
        %v2261 = vadd.f32 %v2229, %v2253
        %v2262 = vadd.f32 %v2230, %v2254
        %v2263 = vadd.f32 %v2231, %v2255
        %v2264 = vadd.f32 %v2232, %v2256
        %v2265 = vadd.f32 %v2233, %v2257
        %v2266 = vld [vmem:[%s918 + $0x9] sm:$0xff]
        %v2267 = vld [vmem:[%s918 + $0x21] sm:$0xff]
        %v2268 = vld [vmem:[%s918 + $0x39] sm:$0xff]
        %v2269 = vld [vmem:[%s918 + $0x51] sm:$0xff]
        %v2270 = vld [vmem:[%s918 + $0x69] sm:$0xff]
        %v2271 = vld [vmem:[%s918 + $0x81] sm:$0xff]
        %v2272 = vld [vmem:[%s918 + $0x99] sm:$0xff]
        %v2273 = vld [vmem:[%s918 + $0xb1] sm:$0xff]
        %v2274 = vlaneseq
        %v2275 = vshrl.u32 %v2274, 7
        %v2276 = vsub.s32 0, %v2275
        %v2277 = vrot.slane %v2015, %v2276
        %2279 = vrot.lane.b32.xlu0 %v2277, 20
        %v2280 = vpop.permute.xlu0 %2279
        %v2282 = vmul.f32 %v2266, %v2280
        %v2283 = vmul.f32 %v2267, %v2280
        %v2284 = vmul.f32 %v2268, %v2280
        %v2285 = vmul.f32 %v2269, %v2280
        %v2286 = vmul.f32 %v2270, %v2280
        %v2287 = vmul.f32 %v2271, %v2280
        %v2288 = vmul.f32 %v2272, %v2280
        %v2289 = vmul.f32 %v2273, %v2280
        %v2290 = vadd.f32 %v2258, %v2282
        %v2291 = vadd.f32 %v2259, %v2283
        %v2292 = vadd.f32 %v2260, %v2284
        %v2293 = vadd.f32 %v2261, %v2285
        %v2294 = vadd.f32 %v2262, %v2286
        %v2295 = vadd.f32 %v2263, %v2287
        %v2296 = vadd.f32 %v2264, %v2288
        %v2297 = vadd.f32 %v2265, %v2289
        %v2298 = vlaneseq
        %v2299 = vshrl.u32 %v2298, 7
        %v2300 = vsub.s32 6, %v2299
        %v2301 = vrot.slane %v2015, %v2300
        %2303 = vrot.lane.b32.xlu0 %v2301, 24
        %v2304 = vpop.permute.xlu0 %2303
        %v2306 = vmul.f32 %v2006, %v2304
        %v2307 = vmul.f32 %v2007, %v2304
        %v2308 = vmul.f32 %v2008, %v2304
        %v2309 = vmul.f32 %v2009, %v2304
        %v2310 = vmul.f32 %v2010, %v2304
        %v2311 = vmul.f32 %v2011, %v2304
        %v2312 = vmul.f32 %v2012, %v2304
        %v2313 = vmul.f32 %v2013, %v2304
        %v2314 = vld [vmem:[%s567 + $0x3] sm:$0xff]
        %v2315 = vld [vmem:[%s567 + $0x1b] sm:$0xff]
        %v2316 = vld [vmem:[%s567 + $0x33] sm:$0xff]
        %v2317 = vld [vmem:[%s567 + $0x4b] sm:$0xff]
        %v2318 = vld [vmem:[%s567 + $0x63] sm:$0xff]
        %v2319 = vld [vmem:[%s567 + $0x7b] sm:$0xff]
        %v2320 = vld [vmem:[%s567 + $0x93] sm:$0xff]
        %v2321 = vld [vmem:[%s567 + $0xab] sm:$0xff]
        %v2322 = vlaneseq
        %v2323 = vshrl.u32 %v2322, 7
        %v2324 = vsub.s32 1, %v2323
        %v2325 = vrot.slane %v2015, %v2324
        %2327 = vrot.lane.b32.xlu0 %v2325, 24
        %v2328 = vpop.permute.xlu0 %2327
        %v2330 = vmul.f32 %v2314, %v2328
        %v2331 = vmul.f32 %v2315, %v2328
        %v2332 = vmul.f32 %v2316, %v2328
        %v2333 = vmul.f32 %v2317, %v2328
        %v2334 = vmul.f32 %v2318, %v2328
        %v2335 = vmul.f32 %v2319, %v2328
        %v2336 = vmul.f32 %v2320, %v2328
        %v2337 = vmul.f32 %v2321, %v2328
        %v2338 = vadd.f32 %v2306, %v2330
        %v2339 = vadd.f32 %v2307, %v2331
        %v2340 = vadd.f32 %v2308, %v2332
        %v2341 = vadd.f32 %v2309, %v2333
        %v2342 = vadd.f32 %v2310, %v2334
        %v2343 = vadd.f32 %v2311, %v2335
        %v2344 = vadd.f32 %v2312, %v2336
        %v2345 = vadd.f32 %v2313, %v2337
        %v2346 = vld [vmem:[%s567 + $0x4] sm:$0xff]
        %v2347 = vld [vmem:[%s567 + $0x1c] sm:$0xff]
        %v2348 = vld [vmem:[%s567 + $0x34] sm:$0xff]
        %v2349 = vld [vmem:[%s567 + $0x4c] sm:$0xff]
        %v2350 = vld [vmem:[%s567 + $0x64] sm:$0xff]
        %v2351 = vld [vmem:[%s567 + $0x7c] sm:$0xff]
        %v2352 = vld [vmem:[%s567 + $0x94] sm:$0xff]
        %v2353 = vld [vmem:[%s567 + $0xac] sm:$0xff]
        %v2354 = vlaneseq
        %v2355 = vshrl.u32 %v2354, 7
        %v2356 = vsub.s32 2, %v2355
        %v2357 = vrot.slane %v2015, %v2356
        %2359 = vrot.lane.b32.xlu0 %v2357, 24
        %v2360 = vpop.permute.xlu0 %2359
        %v2362 = vmul.f32 %v2346, %v2360
        %v2363 = vmul.f32 %v2347, %v2360
        %v2364 = vmul.f32 %v2348, %v2360
        %v2365 = vmul.f32 %v2349, %v2360
        %v2366 = vmul.f32 %v2350, %v2360
        %v2367 = vmul.f32 %v2351, %v2360
        %v2368 = vmul.f32 %v2352, %v2360
        %v2369 = vmul.f32 %v2353, %v2360
        %v2370 = vadd.f32 %v2338, %v2362
        %v2371 = vadd.f32 %v2339, %v2363
        %v2372 = vadd.f32 %v2340, %v2364
        %v2373 = vadd.f32 %v2341, %v2365
        %v2374 = vadd.f32 %v2342, %v2366
        %v2375 = vadd.f32 %v2343, %v2367
        %v2376 = vadd.f32 %v2344, %v2368
        %v2377 = vadd.f32 %v2345, %v2369
        %v2378 = vld [vmem:[%s567 + $0x5] sm:$0xff]
        %v2379 = vld [vmem:[%s567 + $0x1d] sm:$0xff]
        %v2380 = vld [vmem:[%s567 + $0x35] sm:$0xff]
        %v2381 = vld [vmem:[%s567 + $0x4d] sm:$0xff]
        %v2382 = vld [vmem:[%s567 + $0x65] sm:$0xff]
        %v2383 = vld [vmem:[%s567 + $0x7d] sm:$0xff]
        %v2384 = vld [vmem:[%s567 + $0x95] sm:$0xff]
        %v2385 = vld [vmem:[%s567 + $0xad] sm:$0xff]
        %v2386 = vlaneseq
        %v2387 = vshrl.u32 %v2386, 7
        %v2388 = vsub.s32 3, %v2387
        %v2389 = vrot.slane %v2015, %v2388
        %2391 = vrot.lane.b32.xlu0 %v2389, 24
        %v2392 = vpop.permute.xlu0 %2391
        %v2394 = vmul.f32 %v2378, %v2392
        %v2395 = vmul.f32 %v2379, %v2392
        %v2396 = vmul.f32 %v2380, %v2392
        %v2397 = vmul.f32 %v2381, %v2392
        %v2398 = vmul.f32 %v2382, %v2392
        %v2399 = vmul.f32 %v2383, %v2392
        %v2400 = vmul.f32 %v2384, %v2392
        %v2401 = vmul.f32 %v2385, %v2392
        %v2402 = vadd.f32 %v2370, %v2394
        %v2403 = vadd.f32 %v2371, %v2395
        %v2404 = vadd.f32 %v2372, %v2396
        %v2405 = vadd.f32 %v2373, %v2397
        %v2406 = vadd.f32 %v2374, %v2398
        %v2407 = vadd.f32 %v2375, %v2399
        %v2408 = vadd.f32 %v2376, %v2400
        %v2409 = vadd.f32 %v2377, %v2401
        %v2410 = vld [vmem:[%s567 + $0x6] sm:$0xff]
        %v2411 = vld [vmem:[%s567 + $0x1e] sm:$0xff]
        %v2412 = vld [vmem:[%s567 + $0x36] sm:$0xff]
        %v2413 = vld [vmem:[%s567 + $0x4e] sm:$0xff]
        %v2414 = vld [vmem:[%s567 + $0x66] sm:$0xff]
        %v2415 = vld [vmem:[%s567 + $0x7e] sm:$0xff]
        %v2416 = vld [vmem:[%s567 + $0x96] sm:$0xff]
        %v2417 = vld [vmem:[%s567 + $0xae] sm:$0xff]
        %v2418 = vlaneseq
        %v2419 = vshrl.u32 %v2418, 7
        %v2420 = vsub.s32 4, %v2419
        %v2421 = vrot.slane %v2015, %v2420
        %2423 = vrot.lane.b32.xlu0 %v2421, 24
        %v2424 = vpop.permute.xlu0 %2423
        %v2426 = vmul.f32 %v2410, %v2424
        %v2427 = vmul.f32 %v2411, %v2424
        %v2428 = vmul.f32 %v2412, %v2424
        %v2429 = vmul.f32 %v2413, %v2424
        %v2430 = vmul.f32 %v2414, %v2424
        %v2431 = vmul.f32 %v2415, %v2424
        %v2432 = vmul.f32 %v2416, %v2424
        %v2433 = vmul.f32 %v2417, %v2424
        %v2434 = vadd.f32 %v2402, %v2426
        %v2435 = vadd.f32 %v2403, %v2427
        %v2436 = vadd.f32 %v2404, %v2428
        %v2437 = vadd.f32 %v2405, %v2429
        %v2438 = vadd.f32 %v2406, %v2430
        %v2439 = vadd.f32 %v2407, %v2431
        %v2440 = vadd.f32 %v2408, %v2432
        %v2441 = vadd.f32 %v2409, %v2433
        %v2442 = vlaneseq
        %v2443 = vshrl.u32 %v2442, 7
        %v2444 = vsub.s32 5, %v2443
        %v2445 = vrot.slane %v2015, %v2444
        %2447 = vrot.lane.b32.xlu0 %v2445, 24
        %v2448 = vpop.permute.xlu0 %2447
        %v2450 = vmul.f32 %v2138, %v2448
        %v2451 = vmul.f32 %v2139, %v2448
        %v2452 = vmul.f32 %v2140, %v2448
        %v2453 = vmul.f32 %v2141, %v2448
        %v2454 = vmul.f32 %v2142, %v2448
        %v2455 = vmul.f32 %v2143, %v2448
        %v2456 = vmul.f32 %v2144, %v2448
        %v2457 = vmul.f32 %v2145, %v2448
        %v2458 = vadd.f32 %v2434, %v2450
        %v2459 = vadd.f32 %v2435, %v2451
        %v2460 = vadd.f32 %v2436, %v2452
        %v2461 = vadd.f32 %v2437, %v2453
        %v2462 = vadd.f32 %v2438, %v2454
        %v2463 = vadd.f32 %v2439, %v2455
        %v2464 = vadd.f32 %v2440, %v2456
        %v2465 = vadd.f32 %v2441, %v2457
        %v2466 = vlaneseq
        %v2467 = vshrl.u32 %v2466, 7
        %v2468 = vsub.s32 7, %v2467
        %v2469 = vrot.slane %v2015, %v2468
        %2471 = vrot.lane.b32.xlu0 %v2469, 24
        %v2472 = vpop.permute.xlu0 %2471
        %v2474 = vmul.f32 %v2170, %v2472
        %v2475 = vmul.f32 %v2171, %v2472
        %v2476 = vmul.f32 %v2172, %v2472
        %v2477 = vmul.f32 %v2173, %v2472
        %v2478 = vmul.f32 %v2174, %v2472
        %v2479 = vmul.f32 %v2175, %v2472
        %v2480 = vmul.f32 %v2176, %v2472
        %v2481 = vmul.f32 %v2177, %v2472
        %v2482 = vadd.f32 %v2458, %v2474
        %v2483 = vadd.f32 %v2459, %v2475
        %v2484 = vadd.f32 %v2460, %v2476
        %v2485 = vadd.f32 %v2461, %v2477
        %v2486 = vadd.f32 %v2462, %v2478
        %v2487 = vadd.f32 %v2463, %v2479
        %v2488 = vadd.f32 %v2464, %v2480
        %v2489 = vadd.f32 %v2465, %v2481
        %v2490 = vld [vmem:[%s567 + $0xa] sm:$0xff]
        %v2491 = vld [vmem:[%s567 + $0x22] sm:$0xff]
        %v2492 = vld [vmem:[%s567 + $0x3a] sm:$0xff]
        %v2493 = vld [vmem:[%s567 + $0x52] sm:$0xff]
        %v2494 = vld [vmem:[%s567 + $0x6a] sm:$0xff]
        %v2495 = vld [vmem:[%s567 + $0x82] sm:$0xff]
        %v2496 = vld [vmem:[%s567 + $0x9a] sm:$0xff]
        %v2497 = vld [vmem:[%s567 + $0xb2] sm:$0xff]
        %v2498 = vlaneseq
        %v2499 = vshrl.u32 %v2498, 7
        %v2500 = vsub.s32 0, %v2499
        %v2501 = vrot.slane %v2016, %v2500
        %2503 = vrot.lane.b32.xlu0 %v2501, 24
        %v2504 = vpop.permute.xlu0 %2503
        %v2506 = vmul.f32 %v2490, %v2504
        %v2507 = vmul.f32 %v2491, %v2504
        %v2508 = vmul.f32 %v2492, %v2504
        %v2509 = vmul.f32 %v2493, %v2504
        %v2510 = vmul.f32 %v2494, %v2504
        %v2511 = vmul.f32 %v2495, %v2504
        %v2512 = vmul.f32 %v2496, %v2504
        %v2513 = vmul.f32 %v2497, %v2504
        %v2514 = vadd.f32 %v2482, %v2506
        %v2515 = vadd.f32 %v2483, %v2507
        %v2516 = vadd.f32 %v2484, %v2508
        %v2517 = vadd.f32 %v2485, %v2509
        %v2518 = vadd.f32 %v2486, %v2510
        %v2519 = vadd.f32 %v2487, %v2511
        %v2520 = vadd.f32 %v2488, %v2512
        %v2521 = vadd.f32 %v2489, %v2513
        %v2522 = vld [vmem:[%s567 + $0xb] sm:$0xff]
        %v2523 = vld [vmem:[%s567 + $0x23] sm:$0xff]
        %v2524 = vld [vmem:[%s567 + $0x3b] sm:$0xff]
        %v2525 = vld [vmem:[%s567 + $0x53] sm:$0xff]
        %v2526 = vld [vmem:[%s567 + $0x6b] sm:$0xff]
        %v2527 = vld [vmem:[%s567 + $0x83] sm:$0xff]
        %v2528 = vld [vmem:[%s567 + $0x9b] sm:$0xff]
        %v2529 = vld [vmem:[%s567 + $0xb3] sm:$0xff]
        %v2530 = vlaneseq
        %v2531 = vshrl.u32 %v2530, 7
        %v2532 = vsub.s32 1, %v2531
        %v2533 = vrot.slane %v2016, %v2532
        %2535 = vrot.lane.b32.xlu0 %v2533, 24
        %v2536 = vpop.permute.xlu0 %2535
        %v2538 = vmul.f32 %v2522, %v2536
        %v2539 = vmul.f32 %v2523, %v2536
        %v2540 = vmul.f32 %v2524, %v2536
        %v2541 = vmul.f32 %v2525, %v2536
        %v2542 = vmul.f32 %v2526, %v2536
        %v2543 = vmul.f32 %v2527, %v2536
        %v2544 = vmul.f32 %v2528, %v2536
        %v2545 = vmul.f32 %v2529, %v2536
        %v2546 = vadd.f32 %v2514, %v2538
        %v2547 = vadd.f32 %v2515, %v2539
        %v2548 = vadd.f32 %v2516, %v2540
        %v2549 = vadd.f32 %v2517, %v2541
        %v2550 = vadd.f32 %v2518, %v2542
        %v2551 = vadd.f32 %v2519, %v2543
        %v2552 = vadd.f32 %v2520, %v2544
        %v2553 = vadd.f32 %v2521, %v2545
        %v2554 = vld [vmem:[%s567 + $0xc] sm:$0xff]
        %v2555 = vld [vmem:[%s567 + $0x24] sm:$0xff]
        %v2556 = vld [vmem:[%s567 + $0x3c] sm:$0xff]
        %v2557 = vld [vmem:[%s567 + $0x54] sm:$0xff]
        %v2558 = vld [vmem:[%s567 + $0x6c] sm:$0xff]
        %v2559 = vld [vmem:[%s567 + $0x84] sm:$0xff]
        %v2560 = vld [vmem:[%s567 + $0x9c] sm:$0xff]
        %v2561 = vld [vmem:[%s567 + $0xb4] sm:$0xff]
        %v2562 = vlaneseq
        %v2563 = vshrl.u32 %v2562, 7
        %v2564 = vsub.s32 2, %v2563
        %v2565 = vrot.slane %v2016, %v2564
        %2567 = vrot.lane.b32.xlu0 %v2565, 24
        %v2568 = vpop.permute.xlu0 %2567
        %v2570 = vmul.f32 %v2554, %v2568
        %v2571 = vmul.f32 %v2555, %v2568
        %v2572 = vmul.f32 %v2556, %v2568
        %v2573 = vmul.f32 %v2557, %v2568
        %v2574 = vmul.f32 %v2558, %v2568
        %v2575 = vmul.f32 %v2559, %v2568
        %v2576 = vmul.f32 %v2560, %v2568
        %v2577 = vmul.f32 %v2561, %v2568
        %v2578 = vadd.f32 %v2546, %v2570
        %v2579 = vadd.f32 %v2547, %v2571
        %v2580 = vadd.f32 %v2548, %v2572
        %v2581 = vadd.f32 %v2549, %v2573
        %v2582 = vadd.f32 %v2550, %v2574
        %v2583 = vadd.f32 %v2551, %v2575
        %v2584 = vadd.f32 %v2552, %v2576
        %v2585 = vadd.f32 %v2553, %v2577
        %v2586 = vld [vmem:[%s567 + $0xd] sm:$0xff]
        %v2587 = vld [vmem:[%s567 + $0x25] sm:$0xff]
        %v2588 = vld [vmem:[%s567 + $0x3d] sm:$0xff]
        %v2589 = vld [vmem:[%s567 + $0x55] sm:$0xff]
        %v2590 = vld [vmem:[%s567 + $0x6d] sm:$0xff]
        %v2591 = vld [vmem:[%s567 + $0x85] sm:$0xff]
        %v2592 = vld [vmem:[%s567 + $0x9d] sm:$0xff]
        %v2593 = vld [vmem:[%s567 + $0xb5] sm:$0xff]
        %v2594 = vlaneseq
        %v2595 = vshrl.u32 %v2594, 7
        %v2596 = vsub.s32 3, %v2595
        %v2597 = vrot.slane %v2016, %v2596
        %2599 = vrot.lane.b32.xlu0 %v2597, 24
        %v2600 = vpop.permute.xlu0 %2599
        %v2602 = vmul.f32 %v2586, %v2600
        %v2603 = vmul.f32 %v2587, %v2600
        %v2604 = vmul.f32 %v2588, %v2600
        %v2605 = vmul.f32 %v2589, %v2600
        %v2606 = vmul.f32 %v2590, %v2600
        %v2607 = vmul.f32 %v2591, %v2600
        %v2608 = vmul.f32 %v2592, %v2600
        %v2609 = vmul.f32 %v2593, %v2600
        %v2610 = vadd.f32 %v2578, %v2602
        %v2611 = vadd.f32 %v2579, %v2603
        %v2612 = vadd.f32 %v2580, %v2604
        %v2613 = vadd.f32 %v2581, %v2605
        %v2614 = vadd.f32 %v2582, %v2606
        %v2615 = vadd.f32 %v2583, %v2607
        %v2616 = vadd.f32 %v2584, %v2608
        %v2617 = vadd.f32 %v2585, %v2609
        %v2618 = vlaneseq
        %v2619 = vshrl.u32 %v2618, 7
        %v2620 = vsub.s32 1, %v2619
        %v2621 = vrot.slane %v2017, %v2620
        %2623 = vrot.lane.b32.xlu0 %v2621, 28
        %v2624 = vpop.permute.xlu0 %2623
        %v2626 = vmul.f32 %v2006, %v2624
        %v2627 = vmul.f32 %v2007, %v2624
        %v2628 = vmul.f32 %v2008, %v2624
        %v2629 = vmul.f32 %v2009, %v2624
        %v2630 = vmul.f32 %v2010, %v2624
        %v2631 = vmul.f32 %v2011, %v2624
        %v2632 = vmul.f32 %v2012, %v2624
        %v2633 = vmul.f32 %v2013, %v2624
        %v2634 = vld [vmem:[#allocation2 + $0x8] sm:$0xff]
        %v2635 = vld [vmem:[#allocation2 + $0x20] sm:$0xff]
        %v2636 = vld [vmem:[#allocation2 + $0x38] sm:$0xff]
        %v2637 = vld [vmem:[#allocation2 + $0x50] sm:$0xff]
        %v2638 = vld [vmem:[#allocation2 + $0x68] sm:$0xff]
        %v2639 = vld [vmem:[#allocation2 + $0x80] sm:$0xff]
        %v2640 = vld [vmem:[#allocation2 + $0x98] sm:$0xff]
        %v2641 = vld [vmem:[#allocation2 + $0xb0] sm:$0xff]
        %v2642 = vlaneseq
        %v2643 = vshrl.u32 %v2642, 7
        %v2644 = vsub.s32 4, %v2643
        %v2645 = vrot.slane %v2016, %v2644
        %2647 = vrot.lane.b32.xlu0 %v2645, 28
        %v2648 = vpop.permute.xlu0 %2647
        %v2650 = vmul.f32 %v2634, %v2648
        %v2651 = vmul.f32 %v2635, %v2648
        %v2652 = vmul.f32 %v2636, %v2648
        %v2653 = vmul.f32 %v2637, %v2648
        %v2654 = vmul.f32 %v2638, %v2648
        %v2655 = vmul.f32 %v2639, %v2648
        %v2656 = vmul.f32 %v2640, %v2648
        %v2657 = vmul.f32 %v2641, %v2648
        %v2658 = vadd.f32 %v2626, %v2650
        %v2659 = vadd.f32 %v2627, %v2651
        %v2660 = vadd.f32 %v2628, %v2652
        %v2661 = vadd.f32 %v2629, %v2653
        %v2662 = vadd.f32 %v2630, %v2654
        %v2663 = vadd.f32 %v2631, %v2655
        %v2664 = vadd.f32 %v2632, %v2656
        %v2665 = vadd.f32 %v2633, %v2657
        %v2666 = vld [vmem:[%s1383 + $0x8] sm:$0xff]
        %v2667 = vld [vmem:[%s1383 + $0x20] sm:$0xff]
        %v2668 = vld [vmem:[%s1383 + $0x38] sm:$0xff]
        %v2669 = vld [vmem:[%s1383 + $0x50] sm:$0xff]
        %v2670 = vld [vmem:[%s1383 + $0x68] sm:$0xff]
        %v2671 = vld [vmem:[%s1383 + $0x80] sm:$0xff]
        %v2672 = vld [vmem:[%s1383 + $0x98] sm:$0xff]
        %v2673 = vld [vmem:[%s1383 + $0xb0] sm:$0xff]
        %v2674 = vlaneseq
        %v2675 = vshrl.u32 %v2674, 7
        %v2676 = vsub.s32 5, %v2675
        %v2677 = vrot.slane %v2016, %v2676
        %2679 = vrot.lane.b32.xlu0 %v2677, 28
        %v2680 = vpop.permute.xlu0 %2679
        %v2682 = vmul.f32 %v2666, %v2680
        %v2683 = vmul.f32 %v2667, %v2680
        %v2684 = vmul.f32 %v2668, %v2680
        %v2685 = vmul.f32 %v2669, %v2680
        %v2686 = vmul.f32 %v2670, %v2680
        %v2687 = vmul.f32 %v2671, %v2680
        %v2688 = vmul.f32 %v2672, %v2680
        %v2689 = vmul.f32 %v2673, %v2680
        %v2690 = vadd.f32 %v2658, %v2682
        %v2691 = vadd.f32 %v2659, %v2683
        %v2692 = vadd.f32 %v2660, %v2684
        %v2693 = vadd.f32 %v2661, %v2685
        %v2694 = vadd.f32 %v2662, %v2686
        %v2695 = vadd.f32 %v2663, %v2687
        %v2696 = vadd.f32 %v2664, %v2688
        %v2697 = vadd.f32 %v2665, %v2689
        %v2698 = vld [vmem:[%s1416 + $0x8] sm:$0xff]
        %v2699 = vld [vmem:[%s1416 + $0x20] sm:$0xff]
        %v2700 = vld [vmem:[%s1416 + $0x38] sm:$0xff]
        %v2701 = vld [vmem:[%s1416 + $0x50] sm:$0xff]
        %v2702 = vld [vmem:[%s1416 + $0x68] sm:$0xff]
        %v2703 = vld [vmem:[%s1416 + $0x80] sm:$0xff]
        %v2704 = vld [vmem:[%s1416 + $0x98] sm:$0xff]
        %v2705 = vld [vmem:[%s1416 + $0xb0] sm:$0xff]
        %v2706 = vlaneseq
        %v2707 = vshrl.u32 %v2706, 7
        %v2708 = vsub.s32 6, %v2707
        %v2709 = vrot.slane %v2016, %v2708
        %2711 = vrot.lane.b32.xlu0 %v2709, 28
        %v2712 = vpop.permute.xlu0 %2711
        %v2714 = vmul.f32 %v2698, %v2712
        %v2715 = vmul.f32 %v2699, %v2712
        %v2716 = vmul.f32 %v2700, %v2712
        %v2717 = vmul.f32 %v2701, %v2712
        %v2718 = vmul.f32 %v2702, %v2712
        %v2719 = vmul.f32 %v2703, %v2712
        %v2720 = vmul.f32 %v2704, %v2712
        %v2721 = vmul.f32 %v2705, %v2712
        %v2722 = vadd.f32 %v2690, %v2714
        %v2723 = vadd.f32 %v2691, %v2715
        %v2724 = vadd.f32 %v2692, %v2716
        %v2725 = vadd.f32 %v2693, %v2717
        %v2726 = vadd.f32 %v2694, %v2718
        %v2727 = vadd.f32 %v2695, %v2719
        %v2728 = vadd.f32 %v2696, %v2720
        %v2729 = vadd.f32 %v2697, %v2721
        %v2730 = vld [vmem:[%s1449 + $0x8] sm:$0xff]
        %v2731 = vld [vmem:[%s1449 + $0x20] sm:$0xff]
        %v2732 = vld [vmem:[%s1449 + $0x38] sm:$0xff]
        %v2733 = vld [vmem:[%s1449 + $0x50] sm:$0xff]
        %v2734 = vld [vmem:[%s1449 + $0x68] sm:$0xff]
        %v2735 = vld [vmem:[%s1449 + $0x80] sm:$0xff]
        %v2736 = vld [vmem:[%s1449 + $0x98] sm:$0xff]
        %v2737 = vld [vmem:[%s1449 + $0xb0] sm:$0xff]
        %v2738 = vlaneseq
        %v2739 = vshrl.u32 %v2738, 7
        %v2740 = vsub.s32 7, %v2739
        %v2741 = vrot.slane %v2016, %v2740
        %2743 = vrot.lane.b32.xlu0 %v2741, 28
        %v2744 = vpop.permute.xlu0 %2743
        %v2746 = vmul.f32 %v2730, %v2744
        %v2747 = vmul.f32 %v2731, %v2744
        %v2748 = vmul.f32 %v2732, %v2744
        %v2749 = vmul.f32 %v2733, %v2744
        %v2750 = vmul.f32 %v2734, %v2744
        %v2751 = vmul.f32 %v2735, %v2744
        %v2752 = vmul.f32 %v2736, %v2744
        %v2753 = vmul.f32 %v2737, %v2744
        %v2754 = vadd.f32 %v2722, %v2746
        %v2755 = vadd.f32 %v2723, %v2747
        %v2756 = vadd.f32 %v2724, %v2748
        %v2757 = vadd.f32 %v2725, %v2749
        %v2758 = vadd.f32 %v2726, %v2750
        %v2759 = vadd.f32 %v2727, %v2751
        %v2760 = vadd.f32 %v2728, %v2752
        %v2761 = vadd.f32 %v2729, %v2753
        %v2762 = vlaneseq
        %v2763 = vshrl.u32 %v2762, 7
        %v2764 = vsub.s32 0, %v2763
        %v2765 = vrot.slane %v2017, %v2764
        %2767 = vrot.lane.b32.xlu0 %v2765, 28
        %v2768 = vpop.permute.xlu0 %2767
        %v2770 = vmul.f32 %v2074, %v2768
        %v2771 = vmul.f32 %v2075, %v2768
        %v2772 = vmul.f32 %v2076, %v2768
        %v2773 = vmul.f32 %v2077, %v2768
        %v2774 = vmul.f32 %v2078, %v2768
        %v2775 = vmul.f32 %v2079, %v2768
        %v2776 = vmul.f32 %v2080, %v2768
        %v2777 = vmul.f32 %v2081, %v2768
        %v2778 = vadd.f32 %v2754, %v2770
        %v2779 = vadd.f32 %v2755, %v2771
        %v2780 = vadd.f32 %v2756, %v2772
        %v2781 = vadd.f32 %v2757, %v2773
        %v2782 = vadd.f32 %v2758, %v2774
        %v2783 = vadd.f32 %v2759, %v2775
        %v2784 = vadd.f32 %v2760, %v2776
        %v2785 = vadd.f32 %v2761, %v2777
        %v2786 = vlaneseq
        %v2787 = vshrl.u32 %v2786, 7
        %v2788 = vsub.s32 2, %v2787
        %v2789 = vrot.slane %v2017, %v2788
        %2791 = vrot.lane.b32.xlu0 %v2789, 28
        %v2792 = vpop.permute.xlu0 %2791
        %v2794 = vmul.f32 %v2234, %v2792
        %v2795 = vmul.f32 %v2235, %v2792
        %v2796 = vmul.f32 %v2236, %v2792
        %v2797 = vmul.f32 %v2237, %v2792
        %v2798 = vmul.f32 %v2238, %v2792
        %v2799 = vmul.f32 %v2239, %v2792
        %v2800 = vmul.f32 %v2240, %v2792
        %v2801 = vmul.f32 %v2241, %v2792
        %v2802 = vadd.f32 %v2778, %v2794
        %v2803 = vadd.f32 %v2779, %v2795
        %v2804 = vadd.f32 %v2780, %v2796
        %v2805 = vadd.f32 %v2781, %v2797
        %v2806 = vadd.f32 %v2782, %v2798
        %v2807 = vadd.f32 %v2783, %v2799
        %v2808 = vadd.f32 %v2784, %v2800
        %v2809 = vadd.f32 %v2785, %v2801
        %v2810 = vld [vmem:[%s1530 + $0x8] sm:$0xff]
        %v2811 = vld [vmem:[%s1530 + $0x20] sm:$0xff]
        %v2812 = vld [vmem:[%s1530 + $0x38] sm:$0xff]
        %v2813 = vld [vmem:[%s1530 + $0x50] sm:$0xff]
        %v2814 = vld [vmem:[%s1530 + $0x68] sm:$0xff]
        %v2815 = vld [vmem:[%s1530 + $0x80] sm:$0xff]
        %v2816 = vld [vmem:[%s1530 + $0x98] sm:$0xff]
        %v2817 = vld [vmem:[%s1530 + $0xb0] sm:$0xff]
        %v2818 = vlaneseq
        %v2819 = vshrl.u32 %v2818, 7
        %v2820 = vsub.s32 3, %v2819
        %v2821 = vrot.slane %v2017, %v2820
        %2823 = vrot.lane.b32.xlu0 %v2821, 28
        %v2824 = vpop.permute.xlu0 %2823
        %v2826 = vmul.f32 %v2810, %v2824
        %v2827 = vmul.f32 %v2811, %v2824
        %v2828 = vmul.f32 %v2812, %v2824
        %v2829 = vmul.f32 %v2813, %v2824
        %v2830 = vmul.f32 %v2814, %v2824
        %v2831 = vmul.f32 %v2815, %v2824
        %v2832 = vmul.f32 %v2816, %v2824
        %v2833 = vmul.f32 %v2817, %v2824
        %v2834 = vadd.f32 %v2802, %v2826
        %v2835 = vadd.f32 %v2803, %v2827
        %v2836 = vadd.f32 %v2804, %v2828
        %v2837 = vadd.f32 %v2805, %v2829
        %v2838 = vadd.f32 %v2806, %v2830
        %v2839 = vadd.f32 %v2807, %v2831
        %v2840 = vadd.f32 %v2808, %v2832
        %v2841 = vadd.f32 %v2809, %v2833
        %v2842 = vld [vmem:[%s1563 + $0x8] sm:$0xff]
        %v2843 = vld [vmem:[%s1563 + $0x20] sm:$0xff]
        %v2844 = vld [vmem:[%s1563 + $0x38] sm:$0xff]
        %v2845 = vld [vmem:[%s1563 + $0x50] sm:$0xff]
        %v2846 = vld [vmem:[%s1563 + $0x68] sm:$0xff]
        %v2847 = vld [vmem:[%s1563 + $0x80] sm:$0xff]
        %v2848 = vld [vmem:[%s1563 + $0x98] sm:$0xff]
        %v2849 = vld [vmem:[%s1563 + $0xb0] sm:$0xff]
        %v2850 = vlaneseq
        %v2851 = vshrl.u32 %v2850, 7
        %v2852 = vsub.s32 4, %v2851
        %v2853 = vrot.slane %v2017, %v2852
        %2855 = vrot.lane.b32.xlu0 %v2853, 28
        %v2856 = vpop.permute.xlu0 %2855
        %v2858 = vmul.f32 %v2842, %v2856
        %v2859 = vmul.f32 %v2843, %v2856
        %v2860 = vmul.f32 %v2844, %v2856
        %v2861 = vmul.f32 %v2845, %v2856
        %v2862 = vmul.f32 %v2846, %v2856
        %v2863 = vmul.f32 %v2847, %v2856
        %v2864 = vmul.f32 %v2848, %v2856
        %v2865 = vmul.f32 %v2849, %v2856
        %v2866 = vadd.f32 %v2834, %v2858
        %v2867 = vadd.f32 %v2835, %v2859
        %v2868 = vadd.f32 %v2836, %v2860
        %v2869 = vadd.f32 %v2837, %v2861
        %v2870 = vadd.f32 %v2838, %v2862
        %v2871 = vadd.f32 %v2839, %v2863
        %v2872 = vadd.f32 %v2840, %v2864
        %v2873 = vadd.f32 %v2841, %v2865
        %v2874 = vld [vmem:[%s1596 + $0x8] sm:$0xff]
        %v2875 = vld [vmem:[%s1596 + $0x20] sm:$0xff]
        %v2876 = vld [vmem:[%s1596 + $0x38] sm:$0xff]
        %v2877 = vld [vmem:[%s1596 + $0x50] sm:$0xff]
        %v2878 = vld [vmem:[%s1596 + $0x68] sm:$0xff]
        %v2879 = vld [vmem:[%s1596 + $0x80] sm:$0xff]
        %v2880 = vld [vmem:[%s1596 + $0x98] sm:$0xff]
        %v2881 = vld [vmem:[%s1596 + $0xb0] sm:$0xff]
        %v2882 = vlaneseq
        %v2883 = vshrl.u32 %v2882, 7
        %v2884 = vsub.s32 5, %v2883
        %v2885 = vrot.slane %v2017, %v2884
        %2887 = vrot.lane.b32.xlu0 %v2885, 28
        %v2888 = vpop.permute.xlu0 %2887
        %v2890 = vmul.f32 %v2874, %v2888
        %v2891 = vmul.f32 %v2875, %v2888
        %v2892 = vmul.f32 %v2876, %v2888
        %v2893 = vmul.f32 %v2877, %v2888
        %v2894 = vmul.f32 %v2878, %v2888
        %v2895 = vmul.f32 %v2879, %v2888
        %v2896 = vmul.f32 %v2880, %v2888
        %v2897 = vmul.f32 %v2881, %v2888
        %v2898 = vadd.f32 %v2866, %v2890
        %v2899 = vadd.f32 %v2867, %v2891
        %v2900 = vadd.f32 %v2868, %v2892
        %v2901 = vadd.f32 %v2869, %v2893
        %v2902 = vadd.f32 %v2870, %v2894
        %v2903 = vadd.f32 %v2871, %v2895
        %v2904 = vadd.f32 %v2872, %v2896
        %v2905 = vadd.f32 %v2873, %v2897
        %v2906 = vld [vmem:[%s1629 + $0x8] sm:$0xff]
        %v2907 = vld [vmem:[%s1629 + $0x20] sm:$0xff]
        %v2908 = vld [vmem:[%s1629 + $0x38] sm:$0xff]
        %v2909 = vld [vmem:[%s1629 + $0x50] sm:$0xff]
        %v2910 = vld [vmem:[%s1629 + $0x68] sm:$0xff]
        %v2911 = vld [vmem:[%s1629 + $0x80] sm:$0xff]
        %v2912 = vld [vmem:[%s1629 + $0x98] sm:$0xff]
        %v2913 = vld [vmem:[%s1629 + $0xb0] sm:$0xff]
        %v2914 = vlaneseq
        %v2915 = vshrl.u32 %v2914, 7
        %v2916 = vsub.s32 6, %v2915
        %v2917 = vrot.slane %v2017, %v2916
        %2919 = vrot.lane.b32.xlu0 %v2917, 28
        %v2920 = vpop.permute.xlu0 %2919
        %v2922 = vmul.f32 %v2906, %v2920
        %v2923 = vmul.f32 %v2907, %v2920
        %v2924 = vmul.f32 %v2908, %v2920
        %v2925 = vmul.f32 %v2909, %v2920
        %v2926 = vmul.f32 %v2910, %v2920
        %v2927 = vmul.f32 %v2911, %v2920
        %v2928 = vmul.f32 %v2912, %v2920
        %v2929 = vmul.f32 %v2913, %v2920
        %v2930 = vadd.f32 %v2898, %v2922
        %v2931 = vadd.f32 %v2899, %v2923
        %v2932 = vadd.f32 %v2900, %v2924
        %v2933 = vadd.f32 %v2901, %v2925
        %v2934 = vadd.f32 %v2902, %v2926
        %v2935 = vadd.f32 %v2903, %v2927
        %v2936 = vadd.f32 %v2904, %v2928
        %v2937 = vadd.f32 %v2905, %v2929
        %v2938 = vsel %vm1662, %v2006, %v2290
        %v2939 = vsel %vm1662, %v2007, %v2291
        %v2940 = vsel %vm1662, %v2008, %v2292
        %v2941 = vsel %vm1662, %v2009, %v2293
        %v2942 = vsel %vm1662, %v2010, %v2294
        %v2943 = vsel %vm1662, %v2011, %v2295
        %v2944 = vsel %vm1662, %v2012, %v2296
        %v2945 = vsel %vm1662, %v2013, %v2297
        %v2946 = vsel %vm1671, %v2938, %v2610
        %v2947 = vsel %vm1671, %v2939, %v2611
        %v2948 = vsel %vm1671, %v2940, %v2612
        %v2949 = vsel %vm1671, %v2941, %v2613
        %v2950 = vsel %vm1671, %v2942, %v2614
        %v2951 = vsel %vm1671, %v2943, %v2615
        %v2952 = vsel %vm1671, %v2944, %v2616
        %v2953 = vsel %vm1671, %v2945, %v2617
        %v2954 = vsel %vm1680, %v2946, %v2930
        %v2955 = vsel %vm1680, %v2947, %v2931
        %v2956 = vsel %vm1680, %v2948, %v2932
        %v2957 = vsel %vm1680, %v2949, %v2933
        %v2958 = vsel %vm1680, %v2950, %v2934
        %v2959 = vsel %vm1680, %v2951, %v2935
        %v2960 = vsel %vm1680, %v2952, %v2936
        %v2961 = vsel %vm1680, %v2953, %v2937
        %v2962 = vpack.c.bf16 %v2955, %v2954
        %v2963 = vpack.c.bf16 %v2957, %v2956
        %v2964 = vpack.c.bf16 %v2959, %v2958
        %v2965 = vpack.c.bf16 %v2961, %v2960
        %v2966 = vld [vmem:[%s9] sm:$0xf]
        %v2967 = vld [vmem:[%s9 + $0x4] sm:$0xf]
        %v2968 = vld [vmem:[%s9 + $0x8] sm:$0xf]
        %v2969 = vld [vmem:[%s9 + $0xc] sm:$0xf]
        %v2970 = vld [vmem:[%s10] sm:$0x1]
        %v2972 = vlaneseq
        %v2973 = vshrl.u32 %v2972, 7
        %v2974 = vsub.s32 0, %v2973
        %v2975 = vrot.slane %v2970, %v2974
        %v2981 = vunpack.c.l.b16 %v2966
        %v2982 = vunpack.c.l.b16 %v2967
        %v2983 = vunpack.c.l.b16 %v2968
        %v2984 = vunpack.c.l.b16 %v2969
        %v2985 = vpack.c.b16 %v2982, %v2981
        %v2986 = vpack.c.b16 %v2984, %v2983
        %v2990 = vsel %vm1716, %v2962, 0
        %v2993 = vsel %vm1716, %v2963, 0
        %v2996 = vsel %vm1716, %v2964, 0
        %v2999 = vsel %vm1716, %v2965, 0
        %3001 = vmatprep.subr.bf16.mxu0 0
        %3002 = vmatpush1.bf16.msra.mxu0 0
        %3003 = vmatprep.subr.bf16.mxu0 0
        %3004 = vmatpush1.bf16.msra.mxu0 0
        %3005 = vmatprep.subr.bf16.mxu0 0
        %3006 = vmatpush1.bf16.msra.mxu0 0
        %3007 = vmatprep.subr.bf16.mxu0 0
        %3008 = vmatpush1.bf16.msra.mxu0 0
        %3009 = vmatprep.subr.bf16.mxu0 0
        %3010 = vmatpush1.bf16.msra.mxu0 0
        %3011 = vmatprep.subr.bf16.mxu0 0
        %3012 = vmatpush1.bf16.msra.mxu0 0
        %3013 = vmatprep.subr.bf16.mxu0 0
        %3014 = vmatpush1.bf16.msra.mxu0 %v2986
        %3015 = vmatprep.subr.bf16.mxu0 0
        %3016 = vmatpush1.bf16.msra.mxu0 %v2985
        %3017 = vmatprep.subr.bf16.mxu0 0
        %3018 = vmatpush2.bf16.msra.mxu0 0
        %3019 = vmatprep.subr.bf16.mxu0 0
        %3020 = vmatpush2.bf16.msra.mxu0 0
        %3021 = vmatprep.subr.bf16.mxu0 0
        %3022 = vmatpush2.bf16.msra.mxu0 0
        %3023 = vmatprep.subr.bf16.mxu0 0
        %3024 = vmatpush2.bf16.msra.mxu0 0
        %3025 = vmatprep.subr.bf16.mxu0 0
        %3026 = vmatpush2.bf16.msra.mxu0 0
        %3027 = vmatprep.subr.bf16.mxu0 0
        %3028 = vmatpush2.bf16.msra.mxu0 0
        %3029 = vmatprep.subr.bf16.mxu0 0
        %3030 = vmatpush2.bf16.msra.mxu0 0
        %3031 = vmatprep.subr.bf16.mxu0 0
        %3032 = vmatpush2.bf16.msra.mxu0 0
        %3033 = vmatprep.mubr.bf16.mxu0 0
        %3034 = vmatmul.mubr.bf16.gmra.mxu0 %v2990
        %v3035 = vpop.f32.mrf.mxu0
        %v3036 = vadd.f32 %v2975, %v3035
        %v3037 = vpop.f32.mrf.mxu0
        %v3038 = vpop.f32.mrf.mxu0
        %v3039 = vadd.f32 %v2975, %v3038
        %v3040 = vpop.f32.mrf.mxu0
        %3041 = vmatprep.mubr.bf16.mxu0 0
        %3042 = vmatmul.mubr.bf16.gmra.mxu0 %v2993
        %v3043 = vpop.f32.mrf.mxu0
        %v3044 = vadd.f32 %v2975, %v3043
        %v3045 = vpop.f32.mrf.mxu0
        %v3046 = vpop.f32.mrf.mxu0
        %v3047 = vadd.f32 %v2975, %v3046
        %v3048 = vpop.f32.mrf.mxu0
        %3049 = vmatprep.mubr.bf16.mxu0 0
        %3050 = vmatmul.mubr.bf16.gmra.mxu0 %v2996
        %v3051 = vpop.f32.mrf.mxu0
        %v3052 = vadd.f32 %v2975, %v3051
        %v3053 = vpop.f32.mrf.mxu0
        %v3054 = vpop.f32.mrf.mxu0
        %v3055 = vadd.f32 %v2975, %v3054
        %v3056 = vpop.f32.mrf.mxu0
        %3057 = vmatprep.mubr.bf16.mxu0 0
        %3058 = vmatmul.mubr.bf16.gmra.mxu0 %v2999
        %v3059 = vpop.f32.mrf.mxu0
        %v3060 = vadd.f32 %v2975, %v3059
        %v3061 = vpop.f32.mrf.mxu0
        %v3062 = vpop.f32.mrf.mxu0
        %v3063 = vadd.f32 %v2975, %v3062
        %v3064 = vpop.f32.mrf.mxu0
        %3065 = vdwg.mxu0
        %v3066 = vmul.f32 %v3036, %v3036
        %v3067 = vmul.f32 %v3039, %v3039
        %v3068 = vmul.f32 %v3044, %v3044
        %v3069 = vmul.f32 %v3047, %v3047
        %v3070 = vmul.f32 %v3052, %v3052
        %v3071 = vmul.f32 %v3055, %v3055
        %v3072 = vmul.f32 %v3060, %v3060
        %v3073 = vmul.f32 %v3063, %v3063
        %v3074 = vmul.f32 %v3036, %v3066
        %v3075 = vmul.f32 %v3039, %v3067
        %v3076 = vmul.f32 %v3044, %v3068
        %v3077 = vmul.f32 %v3047, %v3069
        %v3078 = vmul.f32 %v3052, %v3070
        %v3079 = vmul.f32 %v3055, %v3071
        %v3080 = vmul.f32 %v3060, %v3072
        %v3081 = vmul.f32 %v3063, %v3073
        %v3082 = vmul.f32 %v3074, 0.044715
        %v3083 = vmul.f32 %v3075, 0.044715
        %v3084 = vmul.f32 %v3076, 0.044715
        %v3085 = vmul.f32 %v3077, 0.044715
        %v3086 = vmul.f32 %v3078, 0.044715
        %v3087 = vmul.f32 %v3079, 0.044715
        %v3088 = vmul.f32 %v3080, 0.044715
        %v3089 = vmul.f32 %v3081, 0.044715
        %v3090 = vadd.f32 %v3036, %v3082
        %v3091 = vadd.f32 %v3039, %v3083
        %v3092 = vadd.f32 %v3044, %v3084
        %v3093 = vadd.f32 %v3047, %v3085
        %v3094 = vadd.f32 %v3052, %v3086
        %v3095 = vadd.f32 %v3055, %v3087
        %v3096 = vadd.f32 %v3060, %v3088
        %v3097 = vadd.f32 %v3063, %v3089
        %v3098 = vmul.f32 %v3090, 0.7978846
        %v3099 = vmul.f32 %v3091, 0.7978846
        %v3100 = vmul.f32 %v3092, 0.7978846
        %v3101 = vmul.f32 %v3093, 0.7978846
        %v3102 = vmul.f32 %v3094, 0.7978846
        %v3103 = vmul.f32 %v3095, 0.7978846
        %v3104 = vmul.f32 %v3096, 0.7978846
        %v3105 = vmul.f32 %v3097, 0.7978846
        %v3106 = vtanh.pop %v3098
        %v3107 = vtanh.pop %v3099
        %v3108 = vtanh.pop %v3100
        %v3109 = vtanh.pop %v3101
        %v3110 = vtanh.pop %v3102
        %v3111 = vtanh.pop %v3103
        %v3112 = vtanh.pop %v3104
        %v3113 = vtanh.pop %v3105
        %v3114 = vadd.f32 %v3106, 1.0
        %v3115 = vadd.f32 %v3107, 1.0
        %v3116 = vadd.f32 %v3108, 1.0
        %v3117 = vadd.f32 %v3109, 1.0
        %v3118 = vadd.f32 %v3110, 1.0
        %v3119 = vadd.f32 %v3111, 1.0
        %v3120 = vadd.f32 %v3112, 1.0
        %v3121 = vadd.f32 %v3113, 1.0
        %v3122 = vmul.f32 %v3114, 0.5
        %v3123 = vmul.f32 %v3115, 0.5
        %v3124 = vmul.f32 %v3116, 0.5
        %v3125 = vmul.f32 %v3117, 0.5
        %v3126 = vmul.f32 %v3118, 0.5
        %v3127 = vmul.f32 %v3119, 0.5
        %v3128 = vmul.f32 %v3120, 0.5
        %v3129 = vmul.f32 %v3121, 0.5
        %v3130 = vmul.f32 %v3036, %v3122
        %v3131 = vmul.f32 %v3039, %v3123
        %v3132 = vmul.f32 %v3044, %v3124
        %v3133 = vmul.f32 %v3047, %v3125
        %v3134 = vmul.f32 %v3052, %v3126
        %v3135 = vmul.f32 %v3055, %v3127
        %v3136 = vmul.f32 %v3060, %v3128
        %v3137 = vmul.f32 %v3063, %v3129
        %v3138 = vpack.c.bf16 %v3131, %v3130
        %v3139 = vpack.c.bf16 %v3133, %v3132
        %v3140 = vpack.c.bf16 %v3135, %v3134
        %v3141 = vpack.c.bf16 %v3137, %v3136
        %v3142 = vld [vmem:[#allocation14] sm:$0xf]
        %v3143 = vld [vmem:[#allocation14 + $0x4] sm:$0xf]
        %v3144 = vld [vmem:[#allocation14 + $0x8] sm:$0xf]
        %v3145 = vld [vmem:[#allocation14 + $0xc] sm:$0xf]
        %v3146 = vld [vmem:[#allocation14 + $0x10] sm:$0xf]
        %v3147 = vld [vmem:[#allocation14 + $0x14] sm:$0xf]
        %v3148 = vld [vmem:[#allocation14 + $0x18] sm:$0xf]
        %v3149 = vld [vmem:[#allocation14 + $0x1c] sm:$0xf]
        %v3150 = vld [vmem:[#allocation14 + $0x20] sm:$0xf]
        %v3151 = vld [vmem:[#allocation14 + $0x24] sm:$0xf]
        %v3152 = vld [vmem:[#allocation14 + $0x28] sm:$0xf]
        %v3153 = vld [vmem:[#allocation14 + $0x2c] sm:$0xf]
        %v3154 = vld [vmem:[#allocation14 + $0x30] sm:$0xf]
        %v3155 = vld [vmem:[#allocation14 + $0x34] sm:$0xf]
        %v3156 = vld [vmem:[#allocation14 + $0x38] sm:$0xf]
        %v3157 = vld [vmem:[#allocation14 + $0x3c] sm:$0xf]
        %v3158 = vld [vmem:[%s12] sm:$0x1]
        %v3160 = vlaneseq
        %v3161 = vshrl.u32 %v3160, 7
        %v3162 = vsub.s32 0, %v3161
        %v3163 = vrot.slane %v3158, %v3162
        %v3181 = vunpack.c.l.b16 %v3142
        %v3182 = vunpack.c.l.b16 %v3143
        %v3183 = vunpack.c.l.b16 %v3144
        %v3184 = vunpack.c.l.b16 %v3145
        %v3185 = vunpack.c.l.b16 %v3146
        %v3186 = vunpack.c.l.b16 %v3147
        %v3187 = vunpack.c.l.b16 %v3148
        %v3188 = vunpack.c.l.b16 %v3149
        %v3189 = vunpack.c.l.b16 %v3150
        %v3190 = vunpack.c.l.b16 %v3151
        %v3191 = vunpack.c.l.b16 %v3152
        %v3192 = vunpack.c.l.b16 %v3153
        %v3193 = vunpack.c.l.b16 %v3154
        %v3194 = vunpack.c.l.b16 %v3155
        %v3195 = vunpack.c.l.b16 %v3156
        %v3196 = vunpack.c.l.b16 %v3157
        %v3197 = vpack.c.b16 %v3182, %v3181
        %v3198 = vpack.c.b16 %v3184, %v3183
        %v3199 = vpack.c.b16 %v3186, %v3185
        %v3200 = vpack.c.b16 %v3188, %v3187
        %v3201 = vpack.c.b16 %v3190, %v3189
        %v3202 = vpack.c.b16 %v3192, %v3191
        %v3203 = vpack.c.b16 %v3194, %v3193
        %v3204 = vpack.c.b16 %v3196, %v3195
        %3213 = vmatprep.subr.bf16.mxu0 0
        %3214 = vmatpush1.bf16.msra.mxu0 %v3204
        %3215 = vmatprep.subr.bf16.mxu0 0
        %3216 = vmatpush1.bf16.msra.mxu0 %v3203
        %3217 = vmatprep.subr.bf16.mxu0 0
        %3218 = vmatpush1.bf16.msra.mxu0 %v3202
        %3219 = vmatprep.subr.bf16.mxu0 0
        %3220 = vmatpush1.bf16.msra.mxu0 %v3201
        %3221 = vmatprep.subr.bf16.mxu0 0
        %3222 = vmatpush1.bf16.msra.mxu0 %v3200
        %3223 = vmatprep.subr.bf16.mxu0 0
        %3224 = vmatpush1.bf16.msra.mxu0 %v3199
        %3225 = vmatprep.subr.bf16.mxu0 0
        %3226 = vmatpush1.bf16.msra.mxu0 %v3198
        %3227 = vmatprep.subr.bf16.mxu0 0
        %3228 = vmatpush1.bf16.msra.mxu0 %v3197
        %3229 = vmatprep.subr.bf16.mxu0 0
        %3230 = vmatpush2.bf16.msra.mxu0 0
        %3231 = vmatprep.subr.bf16.mxu0 0
        %3232 = vmatpush2.bf16.msra.mxu0 0
        %3233 = vmatprep.subr.bf16.mxu0 0
        %3234 = vmatpush2.bf16.msra.mxu0 0
        %3235 = vmatprep.subr.bf16.mxu0 0
        %3236 = vmatpush2.bf16.msra.mxu0 0
        %3237 = vmatprep.subr.bf16.mxu0 0
        %3238 = vmatpush2.bf16.msra.mxu0 0
        %3239 = vmatprep.subr.bf16.mxu0 0
        %3240 = vmatpush2.bf16.msra.mxu0 0
        %3241 = vmatprep.subr.bf16.mxu0 0
        %3242 = vmatpush2.bf16.msra.mxu0 0
        %3243 = vmatprep.subr.bf16.mxu0 0
        %3244 = vmatpush2.bf16.msra.mxu0 0
        %3245 = vmatprep.mubr.bf16.mxu0 0
        %3246 = vmatmul.mubr.bf16.gmra.mxu0 %v3138
        %v3247 = vpop.f32.mrf.mxu0
        %v3248 = vadd.f32 %v3163, %v3247
        %v3249 = vpop.f32.mrf.mxu0
        %v3250 = vpop.f32.mrf.mxu0
        %v3251 = vadd.f32 %v3163, %v3250
        %v3252 = vpop.f32.mrf.mxu0
        %3253 = vmatprep.mubr.bf16.mxu0 0
        %3254 = vmatmul.mubr.bf16.gmra.mxu0 %v3139
        %v3255 = vpop.f32.mrf.mxu0
        %v3256 = vadd.f32 %v3163, %v3255
        %v3257 = vpop.f32.mrf.mxu0
        %v3258 = vpop.f32.mrf.mxu0
        %v3259 = vadd.f32 %v3163, %v3258
        %v3260 = vpop.f32.mrf.mxu0
        %3261 = vmatprep.mubr.bf16.mxu0 0
        %3262 = vmatmul.mubr.bf16.gmra.mxu0 %v3140
        %v3263 = vpop.f32.mrf.mxu0
        %v3264 = vadd.f32 %v3163, %v3263
        %v3265 = vpop.f32.mrf.mxu0
        %v3266 = vpop.f32.mrf.mxu0
        %v3267 = vadd.f32 %v3163, %v3266
        %v3268 = vpop.f32.mrf.mxu0
        %3269 = vmatprep.mubr.bf16.mxu0 0
        %3270 = vmatmul.mubr.bf16.gmra.mxu0 %v3141
        %v3271 = vpop.f32.mrf.mxu0
        %v3272 = vadd.f32 %v3163, %v3271
        %v3273 = vpop.f32.mrf.mxu0
        %v3274 = vpop.f32.mrf.mxu0
        %v3275 = vadd.f32 %v3163, %v3274
        %v3276 = vpop.f32.mrf.mxu0
        %3277 = vdwg.mxu0
        %v3278 = vadd.f32 %v2006, %v3248
        %v3279 = vadd.f32 %v2007, %v3251
        %v3280 = vadd.f32 %v2008, %v3256
        %v3281 = vadd.f32 %v2009, %v3259
        %v3282 = vadd.f32 %v2010, %v3264
        %v3283 = vadd.f32 %v2011, %v3267
        %v3284 = vadd.f32 %v2012, %v3272
        %v3285 = vadd.f32 %v2013, %v3275
        %3286 = vst [vmem:[%s529] sm:$0xff] %v3278
        %3287 = vst [vmem:[%s529 + $0x8] sm:$0xff] %v3279
        %3288 = vst [vmem:[%s529 + $0x10] sm:$0xff] %v3280
        %3289 = vst [vmem:[%s529 + $0x18] sm:$0xff] %v3281
        %3290 = vst [vmem:[%s529 + $0x20] sm:$0xff] %v3282
        %3291 = vst [vmem:[%s529 + $0x28] sm:$0xff] %v3283
        %3292 = vst [vmem:[%s529 + $0x30] sm:$0xff] %v3284
        %3293 = vst [vmem:[%s529 + $0x38] sm:$0xff] %v3285
        %s3294 = sand.u32 %s317, 1
        %s3295 = scalar_lea.sflag [#allocation5], %s3294
        %s3296 = sand.u32 %s317, 1
        %s3297 = smul.addr %s3296, 64
        %s3298 = scalar_lea.vmem [#allocation15], %s3297
        // Predicated region
        $region101: #{tpu_custom_call.1} parent=71 // pred_check
          %p3299 = pneg %p327
        $region102: #{tpu_custom_call.1} parent=71 // pred_check_branch
          %3301 = sbr.rel (%p3299) target = $region104
        $region103: #{tpu_custom_call.1} parent=71 // pred_region
          %s3303 = ssub.s32 1024, 1024
          %3304 = vsyncadd %s3295, %s3303
          %s3305 = smul.addr %s31, 8
          %s3306 = smul.addr %s3305, 128
          %s3307 = scalar_lea.hbm %s13, %s3306
          %s3308 = sshll.u32 %s3298, 4
          %s3309 = int_to_ptr.vmem [resolvable:$true] %s3308
          %3314 = dma.vmem_to_hbm [thread:$0]  %s3309, 1024, %s3307, %s3295, 128, 128, 8
        $region104: #{tpu_custom_call.1} parent=71 // pred_fallthru
          _
      $region72: #{tpu_custom_call.1} parent=5 // pred_fallthru
        _
      %p3315 = scmp.le.s32.totalorder 2, %s26
      // Predicated region
      $region105: #{tpu_custom_call.1} parent=5 // pred_check
        %p3316 = pneg %p3315
      $region106: #{tpu_custom_call.1} parent=5 // pred_check_branch
        %3318 = sbr.rel (%p3316) target = $region108
      $region107: #{tpu_custom_call.1} parent=5 // pred_region
        %s3319 = ssub.s32 %s26, 2
        // Predicated region
        $region109: #{tpu_custom_call.1} parent=107 // pred_check
          %p3320 = pneg %p333
        $region110: #{tpu_custom_call.1} parent=107 // pred_check_branch
          %3322 = sbr.rel (%p3320) target = $region112
        $region111: #{tpu_custom_call.1} parent=107 // pred_region
          %s3323 = sand.u32 %s318, 1
          %s3324 = scalar_lea.sflag [#allocation5], %s3323
          %s3325 = sand.u32 %s318, 1
          %s3326 = smul.addr %s3325, 64
          %s3327 = scalar_lea.vmem [#allocation15], %s3326
          %3328 = dma.done %s3324, 1024
        $region112: #{tpu_custom_call.1} parent=107 // pred_fallthru
          _
      $region108: #{tpu_custom_call.1} parent=5 // pred_fallthru
        _
    $region6: #{tpu_custom_call.1} parent=1 // loop_footer
      %s30 = sadd.s32 1, %s26
    $region7: #{tpu_custom_call.1} parent=1 // loop_footer_branch
      %25 = sbr.rel target = $region3
    $region8: #{tpu_custom_call.1} parent=1 // loop_exit
      _
    %3329 = vsyncpa [#allocation4], 1
    %s3330 = scalar_lea.sflag [#allocation4], 1
    %3331 = vsyncpa %s3330, 1
    %3332 = vsyncpa [#allocation7], 1
    %3333 = vsyncpa [#allocation10], 1
    %3334 = vsyncpa [#allocation13], 1
    %3335 = vsyncpa [#allocation5], 1
    %s3336 = scalar_lea.sflag [#allocation5], 1
    %3337 = vsyncpa %s3336, 1

</llo_original>
